<compile_context>
chip_gen: v6e
topology: v6e:2x2x1
jax: 0.10.0
libtpu: 0.0.40
codegen_flags: <defaults>
</compile_context>

<pallas_src>
import functools

import jax
import jax.numpy as jnp
from jax.experimental import pallas as pl
from jax.experimental.pallas import tpu as pltpu


def hetero_gnn_fused_kernel(x_ref, adj_ref, wf_ref, cdst_ref, bconv_ref,
                            wps_ref, bps_ref, o_ref, feat_ref, mask_ref,
                            gate_ref, *, num_types, num_heads):
    """One grid step = one GNN layer (all node types / relations unrolled).

    For each dst type t (per layer):
      conv[t] = sum over source types s of GATConv_{s,t}(x[s], x[t], adj[s->t])
      new_x[t] = Proj_t(relu(conv[t])) + Skip_t(x[t])
    GATConv: shared bias-free linear for src/dst, per-head additive attention
    with LeakyReLU(0.2), softmax over incoming edges, sum aggregation, mean
    over heads (concat=False), per-relation bias (pre-summed over relations).
    """
    T, H = num_types, num_heads
    N, D = o_ref.shape[1], o_ref.shape[2]
    HD = H * D
    layer = pl.program_id(0)

    # Layer 0: seed the resident feature stack and precompute the (layer
    # invariant) additive edge-mask + zero-in-degree gate from int8 adjacency.
    @pl.when(layer == 0)
    def _():
        feat_ref[...] = x_ref[...]
        for t in range(T):
            for s in range(T):
                adjf = adj_ref[t, s].astype(jnp.float32)          # (Nd, Ns)
                mask_ref[t, s] = jnp.where(adjf > 0.0, 0.0, -1e30)
                gate_ref[t, s] = (jnp.sum(adjf, axis=-1, keepdims=True)
                                  > 0.0).astype(jnp.float32)      # (Nd, 1)

    new_feats = []
    for t in range(T):                                 # static unroll: dst types
        xd_f32 = feat_ref[t]                           # (N, D)
        xd_bf = xd_f32.astype(jnp.bfloat16)

        # alpha_dst for ALL source relations of dst t in one small matmul.
        a_dst_all = jnp.dot(xd_bf, cdst_ref[0, t],
                            preferred_element_type=jnp.float32)   # (N, T*H)

        acc = jnp.zeros((N, D), jnp.float32)
        for s in range(T):                             # static unroll: src types
            xs_bf = feat_ref[s].astype(jnp.bfloat16)   # (N, D)
            mask_bias = mask_ref[t, s]                 # (Nd, Ns) f32 additive
            gate = gate_ref[t, s]                      # (Nd, 1)  f32 0/1

            # Per relation: only the useful half of the old fused matmul.
            z = jnp.dot(xs_bf, wf_ref[0, t * T + s],
                        preferred_element_type=jnp.float32)       # (N, HD+H)
            feat_src = z[:, :HD]                       # (Ns, H*D) per-head feats
            a_src_t = z[:, HD:HD + H].T                # (H, Ns)  one transpose
            a_dst = a_dst_all[:, s * H:(s + 1) * H]    # (Nd, H)

            for h in range(H):                         # static unroll: heads
                e = a_dst[:, h:h + 1] + a_src_t[h:h + 1, :]       # (Nd, Ns)
                e = jnp.where(e > 0, e, 0.2 * e)                  # LeakyReLU(0.2)
                e = e + mask_bias                                 # mask non-edges
                m = jnp.max(e, axis=-1, keepdims=True)
                p = jnp.exp(e - m)                                # masked -> 0
                denom = jnp.sum(p, axis=-1, keepdims=True)
                recip = pl.reciprocal(denom, approx=True) * gate  # EUP; 0 if no edge
                alpha = (p * recip).astype(jnp.bfloat16)
                acc = acc + jnp.dot(
                    alpha, feat_src[:, h * D:(h + 1) * D].astype(jnp.bfloat16),
                    preferred_element_type=jnp.float32)

        conv = acc * (1.0 / H) + bconv_ref[0, t]       # head mean + summed biases
        h_act = jnp.maximum(conv, 0.0)                 # relu

        # Fused projection + skip: [relu(conv) ; x_dst] @ [Wp ; Ws] + (bp + bs).
        lhs2 = jnp.concatenate([h_act, xd_f32], axis=1).astype(jnp.bfloat16)
        out_t = (jnp.dot(lhs2, wps_ref[0, t], preferred_element_type=jnp.float32)
                 + bps_ref[0, t])
        new_feats.append(out_t)

    # Defer writes so later dst types read this layer's *inputs*.
    for t in range(T):
        feat_ref[t] = new_feats[t]

    @pl.when(layer == pl.num_programs(0) - 1)
    def _():
        for t in range(T):
            o_ref[t] = new_feats[t].astype(o_ref.dtype)


def hetero_gnn_forward_pallas(x_stack, adj_i8, wf, cdst, bconv, wps, bps):
    """All L HeteroGNN layers in one pallas_call. x_stack (T,N,D) -> (T,N,D)."""
    T, N, D = x_stack.shape
    L = wf.shape[0]
    Csrc = wf.shape[-1]                    # H*D + H
    H = Csrc // (D + 1)
    kernel = functools.partial(hetero_gnn_fused_kernel,
                               num_types=T, num_heads=H)
    return pl.pallas_call(
        kernel,
        out_shape=jax.ShapeDtypeStruct((T, N, D), jnp.float32),
        grid_spec=pltpu.PrefetchScalarGridSpec(
            num_scalar_prefetch=0,
            grid=(L,),
            in_specs=[
                pl.BlockSpec((T, N, D), lambda l: (0, 0, 0)),          # features (layer 0)
                pl.BlockSpec((T, T, N, N), lambda l: (0, 0, 0, 0)),    # int8 adjacency
                pl.BlockSpec((1, T * T, D, Csrc), lambda l: (l, 0, 0, 0)),  # [W | W@att_src]
                pl.BlockSpec((1, T, D, T * H), lambda l: (l, 0, 0, 0)),     # W@att_dst (all s)
                pl.BlockSpec((1, T, 1, D), lambda l: (l, 0, 0, 0)),         # summed GAT bias
                pl.BlockSpec((1, T, 2 * D, D), lambda l: (l, 0, 0, 0)),     # [proj_w; skip_w]
                pl.BlockSpec((1, T, 1, D), lambda l: (l, 0, 0, 0)),         # proj_b + skip_b
            ],
            out_specs=pl.BlockSpec((T, N, D), lambda l: (0, 0, 0)),
            scratch_shapes=[
                pltpu.VMEM((T, N, D), jnp.float32),      # resident feature stack
                pltpu.VMEM((T, T, N, N), jnp.float32),   # additive edge mask
                pltpu.VMEM((T, T, N, 1), jnp.float32),   # zero-in-degree gate
            ],
        ),
        compiler_params=pltpu.CompilerParams(
            dimension_semantics=("arbitrary",)),
    )(x_stack, adj_i8, wf, cdst, bconv, wps, bps)


def init_params(key, node_types, hidden, num_layers, num_heads):
    """Reference (unfused) parameterization, identical to the PyG layout."""
    D, H = hidden, num_heads
    params = {"layers": []}
    for _ in range(num_layers):
        layer = {"conv": {}, "node": {}}
        for s in node_types:
            for t in node_types:
                key, k1, k2, k3, k4 = jax.random.split(key, 5)
                layer["conv"][(s, t)] = {
                    "w": 0.1 * jax.random.normal(k1, (D, H * D), jnp.float32),
                    "att_src": 0.1 * jax.random.normal(k2, (H, D), jnp.float32),
                    "att_dst": 0.1 * jax.random.normal(k3, (H, D), jnp.float32),
                    "bias": 0.1 * jax.random.normal(k4, (D,), jnp.float32),
                }
        for t in node_types:
            key, k1, k2, k3, k4 = jax.random.split(key, 5)
            layer["node"][t] = {
                "proj_w": 0.1 * jax.random.normal(k1, (D, D), jnp.float32),
                "proj_b": 0.1 * jax.random.normal(k2, (D,), jnp.float32),
                "skip_w": 0.1 * jax.random.normal(k3, (D, D), jnp.float32),
                "skip_b": 0.1 * jax.random.normal(k4, (D,), jnp.float32),
            }
        params["layers"].append(layer)
    return params


def fuse_all_params(params, node_types, num_heads):
    """One-time host-side fusion/stacking of ALL layers' parameters.

    Per relation (s, t): fold att_src into extra weight columns
      a_src_j = x_j . (W_h @ att_src_h)   ->  wf[(t,s)] = [W | c_src]  (D, HD+H)
    and gather every source type's c_dst for dst t into one (D, T*H) block.
    GAT biases are summed over relations; proj/skip are fused into one matmul.
    """
    H = num_heads
    T = len(node_types)
    D = params["layers"][0]["node"][node_types[0]]["proj_w"].shape[0]
    wf_L, cdst_L, bconv_L, wps_L, bps_L = [], [], [], [], []
    for layer in params["layers"]:
        wf_rows, cdst_rows, bconv_rows, wps_rows, bps_rows = [], [], [], [], []
        for t in node_types:
            bias_sum = jnp.zeros((D,), jnp.float32)
            cdst_t = []
            for s in node_types:
                c = layer["conv"][(s, t)]
                w = c["w"]                                               # (D, H*D)
                c_src = jnp.stack([w[:, h * D:(h + 1) * D] @ c["att_src"][h]
                                   for h in range(H)], axis=1)           # (D, H)
                c_dst = jnp.stack([w[:, h * D:(h + 1) * D] @ c["att_dst"][h]
                                   for h in range(H)], axis=1)           # (D, H)
                wf_rows.append(jnp.concatenate([w, c_src], axis=1))      # (D, HD+H)
                cdst_t.append(c_dst)
                bias_sum = bias_sum + c["bias"]
            cdst_rows.append(jnp.concatenate(cdst_t, axis=1))            # (D, T*H)
            bconv_rows.append(bias_sum[None, :])                         # (1, D)
            n = layer["node"][t]
            wps_rows.append(jnp.concatenate([n["proj_w"], n["skip_w"]], axis=0))
            bps_rows.append((n["proj_b"] + n["skip_b"])[None, :])
        wf_L.append(jnp.stack(wf_rows))        # (T*T, D, HD+H), flat idx = t*T+s
        cdst_L.append(jnp.stack(cdst_rows))    # (T, D, T*H)
        bconv_L.append(jnp.stack(bconv_rows))  # (T, 1, D)
        wps_L.append(jnp.stack(wps_rows))      # (T, 2D, D)
        bps_L.append(jnp.stack(bps_rows))      # (T, 1, D)
    return (jnp.stack(wf_L).astype(jnp.bfloat16),     # (L, T*T, D, HD+H)
            jnp.stack(cdst_L).astype(jnp.bfloat16),   # (L, T, D, T*H)
            jnp.stack(bconv_L),                       # (L, T, 1, D) f32
            jnp.stack(wps_L).astype(jnp.bfloat16),    # (L, T, 2D, D)
            jnp.stack(bps_L))                         # (L, T, 1, D) f32


@jax.jit
def hetero_gnn_forward(x_stack, adj_i8, wf, cdst, bconv, wps, bps):
    return hetero_gnn_forward_pallas(x_stack, adj_i8, wf, cdst, bconv, wps, bps)


if __name__ == "__main__":
    node_types = ["author", "paper"]
    N, D, H, L = 16, 32, 2, 2   # nodes per type, hidden_units, num_heads, num_layers
    E = 40                      # edges per relation

    key = jax.random.PRNGKey(0)
    key, kp = jax.random.split(key)
    params = init_params(kp, node_types, D, L, H)
    wf, cdst, bconv, wps, bps = fuse_all_params(params, node_types, H)

    x_dict = {}
    for nt in node_types:
        key, kx = jax.random.split(key)
        x_dict[nt] = jax.random.normal(kx, (N, D), jnp.float32)

    # edge_index_dict -> dense int8 adjacency masks adj[dst, src] = 1.
    adj_dict = {}
    for s in node_types:
        for t in node_types:
            key, ks, kd = jax.random.split(key, 3)
            src = jax.random.randint(ks, (E,), 0, N)
            dst = jax.random.randint(kd, (E,), 0, N)
            adj = jnp.zeros((N, N), jnp.int8).at[dst, src].set(1)
            adj_dict[(s, f"{s}_{t}", t)] = adj

    # Stack once: features (T, N, D); adjacency (T_dst, T_src, N, N) int8.
    x_stack = jnp.stack([x_dict[nt] for nt in node_types])
    adj_stack = jnp.stack([jnp.stack([adj_dict[(s, f"{s}_{t}", t)]
                                      for s in node_types])
                           for t in node_types])

    out = hetero_gnn_forward(x_stack, adj_stack, wf, cdst, bconv, wps, bps)
    jax.block_until_ready(out)

    out_dict = {nt: out[i] for i, nt in enumerate(node_types)}
    for nt in node_types:
        assert out_dict[nt].shape == (N, D)
    print("KERNEL_OK")
</pallas_src>

<mosaic_0001>
module attributes {stable_mosaic.version = 11 : i64} {
  func.func @hetero_gnn_fused_kernel(%arg0: i32, %arg1: memref<2x16x32xf32, #tpu.memory_space<vmem>>, %arg2: memref<2x2x16x16xi8, #tpu.memory_space<vmem>>, %arg3: memref<1x4x32x66xbf16, #tpu.memory_space<vmem>>, %arg4: memref<1x2x32x4xbf16, #tpu.memory_space<vmem>>, %arg5: memref<1x2x1x32xf32, #tpu.memory_space<vmem>>, %arg6: memref<1x2x64x32xbf16, #tpu.memory_space<vmem>>, %arg7: memref<1x2x1x32xf32, #tpu.memory_space<vmem>>, %arg8: memref<2x16x32xf32, #tpu.memory_space<vmem>>, %arg9: memref<2x16x32xf32, #tpu.memory_space<vmem>>, %arg10: memref<2x2x16x16xf32, #tpu.memory_space<vmem>>, %arg11: memref<2x2x16x1xf32, #tpu.memory_space<vmem>>) attributes {dimension_semantics = [#tpu.dimension_semantics<arbitrary>], iteration_bounds = array<i64: 2>, scalar_prefetch = 0 : i64, scratch_operands = 3 : i64, tpu.core_type = #tpu.core_type<tc>, window_params = [{pipeline_mode = #tpu.pipeline_mode<synchronous>, transform_indices = @transform_0, window_bounds = array<i64: 2, 16, 32>}, {pipeline_mode = #tpu.pipeline_mode<synchronous>, transform_indices = @transform_1, window_bounds = array<i64: 2, 2, 16, 16>}, {transform_indices = @transform_2, window_bounds = array<i64: 1, 4, 32, 66>}, {transform_indices = @transform_3, window_bounds = array<i64: 1, 2, 32, 4>}, {transform_indices = @transform_4, window_bounds = array<i64: 1, 2, 1, 32>}, {transform_indices = @transform_5, window_bounds = array<i64: 1, 2, 64, 32>}, {transform_indices = @transform_6, window_bounds = array<i64: 1, 2, 1, 32>}, {pipeline_mode = #tpu.pipeline_mode<synchronous>, transform_indices = @transform_7, window_bounds = array<i64: 2, 16, 32>}]} {
    %c0_i32 = arith.constant 0 : i32
    %0 = arith.cmpi eq, %arg0, %c0_i32 : i32
    %1 = arith.extui %0 : i1 to i32
    %c0_i32_0 = arith.constant 0 : i32
    %2 = arith.cmpi ne, %1, %c0_i32_0 : i32
    scf.if %2 {
      %c0_155 = arith.constant 0 : index
      %c0_156 = arith.constant 0 : index
      %c0_157 = arith.constant 0 : index
      %332 = vector.load %arg1[%c0_155, %c0_156, %c0_157] : memref<2x16x32xf32, #tpu.memory_space<vmem>>, vector<2x16x32xf32>
      %c0_158 = arith.constant 0 : index
      %c0_159 = arith.constant 0 : index
      %c0_160 = arith.constant 0 : index
      %333 = vector.load %arg9[%c0_158, %c0_159, %c0_160] : memref<2x16x32xf32, #tpu.memory_space<vmem>>, vector<2x16x32xf32>
      tpu.vector_store %arg9[%c0_158, %c0_159, %c0_160], %332 {strides = array<i32>} : memref<2x16x32xf32, #tpu.memory_space<vmem>>, vector<2x16x32xf32>,
      %c0_161 = arith.constant 0 : index
      %c0_162 = arith.constant 0 : index
      %c0_163 = arith.constant 0 : index
      %c0_164 = arith.constant 0 : index
      %334 = vector.load %arg2[%c0_161, %c0_162, %c0_163, %c0_164] : memref<2x2x16x16xi8, #tpu.memory_space<vmem>>, vector<1x1x16x16xi8>
      %335 = vector.shape_cast %334 : vector<1x1x16x16xi8> to vector<16x16xi8>
      %336 = arith.sitofp %335 : vector<16x16xi8> to vector<16x16xf32>
      %cst_165 = arith.constant 0.000000e+00 : f32
      %337 = vector.broadcast %cst_165 : f32 to vector<16x16xf32>
      %338 = arith.cmpf ogt, %336, %337 : vector<16x16xf32>
      %cst_166 = arith.constant 0.000000e+00 : f32
      %cst_167 = arith.constant -1.000000e+30 : f32
      %339 = vector.broadcast %cst_166 : f32 to vector<16x16xf32>
      %340 = vector.broadcast %cst_167 : f32 to vector<16x16xf32>
      %341 = arith.select %338, %339, %340 : vector<16x16xi1>, vector<16x16xf32>
      %c0_168 = arith.constant 0 : index
      %c0_169 = arith.constant 0 : index
      %c0_170 = arith.constant 0 : index
      %c0_171 = arith.constant 0 : index
      %342 = vector.load %arg10[%c0_168, %c0_169, %c0_170, %c0_171] : memref<2x2x16x16xf32, #tpu.memory_space<vmem>>, vector<1x1x16x16xf32>
      %343 = vector.shape_cast %342 : vector<1x1x16x16xf32> to vector<16x16xf32>
      %344 = vector.shape_cast %341 : vector<16x16xf32> to vector<1x1x16x16xf32>
      tpu.vector_store %arg10[%c0_168, %c0_169, %c0_170, %c0_171], %344 {strides = array<i32>} : memref<2x2x16x16xf32, #tpu.memory_space<vmem>>, vector<1x1x16x16xf32>,
      %cst_172 = arith.constant dense<0.000000e+00> : vector<16xf32>
      %345 = vector.multi_reduction <add>, %336, %cst_172 [1] : vector<16x16xf32> to vector<16xf32>
      %346 = vector.shape_cast %345 : vector<16xf32> to vector<16x1xf32>
      %cst_173 = arith.constant 0.000000e+00 : f32
      %347 = vector.broadcast %cst_173 : f32 to vector<16x1xf32>
      %348 = arith.cmpf ogt, %346, %347 : vector<16x1xf32>
      %349 = arith.extui %348 : vector<16x1xi1> to vector<16x1xi32>
      %350 = arith.sitofp %349 : vector<16x1xi32> to vector<16x1xf32>
      %c0_174 = arith.constant 0 : index
      %c0_175 = arith.constant 0 : index
      %c0_176 = arith.constant 0 : index
      %c0_177 = arith.constant 0 : index
      %351 = vector.load %arg11[%c0_174, %c0_175, %c0_176, %c0_177] : memref<2x2x16x1xf32, #tpu.memory_space<vmem>>, vector<1x1x16x1xf32>
      %352 = vector.shape_cast %351 : vector<1x1x16x1xf32> to vector<16x1xf32>
      %353 = vector.shape_cast %350 : vector<16x1xf32> to vector<1x1x16x1xf32>
      tpu.vector_store %arg11[%c0_174, %c0_175, %c0_176, %c0_177], %353 {strides = array<i32>} : memref<2x2x16x1xf32, #tpu.memory_space<vmem>>, vector<1x1x16x1xf32>,
      %c0_178 = arith.constant 0 : index
      %c1_179 = arith.constant 1 : index
      %c0_180 = arith.constant 0 : index
      %c0_181 = arith.constant 0 : index
      %354 = vector.load %arg2[%c0_178, %c1_179, %c0_180, %c0_181] : memref<2x2x16x16xi8, #tpu.memory_space<vmem>>, vector<1x1x16x16xi8>
      %355 = vector.shape_cast %354 : vector<1x1x16x16xi8> to vector<16x16xi8>
      %356 = arith.sitofp %355 : vector<16x16xi8> to vector<16x16xf32>
      %cst_182 = arith.constant 0.000000e+00 : f32
      %357 = vector.broadcast %cst_182 : f32 to vector<16x16xf32>
      %358 = arith.cmpf ogt, %356, %357 : vector<16x16xf32>
      %cst_183 = arith.constant 0.000000e+00 : f32
      %cst_184 = arith.constant -1.000000e+30 : f32
      %359 = vector.broadcast %cst_183 : f32 to vector<16x16xf32>
      %360 = vector.broadcast %cst_184 : f32 to vector<16x16xf32>
      %361 = arith.select %358, %359, %360 : vector<16x16xi1>, vector<16x16xf32>
      %c0_185 = arith.constant 0 : index
      %c1_186 = arith.constant 1 : index
      %c0_187 = arith.constant 0 : index
      %c0_188 = arith.constant 0 : index
      %362 = vector.load %arg10[%c0_185, %c1_186, %c0_187, %c0_188] : memref<2x2x16x16xf32, #tpu.memory_space<vmem>>, vector<1x1x16x16xf32>
      %363 = vector.shape_cast %362 : vector<1x1x16x16xf32> to vector<16x16xf32>
      %364 = vector.shape_cast %361 : vector<16x16xf32> to vector<1x1x16x16xf32>
      tpu.vector_store %arg10[%c0_185, %c1_186, %c0_187, %c0_188], %364 {strides = array<i32>} : memref<2x2x16x16xf32, #tpu.memory_space<vmem>>, vector<1x1x16x16xf32>,
      %cst_189 = arith.constant dense<0.000000e+00> : vector<16xf32>
      %365 = vector.multi_reduction <add>, %356, %cst_189 [1] : vector<16x16xf32> to vector<16xf32>
      %366 = vector.shape_cast %365 : vector<16xf32> to vector<16x1xf32>
      %cst_190 = arith.constant 0.000000e+00 : f32
      %367 = vector.broadcast %cst_190 : f32 to vector<16x1xf32>
      %368 = arith.cmpf ogt, %366, %367 : vector<16x1xf32>
      %369 = arith.extui %368 : vector<16x1xi1> to vector<16x1xi32>
      %370 = arith.sitofp %369 : vector<16x1xi32> to vector<16x1xf32>
      %c0_191 = arith.constant 0 : index
      %c1_192 = arith.constant 1 : index
      %c0_193 = arith.constant 0 : index
      %c0_194 = arith.constant 0 : index
      %371 = vector.load %arg11[%c0_191, %c1_192, %c0_193, %c0_194] : memref<2x2x16x1xf32, #tpu.memory_space<vmem>>, vector<1x1x16x1xf32>
      %372 = vector.shape_cast %371 : vector<1x1x16x1xf32> to vector<16x1xf32>
      %373 = vector.shape_cast %370 : vector<16x1xf32> to vector<1x1x16x1xf32>
      tpu.vector_store %arg11[%c0_191, %c1_192, %c0_193, %c0_194], %373 {strides = array<i32>} : memref<2x2x16x1xf32, #tpu.memory_space<vmem>>, vector<1x1x16x1xf32>,
      %c1_195 = arith.constant 1 : index
      %c0_196 = arith.constant 0 : index
      %c0_197 = arith.constant 0 : index
      %c0_198 = arith.constant 0 : index
      %374 = vector.load %arg2[%c1_195, %c0_196, %c0_197, %c0_198] : memref<2x2x16x16xi8, #tpu.memory_space<vmem>>, vector<1x1x16x16xi8>
      %375 = vector.shape_cast %374 : vector<1x1x16x16xi8> to vector<16x16xi8>
      %376 = arith.sitofp %375 : vector<16x16xi8> to vector<16x16xf32>
      %cst_199 = arith.constant 0.000000e+00 : f32
      %377 = vector.broadcast %cst_199 : f32 to vector<16x16xf32>
      %378 = arith.cmpf ogt, %376, %377 : vector<16x16xf32>
      %cst_200 = arith.constant 0.000000e+00 : f32
      %cst_201 = arith.constant -1.000000e+30 : f32
      %379 = vector.broadcast %cst_200 : f32 to vector<16x16xf32>
      %380 = vector.broadcast %cst_201 : f32 to vector<16x16xf32>
      %381 = arith.select %378, %379, %380 : vector<16x16xi1>, vector<16x16xf32>
      %c1_202 = arith.constant 1 : index
      %c0_203 = arith.constant 0 : index
      %c0_204 = arith.constant 0 : index
      %c0_205 = arith.constant 0 : index
      %382 = vector.load %arg10[%c1_202, %c0_203, %c0_204, %c0_205] : memref<2x2x16x16xf32, #tpu.memory_space<vmem>>, vector<1x1x16x16xf32>
      %383 = vector.shape_cast %382 : vector<1x1x16x16xf32> to vector<16x16xf32>
      %384 = vector.shape_cast %381 : vector<16x16xf32> to vector<1x1x16x16xf32>
      tpu.vector_store %arg10[%c1_202, %c0_203, %c0_204, %c0_205], %384 {strides = array<i32>} : memref<2x2x16x16xf32, #tpu.memory_space<vmem>>, vector<1x1x16x16xf32>,
      %cst_206 = arith.constant dense<0.000000e+00> : vector<16xf32>
      %385 = vector.multi_reduction <add>, %376, %cst_206 [1] : vector<16x16xf32> to vector<16xf32>
      %386 = vector.shape_cast %385 : vector<16xf32> to vector<16x1xf32>
      %cst_207 = arith.constant 0.000000e+00 : f32
      %387 = vector.broadcast %cst_207 : f32 to vector<16x1xf32>
      %388 = arith.cmpf ogt, %386, %387 : vector<16x1xf32>
      %389 = arith.extui %388 : vector<16x1xi1> to vector<16x1xi32>
      %390 = arith.sitofp %389 : vector<16x1xi32> to vector<16x1xf32>
      %c1_208 = arith.constant 1 : index
      %c0_209 = arith.constant 0 : index
      %c0_210 = arith.constant 0 : index
      %c0_211 = arith.constant 0 : index
      %391 = vector.load %arg11[%c1_208, %c0_209, %c0_210, %c0_211] : memref<2x2x16x1xf32, #tpu.memory_space<vmem>>, vector<1x1x16x1xf32>
      %392 = vector.shape_cast %391 : vector<1x1x16x1xf32> to vector<16x1xf32>
      %393 = vector.shape_cast %390 : vector<16x1xf32> to vector<1x1x16x1xf32>
      tpu.vector_store %arg11[%c1_208, %c0_209, %c0_210, %c0_211], %393 {strides = array<i32>} : memref<2x2x16x1xf32, #tpu.memory_space<vmem>>, vector<1x1x16x1xf32>,
      %c1_212 = arith.constant 1 : index
      %c1_213 = arith.constant 1 : index
      %c0_214 = arith.constant 0 : index
      %c0_215 = arith.constant 0 : index
      %394 = vector.load %arg2[%c1_212, %c1_213, %c0_214, %c0_215] : memref<2x2x16x16xi8, #tpu.memory_space<vmem>>, vector<1x1x16x16xi8>
      %395 = vector.shape_cast %394 : vector<1x1x16x16xi8> to vector<16x16xi8>
      %396 = arith.sitofp %395 : vector<16x16xi8> to vector<16x16xf32>
      %cst_216 = arith.constant 0.000000e+00 : f32
      %397 = vector.broadcast %cst_216 : f32 to vector<16x16xf32>
      %398 = arith.cmpf ogt, %396, %397 : vector<16x16xf32>
      %cst_217 = arith.constant 0.000000e+00 : f32
      %cst_218 = arith.constant -1.000000e+30 : f32
      %399 = vector.broadcast %cst_217 : f32 to vector<16x16xf32>
      %400 = vector.broadcast %cst_218 : f32 to vector<16x16xf32>
      %401 = arith.select %398, %399, %400 : vector<16x16xi1>, vector<16x16xf32>
      %c1_219 = arith.constant 1 : index
      %c1_220 = arith.constant 1 : index
      %c0_221 = arith.constant 0 : index
      %c0_222 = arith.constant 0 : index
      %402 = vector.load %arg10[%c1_219, %c1_220, %c0_221, %c0_222] : memref<2x2x16x16xf32, #tpu.memory_space<vmem>>, vector<1x1x16x16xf32>
      %403 = vector.shape_cast %402 : vector<1x1x16x16xf32> to vector<16x16xf32>
      %404 = vector.shape_cast %401 : vector<16x16xf32> to vector<1x1x16x16xf32>
      tpu.vector_store %arg10[%c1_219, %c1_220, %c0_221, %c0_222], %404 {strides = array<i32>} : memref<2x2x16x16xf32, #tpu.memory_space<vmem>>, vector<1x1x16x16xf32>,
      %cst_223 = arith.constant dense<0.000000e+00> : vector<16xf32>
      %405 = vector.multi_reduction <add>, %396, %cst_223 [1] : vector<16x16xf32> to vector<16xf32>
      %406 = vector.shape_cast %405 : vector<16xf32> to vector<16x1xf32>
      %cst_224 = arith.constant 0.000000e+00 : f32
      %407 = vector.broadcast %cst_224 : f32 to vector<16x1xf32>
      %408 = arith.cmpf ogt, %406, %407 : vector<16x1xf32>
      %409 = arith.extui %408 : vector<16x1xi1> to vector<16x1xi32>
      %410 = arith.sitofp %409 : vector<16x1xi32> to vector<16x1xf32>
      %c1_225 = arith.constant 1 : index
      %c1_226 = arith.constant 1 : index
      %c0_227 = arith.constant 0 : index
      %c0_228 = arith.constant 0 : index
      %411 = vector.load %arg11[%c1_225, %c1_226, %c0_227, %c0_228] : memref<2x2x16x1xf32, #tpu.memory_space<vmem>>, vector<1x1x16x1xf32>
      %412 = vector.shape_cast %411 : vector<1x1x16x1xf32> to vector<16x1xf32>
      %413 = vector.shape_cast %410 : vector<16x1xf32> to vector<1x1x16x1xf32>
      tpu.vector_store %arg11[%c1_225, %c1_226, %c0_227, %c0_228], %413 {strides = array<i32>} : memref<2x2x16x1xf32, #tpu.memory_space<vmem>>, vector<1x1x16x1xf32>,
    } else {
    }
    %c0 = arith.constant 0 : index
    %c0_1 = arith.constant 0 : index
    %c0_2 = arith.constant 0 : index
    %3 = vector.load %arg9[%c0, %c0_1, %c0_2] : memref<2x16x32xf32, #tpu.memory_space<vmem>>, vector<1x16x32xf32>
    %4 = vector.shape_cast %3 : vector<1x16x32xf32> to vector<16x32xf32>
    %5 = arith.truncf %4 : vector<16x32xf32> to vector<16x32xbf16>
    %c0_3 = arith.constant 0 : index
    %c0_4 = arith.constant 0 : index
    %c0_5 = arith.constant 0 : index
    %c0_6 = arith.constant 0 : index
    %6 = vector.load %arg4[%c0_3, %c0_4, %c0_5, %c0_6] : memref<1x2x32x4xbf16, #tpu.memory_space<vmem>>, vector<1x1x32x4xbf16>
    %7 = vector.shape_cast %6 : vector<1x1x32x4xbf16> to vector<32x4xbf16>
    %cst = arith.constant dense<0.000000e+00> : vector<16x4xf32>
    %8 = tpu.matmul %5, %7, %cst {dimension_numbers = #tpu.dot_dimension_numbers<[1], [0], [0], [1], [0, 0, 1, 1], [], []>} : vector<16x32xbf16>, vector<32x4xbf16>, vector<16x4xf32> -> vector<16x4xf32>
    %cst_7 = arith.constant 0.000000e+00 : f32
    %9 = vector.broadcast %cst_7 : f32 to vector<16x32xf32>
    %c0_8 = arith.constant 0 : index
    %c0_9 = arith.constant 0 : index
    %c0_10 = arith.constant 0 : index
    %10 = vector.load %arg9[%c0_8, %c0_9, %c0_10] : memref<2x16x32xf32, #tpu.memory_space<vmem>>, vector<1x16x32xf32>
    %11 = vector.shape_cast %10 : vector<1x16x32xf32> to vector<16x32xf32>
    %12 = arith.truncf %11 : vector<16x32xf32> to vector<16x32xbf16>
    %c0_11 = arith.constant 0 : index
    %c0_12 = arith.constant 0 : index
    %c0_13 = arith.constant 0 : index
    %c0_14 = arith.constant 0 : index
    %13 = vector.load %arg10[%c0_11, %c0_12, %c0_13, %c0_14] : memref<2x2x16x16xf32, #tpu.memory_space<vmem>>, vector<1x1x16x16xf32>
    %14 = vector.shape_cast %13 : vector<1x1x16x16xf32> to vector<16x16xf32>
    %c0_15 = arith.constant 0 : index
    %c0_16 = arith.constant 0 : index
    %c0_17 = arith.constant 0 : index
    %c0_18 = arith.constant 0 : index
    %15 = vector.load %arg11[%c0_15, %c0_16, %c0_17, %c0_18] : memref<2x2x16x1xf32, #tpu.memory_space<vmem>>, vector<1x1x16x1xf32>
    %16 = vector.shape_cast %15 : vector<1x1x16x1xf32> to vector<16x1xf32>
    %c0_19 = arith.constant 0 : index
    %c0_20 = arith.constant 0 : index
    %c0_21 = arith.constant 0 : index
    %c0_22 = arith.constant 0 : index
    %17 = vector.load %arg3[%c0_19, %c0_20, %c0_21, %c0_22] : memref<1x4x32x66xbf16, #tpu.memory_space<vmem>>, vector<1x1x32x66xbf16>
    %18 = vector.shape_cast %17 : vector<1x1x32x66xbf16> to vector<32x66xbf16>
    %cst_23 = arith.constant dense<0.000000e+00> : vector<16x66xf32>
    %19 = tpu.matmul %12, %18, %cst_23 {dimension_numbers = #tpu.dot_dimension_numbers<[1], [0], [0], [1], [0, 0, 1, 1], [], []>} : vector<16x32xbf16>, vector<32x66xbf16>, vector<16x66xf32> -> vector<16x66xf32>
    %20 = vector.extract_strided_slice %19 {offsets = [0, 0], sizes = [16, 64], strides = [1, 1]} : vector<16x66xf32> to vector<16x64xf32>
    %21 = vector.extract_strided_slice %19 {offsets = [0, 64], sizes = [16, 2], strides = [1, 1]} : vector<16x66xf32> to vector<16x2xf32>
    %22 = tpu.transpose %21, [1, 0] : vector<16x2xf32> -> vector<2x16xf32>
    %23 = vector.extract_strided_slice %8 {offsets = [0, 0], sizes = [16, 2], strides = [1, 1]} : vector<16x4xf32> to vector<16x2xf32>
    %24 = vector.extract_strided_slice %23 {offsets = [0, 0], sizes = [16, 1], strides = [1, 1]} : vector<16x2xf32> to vector<16x1xf32>
    %25 = vector.extract_strided_slice %22 {offsets = [0, 0], sizes = [1, 16], strides = [1, 1]} : vector<2x16xf32> to vector<1x16xf32>
    %26 = vector.broadcast %24 : vector<16x1xf32> to vector<16x16xf32>
    %27 = vector.broadcast %25 : vector<1x16xf32> to vector<16x16xf32>
    %28 = arith.addf %26, %27 : vector<16x16xf32>
    %cst_24 = arith.constant 0.000000e+00 : f32
    %29 = vector.broadcast %cst_24 : f32 to vector<16x16xf32>
    %30 = arith.cmpf ogt, %28, %29 : vector<16x16xf32>
    %cst_25 = arith.constant 2.000000e-01 : f32
    %31 = vector.broadcast %cst_25 : f32 to vector<16x16xf32>
    %32 = arith.mulf %31, %28 : vector<16x16xf32>
    %33 = arith.select %30, %28, %32 : vector<16x16xi1>, vector<16x16xf32>
    %34 = arith.addf %33, %14 : vector<16x16xf32>
    %cst_26 = arith.constant dense<0xFF800000> : vector<16xf32>
    %35 = vector.multi_reduction <maximumf>, %34, %cst_26 [1] : vector<16x16xf32> to vector<16xf32>
    %36 = vector.shape_cast %35 : vector<16xf32> to vector<16x1xf32>
    %37 = vector.broadcast %36 : vector<16x1xf32> to vector<16x16xf32>
    %38 = arith.subf %34, %37 : vector<16x16xf32>
    %39 = math.exp %38 : vector<16x16xf32>
    %cst_27 = arith.constant dense<0.000000e+00> : vector<16xf32>
    %40 = vector.multi_reduction <add>, %39, %cst_27 [1] : vector<16x16xf32> to vector<16xf32>
    %41 = vector.shape_cast %40 : vector<16xf32> to vector<16x1xf32>
    %42 = tpu.reciprocal %41 {approx = true} : vector<16x1xf32> -> vector<16x1xf32>
    %43 = arith.mulf %42, %16 : vector<16x1xf32>
    %44 = vector.broadcast %43 : vector<16x1xf32> to vector<16x16xf32>
    %45 = arith.mulf %39, %44 : vector<16x16xf32>
    %46 = arith.truncf %45 : vector<16x16xf32> to vector<16x16xbf16>
    %47 = vector.extract_strided_slice %20 {offsets = [0, 0], sizes = [16, 32], strides = [1, 1]} : vector<16x64xf32> to vector<16x32xf32>
    %48 = arith.truncf %47 : vector<16x32xf32> to vector<16x32xbf16>
    %cst_28 = arith.constant dense<0.000000e+00> : vector<16x32xf32>
    %49 = tpu.matmul %46, %48, %cst_28 {dimension_numbers = #tpu.dot_dimension_numbers<[1], [0], [0], [1], [0, 0, 1, 1], [], []>} : vector<16x16xbf16>, vector<16x32xbf16>, vector<16x32xf32> -> vector<16x32xf32>
    %50 = arith.addf %9, %49 : vector<16x32xf32>
    %51 = vector.extract_strided_slice %23 {offsets = [0, 1], sizes = [16, 1], strides = [1, 1]} : vector<16x2xf32> to vector<16x1xf32>
    %52 = vector.extract_strided_slice %22 {offsets = [1, 0], sizes = [1, 16], strides = [1, 1]} : vector<2x16xf32> to vector<1x16xf32>
    %53 = vector.broadcast %51 : vector<16x1xf32> to vector<16x16xf32>
    %54 = vector.broadcast %52 : vector<1x16xf32> to vector<16x16xf32>
    %55 = arith.addf %53, %54 : vector<16x16xf32>
    %cst_29 = arith.constant 0.000000e+00 : f32
    %56 = vector.broadcast %cst_29 : f32 to vector<16x16xf32>
    %57 = arith.cmpf ogt, %55, %56 : vector<16x16xf32>
    %cst_30 = arith.constant 2.000000e-01 : f32
    %58 = vector.broadcast %cst_30 : f32 to vector<16x16xf32>
    %59 = arith.mulf %58, %55 : vector<16x16xf32>
    %60 = arith.select %57, %55, %59 : vector<16x16xi1>, vector<16x16xf32>
    %61 = arith.addf %60, %14 : vector<16x16xf32>
    %cst_31 = arith.constant dense<0xFF800000> : vector<16xf32>
    %62 = vector.multi_reduction <maximumf>, %61, %cst_31 [1] : vector<16x16xf32> to vector<16xf32>
    %63 = vector.shape_cast %62 : vector<16xf32> to vector<16x1xf32>
    %64 = vector.broadcast %63 : vector<16x1xf32> to vector<16x16xf32>
    %65 = arith.subf %61, %64 : vector<16x16xf32>
    %66 = math.exp %65 : vector<16x16xf32>
    %cst_32 = arith.constant dense<0.000000e+00> : vector<16xf32>
    %67 = vector.multi_reduction <add>, %66, %cst_32 [1] : vector<16x16xf32> to vector<16xf32>
    %68 = vector.shape_cast %67 : vector<16xf32> to vector<16x1xf32>
    %69 = tpu.reciprocal %68 {approx = true} : vector<16x1xf32> -> vector<16x1xf32>
    %70 = arith.mulf %69, %16 : vector<16x1xf32>
    %71 = vector.broadcast %70 : vector<16x1xf32> to vector<16x16xf32>
    %72 = arith.mulf %66, %71 : vector<16x16xf32>
    %73 = arith.truncf %72 : vector<16x16xf32> to vector<16x16xbf16>
    %74 = vector.extract_strided_slice %20 {offsets = [0, 32], sizes = [16, 32], strides = [1, 1]} : vector<16x64xf32> to vector<16x32xf32>
    %75 = arith.truncf %74 : vector<16x32xf32> to vector<16x32xbf16>
    %cst_33 = arith.constant dense<0.000000e+00> : vector<16x32xf32>
    %76 = tpu.matmul %73, %75, %cst_33 {dimension_numbers = #tpu.dot_dimension_numbers<[1], [0], [0], [1], [0, 0, 1, 1], [], []>} : vector<16x16xbf16>, vector<16x32xbf16>, vector<16x32xf32> -> vector<16x32xf32>
    %77 = arith.addf %50, %76 : vector<16x32xf32>
    %c1 = arith.constant 1 : index
    %c0_34 = arith.constant 0 : index
    %c0_35 = arith.constant 0 : index
    %78 = vector.load %arg9[%c1, %c0_34, %c0_35] : memref<2x16x32xf32, #tpu.memory_space<vmem>>, vector<1x16x32xf32>
    %79 = vector.shape_cast %78 : vector<1x16x32xf32> to vector<16x32xf32>
    %80 = arith.truncf %79 : vector<16x32xf32> to vector<16x32xbf16>
    %c0_36 = arith.constant 0 : index
    %c1_37 = arith.constant 1 : index
    %c0_38 = arith.constant 0 : index
    %c0_39 = arith.constant 0 : index
    %81 = vector.load %arg10[%c0_36, %c1_37, %c0_38, %c0_39] : memref<2x2x16x16xf32, #tpu.memory_space<vmem>>, vector<1x1x16x16xf32>
    %82 = vector.shape_cast %81 : vector<1x1x16x16xf32> to vector<16x16xf32>
    %c0_40 = arith.constant 0 : index
    %c1_41 = arith.constant 1 : index
    %c0_42 = arith.constant 0 : index
    %c0_43 = arith.constant 0 : index
    %83 = vector.load %arg11[%c0_40, %c1_41, %c0_42, %c0_43] : memref<2x2x16x1xf32, #tpu.memory_space<vmem>>, vector<1x1x16x1xf32>
    %84 = vector.shape_cast %83 : vector<1x1x16x1xf32> to vector<16x1xf32>
    %c0_44 = arith.constant 0 : index
    %c1_45 = arith.constant 1 : index
    %c0_46 = arith.constant 0 : index
    %c0_47 = arith.constant 0 : index
    %85 = vector.load %arg3[%c0_44, %c1_45, %c0_46, %c0_47] : memref<1x4x32x66xbf16, #tpu.memory_space<vmem>>, vector<1x1x32x66xbf16>
    %86 = vector.shape_cast %85 : vector<1x1x32x66xbf16> to vector<32x66xbf16>
    %cst_48 = arith.constant dense<0.000000e+00> : vector<16x66xf32>
    %87 = tpu.matmul %80, %86, %cst_48 {dimension_numbers = #tpu.dot_dimension_numbers<[1], [0], [0], [1], [0, 0, 1, 1], [], []>} : vector<16x32xbf16>, vector<32x66xbf16>, vector<16x66xf32> -> vector<16x66xf32>
    %88 = vector.extract_strided_slice %87 {offsets = [0, 0], sizes = [16, 64], strides = [1, 1]} : vector<16x66xf32> to vector<16x64xf32>
    %89 = vector.extract_strided_slice %87 {offsets = [0, 64], sizes = [16, 2], strides = [1, 1]} : vector<16x66xf32> to vector<16x2xf32>
    %90 = tpu.transpose %89, [1, 0] : vector<16x2xf32> -> vector<2x16xf32>
    %91 = vector.extract_strided_slice %8 {offsets = [0, 2], sizes = [16, 2], strides = [1, 1]} : vector<16x4xf32> to vector<16x2xf32>
    %92 = vector.extract_strided_slice %91 {offsets = [0, 0], sizes = [16, 1], strides = [1, 1]} : vector<16x2xf32> to vector<16x1xf32>
    %93 = vector.extract_strided_slice %90 {offsets = [0, 0], sizes = [1, 16], strides = [1, 1]} : vector<2x16xf32> to vector<1x16xf32>
    %94 = vector.broadcast %92 : vector<16x1xf32> to vector<16x16xf32>
    %95 = vector.broadcast %93 : vector<1x16xf32> to vector<16x16xf32>
    %96 = arith.addf %94, %95 : vector<16x16xf32>
    %cst_49 = arith.constant 0.000000e+00 : f32
    %97 = vector.broadcast %cst_49 : f32 to vector<16x16xf32>
    %98 = arith.cmpf ogt, %96, %97 : vector<16x16xf32>
    %cst_50 = arith.constant 2.000000e-01 : f32
    %99 = vector.broadcast %cst_50 : f32 to vector<16x16xf32>
    %100 = arith.mulf %99, %96 : vector<16x16xf32>
    %101 = arith.select %98, %96, %100 : vector<16x16xi1>, vector<16x16xf32>
    %102 = arith.addf %101, %82 : vector<16x16xf32>
    %cst_51 = arith.constant dense<0xFF800000> : vector<16xf32>
    %103 = vector.multi_reduction <maximumf>, %102, %cst_51 [1] : vector<16x16xf32> to vector<16xf32>
    %104 = vector.shape_cast %103 : vector<16xf32> to vector<16x1xf32>
    %105 = vector.broadcast %104 : vector<16x1xf32> to vector<16x16xf32>
    %106 = arith.subf %102, %105 : vector<16x16xf32>
    %107 = math.exp %106 : vector<16x16xf32>
    %cst_52 = arith.constant dense<0.000000e+00> : vector<16xf32>
    %108 = vector.multi_reduction <add>, %107, %cst_52 [1] : vector<16x16xf32> to vector<16xf32>
    %109 = vector.shape_cast %108 : vector<16xf32> to vector<16x1xf32>
    %110 = tpu.reciprocal %109 {approx = true} : vector<16x1xf32> -> vector<16x1xf32>
    %111 = arith.mulf %110, %84 : vector<16x1xf32>
    %112 = vector.broadcast %111 : vector<16x1xf32> to vector<16x16xf32>
    %113 = arith.mulf %107, %112 : vector<16x16xf32>
    %114 = arith.truncf %113 : vector<16x16xf32> to vector<16x16xbf16>
    %115 = vector.extract_strided_slice %88 {offsets = [0, 0], sizes = [16, 32], strides = [1, 1]} : vector<16x64xf32> to vector<16x32xf32>
    %116 = arith.truncf %115 : vector<16x32xf32> to vector<16x32xbf16>
    %cst_53 = arith.constant dense<0.000000e+00> : vector<16x32xf32>
    %117 = tpu.matmul %114, %116, %cst_53 {dimension_numbers = #tpu.dot_dimension_numbers<[1], [0], [0], [1], [0, 0, 1, 1], [], []>} : vector<16x16xbf16>, vector<16x32xbf16>, vector<16x32xf32> -> vector<16x32xf32>
    %118 = arith.addf %77, %117 : vector<16x32xf32>
    %119 = vector.extract_strided_slice %91 {offsets = [0, 1], sizes = [16, 1], strides = [1, 1]} : vector<16x2xf32> to vector<16x1xf32>
    %120 = vector.extract_strided_slice %90 {offsets = [1, 0], sizes = [1, 16], strides = [1, 1]} : vector<2x16xf32> to vector<1x16xf32>
    %121 = vector.broadcast %119 : vector<16x1xf32> to vector<16x16xf32>
    %122 = vector.broadcast %120 : vector<1x16xf32> to vector<16x16xf32>
    %123 = arith.addf %121, %122 : vector<16x16xf32>
    %cst_54 = arith.constant 0.000000e+00 : f32
    %124 = vector.broadcast %cst_54 : f32 to vector<16x16xf32>
    %125 = arith.cmpf ogt, %123, %124 : vector<16x16xf32>
    %cst_55 = arith.constant 2.000000e-01 : f32
    %126 = vector.broadcast %cst_55 : f32 to vector<16x16xf32>
    %127 = arith.mulf %126, %123 : vector<16x16xf32>
    %128 = arith.select %125, %123, %127 : vector<16x16xi1>, vector<16x16xf32>
    %129 = arith.addf %128, %82 : vector<16x16xf32>
    %cst_56 = arith.constant dense<0xFF800000> : vector<16xf32>
    %130 = vector.multi_reduction <maximumf>, %129, %cst_56 [1] : vector<16x16xf32> to vector<16xf32>
    %131 = vector.shape_cast %130 : vector<16xf32> to vector<16x1xf32>
    %132 = vector.broadcast %131 : vector<16x1xf32> to vector<16x16xf32>
    %133 = arith.subf %129, %132 : vector<16x16xf32>
    %134 = math.exp %133 : vector<16x16xf32>
    %cst_57 = arith.constant dense<0.000000e+00> : vector<16xf32>
    %135 = vector.multi_reduction <add>, %134, %cst_57 [1] : vector<16x16xf32> to vector<16xf32>
    %136 = vector.shape_cast %135 : vector<16xf32> to vector<16x1xf32>
    %137 = tpu.reciprocal %136 {approx = true} : vector<16x1xf32> -> vector<16x1xf32>
    %138 = arith.mulf %137, %84 : vector<16x1xf32>
    %139 = vector.broadcast %138 : vector<16x1xf32> to vector<16x16xf32>
    %140 = arith.mulf %134, %139 : vector<16x16xf32>
    %141 = arith.truncf %140 : vector<16x16xf32> to vector<16x16xbf16>
    %142 = vector.extract_strided_slice %88 {offsets = [0, 32], sizes = [16, 32], strides = [1, 1]} : vector<16x64xf32> to vector<16x32xf32>
    %143 = arith.truncf %142 : vector<16x32xf32> to vector<16x32xbf16>
    %cst_58 = arith.constant dense<0.000000e+00> : vector<16x32xf32>
    %144 = tpu.matmul %141, %143, %cst_58 {dimension_numbers = #tpu.dot_dimension_numbers<[1], [0], [0], [1], [0, 0, 1, 1], [], []>} : vector<16x16xbf16>, vector<16x32xbf16>, vector<16x32xf32> -> vector<16x32xf32>
    %145 = arith.addf %118, %144 : vector<16x32xf32>
    %cst_59 = arith.constant 5.000000e-01 : f32
    %146 = vector.broadcast %cst_59 : f32 to vector<16x32xf32>
    %147 = arith.mulf %145, %146 : vector<16x32xf32>
    %c0_60 = arith.constant 0 : index
    %c0_61 = arith.constant 0 : index
    %c0_62 = arith.constant 0 : index
    %c0_63 = arith.constant 0 : index
    %148 = vector.load %arg5[%c0_60, %c0_61, %c0_62, %c0_63] : memref<1x2x1x32xf32, #tpu.memory_space<vmem>>, vector<1x1x1x32xf32>
    %149 = vector.shape_cast %148 : vector<1x1x1x32xf32> to vector<1x32xf32>
    %150 = vector.broadcast %149 : vector<1x32xf32> to vector<16x32xf32>
    %151 = arith.addf %147, %150 : vector<16x32xf32>
    %cst_64 = arith.constant 0.000000e+00 : f32
    %152 = vector.broadcast %cst_64 : f32 to vector<16x32xf32>
    %153 = arith.maximumf %151, %152 : vector<16x32xf32>
    %154 = tpu.concatenate %153, %4 in 1 : vector<16x32xf32>, vector<16x32xf32> -> vector<16x64xf32>
    %155 = arith.truncf %154 : vector<16x64xf32> to vector<16x64xbf16>
    %c0_65 = arith.constant 0 : index
    %c0_66 = arith.constant 0 : index
    %c0_67 = arith.constant 0 : index
    %c0_68 = arith.constant 0 : index
    %156 = vector.load %arg6[%c0_65, %c0_66, %c0_67, %c0_68] : memref<1x2x64x32xbf16, #tpu.memory_space<vmem>>, vector<1x1x64x32xbf16>
    %157 = vector.shape_cast %156 : vector<1x1x64x32xbf16> to vector<64x32xbf16>
    %cst_69 = arith.constant dense<0.000000e+00> : vector<16x32xf32>
    %158 = tpu.matmul %155, %157, %cst_69 {dimension_numbers = #tpu.dot_dimension_numbers<[1], [0], [0], [1], [0, 0, 1, 1], [], []>} : vector<16x64xbf16>, vector<64x32xbf16>, vector<16x32xf32> -> vector<16x32xf32>
    %c0_70 = arith.constant 0 : index
    %c0_71 = arith.constant 0 : index
    %c0_72 = arith.constant 0 : index
    %c0_73 = arith.constant 0 : index
    %159 = vector.load %arg7[%c0_70, %c0_71, %c0_72, %c0_73] : memref<1x2x1x32xf32, #tpu.memory_space<vmem>>, vector<1x1x1x32xf32>
    %160 = vector.shape_cast %159 : vector<1x1x1x32xf32> to vector<1x32xf32>
    %161 = vector.broadcast %160 : vector<1x32xf32> to vector<16x32xf32>
    %162 = arith.addf %158, %161 : vector<16x32xf32>
    %c1_74 = arith.constant 1 : index
    %c0_75 = arith.constant 0 : index
    %c0_76 = arith.constant 0 : index
    %163 = vector.load %arg9[%c1_74, %c0_75, %c0_76] : memref<2x16x32xf32, #tpu.memory_space<vmem>>, vector<1x16x32xf32>
    %164 = vector.shape_cast %163 : vector<1x16x32xf32> to vector<16x32xf32>
    %165 = arith.truncf %164 : vector<16x32xf32> to vector<16x32xbf16>
    %c0_77 = arith.constant 0 : index
    %c1_78 = arith.constant 1 : index
    %c0_79 = arith.constant 0 : index
    %c0_80 = arith.constant 0 : index
    %166 = vector.load %arg4[%c0_77, %c1_78, %c0_79, %c0_80] : memref<1x2x32x4xbf16, #tpu.memory_space<vmem>>, vector<1x1x32x4xbf16>
    %167 = vector.shape_cast %166 : vector<1x1x32x4xbf16> to vector<32x4xbf16>
    %cst_81 = arith.constant dense<0.000000e+00> : vector<16x4xf32>
    %168 = tpu.matmul %165, %167, %cst_81 {dimension_numbers = #tpu.dot_dimension_numbers<[1], [0], [0], [1], [0, 0, 1, 1], [], []>} : vector<16x32xbf16>, vector<32x4xbf16>, vector<16x4xf32> -> vector<16x4xf32>
    %cst_82 = arith.constant 0.000000e+00 : f32
    %169 = vector.broadcast %cst_82 : f32 to vector<16x32xf32>
    %c0_83 = arith.constant 0 : index
    %c0_84 = arith.constant 0 : index
    %c0_85 = arith.constant 0 : index
    %170 = vector.load %arg9[%c0_83, %c0_84, %c0_85] : memref<2x16x32xf32, #tpu.memory_space<vmem>>, vector<1x16x32xf32>
    %171 = vector.shape_cast %170 : vector<1x16x32xf32> to vector<16x32xf32>
    %172 = arith.truncf %171 : vector<16x32xf32> to vector<16x32xbf16>
    %c1_86 = arith.constant 1 : index
    %c0_87 = arith.constant 0 : index
    %c0_88 = arith.constant 0 : index
    %c0_89 = arith.constant 0 : index
    %173 = vector.load %arg10[%c1_86, %c0_87, %c0_88, %c0_89] : memref<2x2x16x16xf32, #tpu.memory_space<vmem>>, vector<1x1x16x16xf32>
    %174 = vector.shape_cast %173 : vector<1x1x16x16xf32> to vector<16x16xf32>
    %c1_90 = arith.constant 1 : index
    %c0_91 = arith.constant 0 : index
    %c0_92 = arith.constant 0 : index
    %c0_93 = arith.constant 0 : index
    %175 = vector.load %arg11[%c1_90, %c0_91, %c0_92, %c0_93] : memref<2x2x16x1xf32, #tpu.memory_space<vmem>>, vector<1x1x16x1xf32>
    %176 = vector.shape_cast %175 : vector<1x1x16x1xf32> to vector<16x1xf32>
    %c0_94 = arith.constant 0 : index
    %c2 = arith.constant 2 : index
    %c0_95 = arith.constant 0 : index
    %c0_96 = arith.constant 0 : index
    %177 = vector.load %arg3[%c0_94, %c2, %c0_95, %c0_96] : memref<1x4x32x66xbf16, #tpu.memory_space<vmem>>, vector<1x1x32x66xbf16>
    %178 = vector.shape_cast %177 : vector<1x1x32x66xbf16> to vector<32x66xbf16>
    %cst_97 = arith.constant dense<0.000000e+00> : vector<16x66xf32>
    %179 = tpu.matmul %172, %178, %cst_97 {dimension_numbers = #tpu.dot_dimension_numbers<[1], [0], [0], [1], [0, 0, 1, 1], [], []>} : vector<16x32xbf16>, vector<32x66xbf16>, vector<16x66xf32> -> vector<16x66xf32>
    %180 = vector.extract_strided_slice %179 {offsets = [0, 0], sizes = [16, 64], strides = [1, 1]} : vector<16x66xf32> to vector<16x64xf32>
    %181 = vector.extract_strided_slice %179 {offsets = [0, 64], sizes = [16, 2], strides = [1, 1]} : vector<16x66xf32> to vector<16x2xf32>
    %182 = tpu.transpose %181, [1, 0] : vector<16x2xf32> -> vector<2x16xf32>
    %183 = vector.extract_strided_slice %168 {offsets = [0, 0], sizes = [16, 2], strides = [1, 1]} : vector<16x4xf32> to vector<16x2xf32>
    %184 = vector.extract_strided_slice %183 {offsets = [0, 0], sizes = [16, 1], strides = [1, 1]} : vector<16x2xf32> to vector<16x1xf32>
    %185 = vector.extract_strided_slice %182 {offsets = [0, 0], sizes = [1, 16], strides = [1, 1]} : vector<2x16xf32> to vector<1x16xf32>
    %186 = vector.broadcast %184 : vector<16x1xf32> to vector<16x16xf32>
    %187 = vector.broadcast %185 : vector<1x16xf32> to vector<16x16xf32>
    %188 = arith.addf %186, %187 : vector<16x16xf32>
    %cst_98 = arith.constant 0.000000e+00 : f32
    %189 = vector.broadcast %cst_98 : f32 to vector<16x16xf32>
    %190 = arith.cmpf ogt, %188, %189 : vector<16x16xf32>
    %cst_99 = arith.constant 2.000000e-01 : f32
    %191 = vector.broadcast %cst_99 : f32 to vector<16x16xf32>
    %192 = arith.mulf %191, %188 : vector<16x16xf32>
    %193 = arith.select %190, %188, %192 : vector<16x16xi1>, vector<16x16xf32>
    %194 = arith.addf %193, %174 : vector<16x16xf32>
    %cst_100 = arith.constant dense<0xFF800000> : vector<16xf32>
    %195 = vector.multi_reduction <maximumf>, %194, %cst_100 [1] : vector<16x16xf32> to vector<16xf32>
    %196 = vector.shape_cast %195 : vector<16xf32> to vector<16x1xf32>
    %197 = vector.broadcast %196 : vector<16x1xf32> to vector<16x16xf32>
    %198 = arith.subf %194, %197 : vector<16x16xf32>
    %199 = math.exp %198 : vector<16x16xf32>
    %cst_101 = arith.constant dense<0.000000e+00> : vector<16xf32>
    %200 = vector.multi_reduction <add>, %199, %cst_101 [1] : vector<16x16xf32> to vector<16xf32>
    %201 = vector.shape_cast %200 : vector<16xf32> to vector<16x1xf32>
    %202 = tpu.reciprocal %201 {approx = true} : vector<16x1xf32> -> vector<16x1xf32>
    %203 = arith.mulf %202, %176 : vector<16x1xf32>
    %204 = vector.broadcast %203 : vector<16x1xf32> to vector<16x16xf32>
    %205 = arith.mulf %199, %204 : vector<16x16xf32>
    %206 = arith.truncf %205 : vector<16x16xf32> to vector<16x16xbf16>
    %207 = vector.extract_strided_slice %180 {offsets = [0, 0], sizes = [16, 32], strides = [1, 1]} : vector<16x64xf32> to vector<16x32xf32>
    %208 = arith.truncf %207 : vector<16x32xf32> to vector<16x32xbf16>
    %cst_102 = arith.constant dense<0.000000e+00> : vector<16x32xf32>
    %209 = tpu.matmul %206, %208, %cst_102 {dimension_numbers = #tpu.dot_dimension_numbers<[1], [0], [0], [1], [0, 0, 1, 1], [], []>} : vector<16x16xbf16>, vector<16x32xbf16>, vector<16x32xf32> -> vector<16x32xf32>
    %210 = arith.addf %169, %209 : vector<16x32xf32>
    %211 = vector.extract_strided_slice %183 {offsets = [0, 1], sizes = [16, 1], strides = [1, 1]} : vector<16x2xf32> to vector<16x1xf32>
    %212 = vector.extract_strided_slice %182 {offsets = [1, 0], sizes = [1, 16], strides = [1, 1]} : vector<2x16xf32> to vector<1x16xf32>
    %213 = vector.broadcast %211 : vector<16x1xf32> to vector<16x16xf32>
    %214 = vector.broadcast %212 : vector<1x16xf32> to vector<16x16xf32>
    %215 = arith.addf %213, %214 : vector<16x16xf32>
    %cst_103 = arith.constant 0.000000e+00 : f32
    %216 = vector.broadcast %cst_103 : f32 to vector<16x16xf32>
    %217 = arith.cmpf ogt, %215, %216 : vector<16x16xf32>
    %cst_104 = arith.constant 2.000000e-01 : f32
    %218 = vector.broadcast %cst_104 : f32 to vector<16x16xf32>
    %219 = arith.mulf %218, %215 : vector<16x16xf32>
    %220 = arith.select %217, %215, %219 : vector<16x16xi1>, vector<16x16xf32>
    %221 = arith.addf %220, %174 : vector<16x16xf32>
    %cst_105 = arith.constant dense<0xFF800000> : vector<16xf32>
    %222 = vector.multi_reduction <maximumf>, %221, %cst_105 [1] : vector<16x16xf32> to vector<16xf32>
    %223 = vector.shape_cast %222 : vector<16xf32> to vector<16x1xf32>
    %224 = vector.broadcast %223 : vector<16x1xf32> to vector<16x16xf32>
    %225 = arith.subf %221, %224 : vector<16x16xf32>
    %226 = math.exp %225 : vector<16x16xf32>
    %cst_106 = arith.constant dense<0.000000e+00> : vector<16xf32>
    %227 = vector.multi_reduction <add>, %226, %cst_106 [1] : vector<16x16xf32> to vector<16xf32>
    %228 = vector.shape_cast %227 : vector<16xf32> to vector<16x1xf32>
    %229 = tpu.reciprocal %228 {approx = true} : vector<16x1xf32> -> vector<16x1xf32>
    %230 = arith.mulf %229, %176 : vector<16x1xf32>
    %231 = vector.broadcast %230 : vector<16x1xf32> to vector<16x16xf32>
    %232 = arith.mulf %226, %231 : vector<16x16xf32>
    %233 = arith.truncf %232 : vector<16x16xf32> to vector<16x16xbf16>
    %234 = vector.extract_strided_slice %180 {offsets = [0, 32], sizes = [16, 32], strides = [1, 1]} : vector<16x64xf32> to vector<16x32xf32>
    %235 = arith.truncf %234 : vector<16x32xf32> to vector<16x32xbf16>
    %cst_107 = arith.constant dense<0.000000e+00> : vector<16x32xf32>
    %236 = tpu.matmul %233, %235, %cst_107 {dimension_numbers = #tpu.dot_dimension_numbers<[1], [0], [0], [1], [0, 0, 1, 1], [], []>} : vector<16x16xbf16>, vector<16x32xbf16>, vector<16x32xf32> -> vector<16x32xf32>
    %237 = arith.addf %210, %236 : vector<16x32xf32>
    %c1_108 = arith.constant 1 : index
    %c0_109 = arith.constant 0 : index
    %c0_110 = arith.constant 0 : index
    %238 = vector.load %arg9[%c1_108, %c0_109, %c0_110] : memref<2x16x32xf32, #tpu.memory_space<vmem>>, vector<1x16x32xf32>
    %239 = vector.shape_cast %238 : vector<1x16x32xf32> to vector<16x32xf32>
    %240 = arith.truncf %239 : vector<16x32xf32> to vector<16x32xbf16>
    %c1_111 = arith.constant 1 : index
    %c1_112 = arith.constant 1 : index
    %c0_113 = arith.constant 0 : index
    %c0_114 = arith.constant 0 : index
    %241 = vector.load %arg10[%c1_111, %c1_112, %c0_113, %c0_114] : memref<2x2x16x16xf32, #tpu.memory_space<vmem>>, vector<1x1x16x16xf32>
    %242 = vector.shape_cast %241 : vector<1x1x16x16xf32> to vector<16x16xf32>
    %c1_115 = arith.constant 1 : index
    %c1_116 = arith.constant 1 : index
    %c0_117 = arith.constant 0 : index
    %c0_118 = arith.constant 0 : index
    %243 = vector.load %arg11[%c1_115, %c1_116, %c0_117, %c0_118] : memref<2x2x16x1xf32, #tpu.memory_space<vmem>>, vector<1x1x16x1xf32>
    %244 = vector.shape_cast %243 : vector<1x1x16x1xf32> to vector<16x1xf32>
    %c0_119 = arith.constant 0 : index
    %c3 = arith.constant 3 : index
    %c0_120 = arith.constant 0 : index
    %c0_121 = arith.constant 0 : index
    %245 = vector.load %arg3[%c0_119, %c3, %c0_120, %c0_121] : memref<1x4x32x66xbf16, #tpu.memory_space<vmem>>, vector<1x1x32x66xbf16>
    %246 = vector.shape_cast %245 : vector<1x1x32x66xbf16> to vector<32x66xbf16>
    %cst_122 = arith.constant dense<0.000000e+00> : vector<16x66xf32>
    %247 = tpu.matmul %240, %246, %cst_122 {dimension_numbers = #tpu.dot_dimension_numbers<[1], [0], [0], [1], [0, 0, 1, 1], [], []>} : vector<16x32xbf16>, vector<32x66xbf16>, vector<16x66xf32> -> vector<16x66xf32>
    %248 = vector.extract_strided_slice %247 {offsets = [0, 0], sizes = [16, 64], strides = [1, 1]} : vector<16x66xf32> to vector<16x64xf32>
    %249 = vector.extract_strided_slice %247 {offsets = [0, 64], sizes = [16, 2], strides = [1, 1]} : vector<16x66xf32> to vector<16x2xf32>
    %250 = tpu.transpose %249, [1, 0] : vector<16x2xf32> -> vector<2x16xf32>
    %251 = vector.extract_strided_slice %168 {offsets = [0, 2], sizes = [16, 2], strides = [1, 1]} : vector<16x4xf32> to vector<16x2xf32>
    %252 = vector.extract_strided_slice %251 {offsets = [0, 0], sizes = [16, 1], strides = [1, 1]} : vector<16x2xf32> to vector<16x1xf32>
    %253 = vector.extract_strided_slice %250 {offsets = [0, 0], sizes = [1, 16], strides = [1, 1]} : vector<2x16xf32> to vector<1x16xf32>
    %254 = vector.broadcast %252 : vector<16x1xf32> to vector<16x16xf32>
    %255 = vector.broadcast %253 : vector<1x16xf32> to vector<16x16xf32>
    %256 = arith.addf %254, %255 : vector<16x16xf32>
    %cst_123 = arith.constant 0.000000e+00 : f32
    %257 = vector.broadcast %cst_123 : f32 to vector<16x16xf32>
    %258 = arith.cmpf ogt, %256, %257 : vector<16x16xf32>
    %cst_124 = arith.constant 2.000000e-01 : f32
    %259 = vector.broadcast %cst_124 : f32 to vector<16x16xf32>
    %260 = arith.mulf %259, %256 : vector<16x16xf32>
    %261 = arith.select %258, %256, %260 : vector<16x16xi1>, vector<16x16xf32>
    %262 = arith.addf %261, %242 : vector<16x16xf32>
    %cst_125 = arith.constant dense<0xFF800000> : vector<16xf32>
    %263 = vector.multi_reduction <maximumf>, %262, %cst_125 [1] : vector<16x16xf32> to vector<16xf32>
    %264 = vector.shape_cast %263 : vector<16xf32> to vector<16x1xf32>
    %265 = vector.broadcast %264 : vector<16x1xf32> to vector<16x16xf32>
    %266 = arith.subf %262, %265 : vector<16x16xf32>
    %267 = math.exp %266 : vector<16x16xf32>
    %cst_126 = arith.constant dense<0.000000e+00> : vector<16xf32>
    %268 = vector.multi_reduction <add>, %267, %cst_126 [1] : vector<16x16xf32> to vector<16xf32>
    %269 = vector.shape_cast %268 : vector<16xf32> to vector<16x1xf32>
    %270 = tpu.reciprocal %269 {approx = true} : vector<16x1xf32> -> vector<16x1xf32>
    %271 = arith.mulf %270, %244 : vector<16x1xf32>
    %272 = vector.broadcast %271 : vector<16x1xf32> to vector<16x16xf32>
    %273 = arith.mulf %267, %272 : vector<16x16xf32>
    %274 = arith.truncf %273 : vector<16x16xf32> to vector<16x16xbf16>
    %275 = vector.extract_strided_slice %248 {offsets = [0, 0], sizes = [16, 32], strides = [1, 1]} : vector<16x64xf32> to vector<16x32xf32>
    %276 = arith.truncf %275 : vector<16x32xf32> to vector<16x32xbf16>
    %cst_127 = arith.constant dense<0.000000e+00> : vector<16x32xf32>
    %277 = tpu.matmul %274, %276, %cst_127 {dimension_numbers = #tpu.dot_dimension_numbers<[1], [0], [0], [1], [0, 0, 1, 1], [], []>} : vector<16x16xbf16>, vector<16x32xbf16>, vector<16x32xf32> -> vector<16x32xf32>
    %278 = arith.addf %237, %277 : vector<16x32xf32>
    %279 = vector.extract_strided_slice %251 {offsets = [0, 1], sizes = [16, 1], strides = [1, 1]} : vector<16x2xf32> to vector<16x1xf32>
    %280 = vector.extract_strided_slice %250 {offsets = [1, 0], sizes = [1, 16], strides = [1, 1]} : vector<2x16xf32> to vector<1x16xf32>
    %281 = vector.broadcast %279 : vector<16x1xf32> to vector<16x16xf32>
    %282 = vector.broadcast %280 : vector<1x16xf32> to vector<16x16xf32>
    %283 = arith.addf %281, %282 : vector<16x16xf32>
    %cst_128 = arith.constant 0.000000e+00 : f32
    %284 = vector.broadcast %cst_128 : f32 to vector<16x16xf32>
    %285 = arith.cmpf ogt, %283, %284 : vector<16x16xf32>
    %cst_129 = arith.constant 2.000000e-01 : f32
    %286 = vector.broadcast %cst_129 : f32 to vector<16x16xf32>
    %287 = arith.mulf %286, %283 : vector<16x16xf32>
    %288 = arith.select %285, %283, %287 : vector<16x16xi1>, vector<16x16xf32>
    %289 = arith.addf %288, %242 : vector<16x16xf32>
    %cst_130 = arith.constant dense<0xFF800000> : vector<16xf32>
    %290 = vector.multi_reduction <maximumf>, %289, %cst_130 [1] : vector<16x16xf32> to vector<16xf32>
    %291 = vector.shape_cast %290 : vector<16xf32> to vector<16x1xf32>
    %292 = vector.broadcast %291 : vector<16x1xf32> to vector<16x16xf32>
    %293 = arith.subf %289, %292 : vector<16x16xf32>
    %294 = math.exp %293 : vector<16x16xf32>
    %cst_131 = arith.constant dense<0.000000e+00> : vector<16xf32>
    %295 = vector.multi_reduction <add>, %294, %cst_131 [1] : vector<16x16xf32> to vector<16xf32>
    %296 = vector.shape_cast %295 : vector<16xf32> to vector<16x1xf32>
    %297 = tpu.reciprocal %296 {approx = true} : vector<16x1xf32> -> vector<16x1xf32>
    %298 = arith.mulf %297, %244 : vector<16x1xf32>
    %299 = vector.broadcast %298 : vector<16x1xf32> to vector<16x16xf32>
    %300 = arith.mulf %294, %299 : vector<16x16xf32>
    %301 = arith.truncf %300 : vector<16x16xf32> to vector<16x16xbf16>
    %302 = vector.extract_strided_slice %248 {offsets = [0, 32], sizes = [16, 32], strides = [1, 1]} : vector<16x64xf32> to vector<16x32xf32>
    %303 = arith.truncf %302 : vector<16x32xf32> to vector<16x32xbf16>
    %cst_132 = arith.constant dense<0.000000e+00> : vector<16x32xf32>
    %304 = tpu.matmul %301, %303, %cst_132 {dimension_numbers = #tpu.dot_dimension_numbers<[1], [0], [0], [1], [0, 0, 1, 1], [], []>} : vector<16x16xbf16>, vector<16x32xbf16>, vector<16x32xf32> -> vector<16x32xf32>
    %305 = arith.addf %278, %304 : vector<16x32xf32>
    %cst_133 = arith.constant 5.000000e-01 : f32
    %306 = vector.broadcast %cst_133 : f32 to vector<16x32xf32>
    %307 = arith.mulf %305, %306 : vector<16x32xf32>
    %c0_134 = arith.constant 0 : index
    %c1_135 = arith.constant 1 : index
    %c0_136 = arith.constant 0 : index
    %c0_137 = arith.constant 0 : index
    %308 = vector.load %arg5[%c0_134, %c1_135, %c0_136, %c0_137] : memref<1x2x1x32xf32, #tpu.memory_space<vmem>>, vector<1x1x1x32xf32>
    %309 = vector.shape_cast %308 : vector<1x1x1x32xf32> to vector<1x32xf32>
    %310 = vector.broadcast %309 : vector<1x32xf32> to vector<16x32xf32>
    %311 = arith.addf %307, %310 : vector<16x32xf32>
    %cst_138 = arith.constant 0.000000e+00 : f32
    %312 = vector.broadcast %cst_138 : f32 to vector<16x32xf32>
    %313 = arith.maximumf %311, %312 : vector<16x32xf32>
    %314 = tpu.concatenate %313, %164 in 1 : vector<16x32xf32>, vector<16x32xf32> -> vector<16x64xf32>
    %315 = arith.truncf %314 : vector<16x64xf32> to vector<16x64xbf16>
    %c0_139 = arith.constant 0 : index
    %c1_140 = arith.constant 1 : index
    %c0_141 = arith.constant 0 : index
    %c0_142 = arith.constant 0 : index
    %316 = vector.load %arg6[%c0_139, %c1_140, %c0_141, %c0_142] : memref<1x2x64x32xbf16, #tpu.memory_space<vmem>>, vector<1x1x64x32xbf16>
    %317 = vector.shape_cast %316 : vector<1x1x64x32xbf16> to vector<64x32xbf16>
    %cst_143 = arith.constant dense<0.000000e+00> : vector<16x32xf32>
    %318 = tpu.matmul %315, %317, %cst_143 {dimension_numbers = #tpu.dot_dimension_numbers<[1], [0], [0], [1], [0, 0, 1, 1], [], []>} : vector<16x64xbf16>, vector<64x32xbf16>, vector<16x32xf32> -> vector<16x32xf32>
    %c0_144 = arith.constant 0 : index
    %c1_145 = arith.constant 1 : index
    %c0_146 = arith.constant 0 : index
    %c0_147 = arith.constant 0 : index
    %319 = vector.load %arg7[%c0_144, %c1_145, %c0_146, %c0_147] : memref<1x2x1x32xf32, #tpu.memory_space<vmem>>, vector<1x1x1x32xf32>
    %320 = vector.shape_cast %319 : vector<1x1x1x32xf32> to vector<1x32xf32>
    %321 = vector.broadcast %320 : vector<1x32xf32> to vector<16x32xf32>
    %322 = arith.addf %318, %321 : vector<16x32xf32>
    %c0_148 = arith.constant 0 : index
    %c0_149 = arith.constant 0 : index
    %c0_150 = arith.constant 0 : index
    %323 = vector.load %arg9[%c0_148, %c0_149, %c0_150] : memref<2x16x32xf32, #tpu.memory_space<vmem>>, vector<1x16x32xf32>
    %324 = vector.shape_cast %323 : vector<1x16x32xf32> to vector<16x32xf32>
    %325 = vector.shape_cast %162 : vector<16x32xf32> to vector<1x16x32xf32>
    tpu.vector_store %arg9[%c0_148, %c0_149, %c0_150], %325 {strides = array<i32>} : memref<2x16x32xf32, #tpu.memory_space<vmem>>, vector<1x16x32xf32>,
    %c1_151 = arith.constant 1 : index
    %c0_152 = arith.constant 0 : index
    %c0_153 = arith.constant 0 : index
    %326 = vector.load %arg9[%c1_151, %c0_152, %c0_153] : memref<2x16x32xf32, #tpu.memory_space<vmem>>, vector<1x16x32xf32>
    %327 = vector.shape_cast %326 : vector<1x16x32xf32> to vector<16x32xf32>
    %328 = vector.shape_cast %322 : vector<16x32xf32> to vector<1x16x32xf32>
    tpu.vector_store %arg9[%c1_151, %c0_152, %c0_153], %328 {strides = array<i32>} : memref<2x16x32xf32, #tpu.memory_space<vmem>>, vector<1x16x32xf32>,
    %c1_i32 = arith.constant 1 : i32
    %329 = arith.cmpi eq, %arg0, %c1_i32 : i32
    %330 = arith.extui %329 : i1 to i32
    %c0_i32_154 = arith.constant 0 : i32
    %331 = arith.cmpi ne, %330, %c0_i32_154 : i32
    scf.if %331 {
      %c0_155 = arith.constant 0 : index
      %c0_156 = arith.constant 0 : index
      %c0_157 = arith.constant 0 : index
      %332 = vector.load %arg8[%c0_155, %c0_156, %c0_157] : memref<2x16x32xf32, #tpu.memory_space<vmem>>, vector<1x16x32xf32>
      %333 = vector.shape_cast %332 : vector<1x16x32xf32> to vector<16x32xf32>
      %334 = vector.shape_cast %162 : vector<16x32xf32> to vector<1x16x32xf32>
      tpu.vector_store %arg8[%c0_155, %c0_156, %c0_157], %334 {strides = array<i32>} : memref<2x16x32xf32, #tpu.memory_space<vmem>>, vector<1x16x32xf32>,
      %c1_158 = arith.constant 1 : index
      %c0_159 = arith.constant 0 : index
      %c0_160 = arith.constant 0 : index
      %335 = vector.load %arg8[%c1_158, %c0_159, %c0_160] : memref<2x16x32xf32, #tpu.memory_space<vmem>>, vector<1x16x32xf32>
      %336 = vector.shape_cast %335 : vector<1x16x32xf32> to vector<16x32xf32>
      %337 = vector.shape_cast %322 : vector<16x32xf32> to vector<1x16x32xf32>
      tpu.vector_store %arg8[%c1_158, %c0_159, %c0_160], %337 {strides = array<i32>} : memref<2x16x32xf32, #tpu.memory_space<vmem>>, vector<1x16x32xf32>,
    } else {
    }
    return
  }
  func.func @transform_0(%arg0: i32) -> (i32, i32, i32) {
    %c0_i32 = arith.constant 0 : i32
    %c0_i32_0 = arith.constant 0 : i32
    %c0_i32_1 = arith.constant 0 : i32
    %c0_i32_2 = arith.constant 0 : i32
    return %c0_i32, %c0_i32_0, %c0_i32_1 : i32, i32, i32
  }
  func.func @transform_1(%arg0: i32) -> (i32, i32, i32, i32) {
    %c0_i32 = arith.constant 0 : i32
    %c0_i32_0 = arith.constant 0 : i32
    %c0_i32_1 = arith.constant 0 : i32
    %c0_i32_2 = arith.constant 0 : i32
    %c0_i32_3 = arith.constant 0 : i32
    return %c0_i32, %c0_i32_0, %c0_i32_1, %c0_i32_2 : i32, i32, i32, i32
  }
  func.func @transform_2(%arg0: i32) -> (i32, i32, i32, i32) {
    %c0_i32 = arith.constant 0 : i32
    %c0_i32_0 = arith.constant 0 : i32
    %c0_i32_1 = arith.constant 0 : i32
    %c0_i32_2 = arith.constant 0 : i32
    return %arg0, %c0_i32, %c0_i32_0, %c0_i32_1 : i32, i32, i32, i32
  }
  func.func @transform_3(%arg0: i32) -> (i32, i32, i32, i32) {
    %c0_i32 = arith.constant 0 : i32
    %c0_i32_0 = arith.constant 0 : i32
    %c0_i32_1 = arith.constant 0 : i32
    %c0_i32_2 = arith.constant 0 : i32
    return %arg0, %c0_i32, %c0_i32_0, %c0_i32_1 : i32, i32, i32, i32
  }
  func.func @transform_4(%arg0: i32) -> (i32, i32, i32, i32) {
    %c0_i32 = arith.constant 0 : i32
    %c0_i32_0 = arith.constant 0 : i32
    %c0_i32_1 = arith.constant 0 : i32
    %c0_i32_2 = arith.constant 0 : i32
    return %arg0, %c0_i32, %c0_i32_0, %c0_i32_1 : i32, i32, i32, i32
  }
  func.func @transform_5(%arg0: i32) -> (i32, i32, i32, i32) {
    %c0_i32 = arith.constant 0 : i32
    %c0_i32_0 = arith.constant 0 : i32
    %c0_i32_1 = arith.constant 0 : i32
    %c0_i32_2 = arith.constant 0 : i32
    return %arg0, %c0_i32, %c0_i32_0, %c0_i32_1 : i32, i32, i32, i32
  }
  func.func @transform_6(%arg0: i32) -> (i32, i32, i32, i32) {
    %c0_i32 = arith.constant 0 : i32
    %c0_i32_0 = arith.constant 0 : i32
    %c0_i32_1 = arith.constant 0 : i32
    %c0_i32_2 = arith.constant 0 : i32
    return %arg0, %c0_i32, %c0_i32_0, %c0_i32_1 : i32, i32, i32, i32
  }
  func.func @transform_7(%arg0: i32) -> (i32, i32, i32) {
    %c0_i32 = arith.constant 0 : i32
    %c0_i32_0 = arith.constant 0 : i32
    %c0_i32_1 = arith.constant 0 : i32
    %c0_i32_2 = arith.constant 0 : i32
    return %c0_i32, %c0_i32_0, %c0_i32_1 : i32, i32, i32
  }
}

</mosaic_0001>

<llo_original>
// kernel: hetero_gnn_forward.1
$region0: #{hetero_gnn_forward.1}
  #allocation0 [shape = 'u32[]', space=smem, size = 0x4, offset = 0x4, fixed_abs, tag = 'smem constant byte address 0x4 - core index']
  #allocation1 [shape = 'u32[144,128]{1,0:T(1,128)}', space=vmem, size = 0x12000, scoped, tag = 'internal scratch']
  #allocation2 [shape = 'f32[2,16,32]{2,1,0:T(8,128)}', space=vmem, size = 0x4000, scoped, tag = 'scratch operand']
  #allocation3 [shape = 'f32[2,2,16,16]{3,2,1,0:T(8,128)}', space=vmem, size = 0x8000, scoped, tag = 'scratch operand']
  #allocation4 [shape = 'f32[2,2,16,1]{3,2,1,0:T(8,128)}', space=vmem, size = 0x8000, scoped, tag = 'scratch operand']
  %s0 = inlined_call_operand.vmem [shape: f32[2,16,32], index: 0, kind: input, shape index: {}]
  %s1 = inlined_call_operand.vmem [shape: s8[2,2,16,16], index: 1, kind: input, shape index: {}]
  %s2 = inlined_call_operand.vmem [shape: bf16[2,4,32,66], index: 2, kind: input, shape index: {}]
  %s3 = inlined_call_operand.vmem [shape: bf16[2,2,32,4], index: 3, kind: input, shape index: {}]
  %s4 = inlined_call_operand.vmem [shape: f32[2,2,1,32], index: 4, kind: input, shape index: {}]
  %s5 = inlined_call_operand.vmem [shape: bf16[2,2,64,32], index: 5, kind: input, shape index: {}]
  %s6 = inlined_call_operand.vmem [shape: f32[2,2,1,32], index: 6, kind: input, shape index: {}]
  %s7 = inlined_call_operand.hbm [shape: f32[2,16,32], index: 7, kind: output, shape index: {}]
  %s8 = sld [smem:[#allocation0]]
  $region69: #{hetero_gnn_forward.1} parent=0
    _
  %s10 = ssub.s32 1, %s8
  %s11 = scalar_select 0, %s10, %s8
  $region1: #{hetero_gnn_forward.1} parent=0
    #allocation5 [shape = 'u8[16384]{0}', space=vmem, size = 0x4000, scoped, tag = 'output window, operand 0, single buffered']
    #allocation6 [shape = 's32[2]{0}', space=sflag, size = 0x8, scoped, tag = 'scoped memory for hetero_gnn_forward.1']
    %12 = vsyncpa [#allocation6], 0
    loop: start=0, step=1, limit=4
    $region2: #{hetero_gnn_forward.1} parent=1 // loop_pre_header
      _
    $region3: #{hetero_gnn_forward.1} parent=1 // loop_header
      %s14 = sphi 0, %s18
      %p15 = scmp.ge.s32.totalorder %s14, 4
      %s22 = sphi 0, %s22
      %s24 = sphi 0, %s22
      %s25 = sphi 0, %s24
      %s39 = sphi 0, %s25
      %s43 = sphi 0, %s43
      %s45 = sphi 0, %s43
      %s46 = sphi 0, %s45
      %s60 = sphi 0, %s46
      %s66 = sphi 0, %s68
      %s69 = sphi 0, %s66
      %s70 = sphi 0, %s69
      %s86 = sphi 0, %s70
      %s92 = sphi 0, %s94
      %s95 = sphi 0, %s92
      %s96 = sphi 0, %s95
      %s112 = sphi 0, %s96
      %s118 = sphi 0, %s120
      %s121 = sphi 0, %s118
      %s122 = sphi 0, %s121
      %s138 = sphi 0, %s122
      %s144 = sphi 0, %s146
      %s147 = sphi 0, %s144
      %s148 = sphi 0, %s147
      %s164 = sphi 0, %s148
      %s170 = sphi 0, %s172
      %s173 = sphi 0, %s170
      %s174 = sphi 0, %s173
      %s190 = sphi 0, %s174
      %s194 = sphi 0, %s194
      %s196 = sphi 0, %s194
      %s197 = sphi 0, %s196
      %s211 = sphi 0, %s197
    $region4: #{hetero_gnn_forward.1} parent=1 // loop_header_branch
      %17 = sbr.rel (%p15) target = $region8
    $region5: #{hetero_gnn_forward.1} parent=1 // loop_body
      %s19 = ssub.s32 %s14, 1
      %s20 = ssub.s32 %s14, 2
      %s21 = sadd.s32 %s14, 1
      %s23 = sadd.s32 %s22, 1
      %p26 = scmp.eq.s32.totalorder %s14, 1
      %p27 = scmp.ne.s32.totalorder %s22, %s24
      %p28 = scmp.eq.s32.totalorder %s14, 0
      %p29 = por %p27, %p28
      %p30 = scmp.ne.s32.totalorder %s22, %s24
      %p31 = scmp.eq.s32.totalorder %s19, 1
      %p32 = por %p30, %p31
      %p33 = scmp.ne.s32.totalorder %s24, %s25
      %p34 = scmp.eq.s32.totalorder %s19, 0
      %p35 = por %p33, %p34
      %p36 = scmp.ne.s32.totalorder %s24, %s25
      %p37 = scmp.eq.s32.totalorder %s20, 1
      %p38 = por %p36, %p37
      %p40 = scmp.ne.s32.totalorder %s25, %s39
      %p41 = scmp.eq.s32.totalorder %s20, 0
      %p42 = por %p40, %p41
      %s44 = sadd.s32 %s43, 1
      %p47 = scmp.eq.s32.totalorder %s14, 1
      %p48 = scmp.ne.s32.totalorder %s43, %s45
      %p49 = scmp.eq.s32.totalorder %s14, 0
      %p50 = por %p48, %p49
      %p51 = scmp.ne.s32.totalorder %s43, %s45
      %p52 = scmp.eq.s32.totalorder %s19, 1
      %p53 = por %p51, %p52
      %p54 = scmp.ne.s32.totalorder %s45, %s46
      %p55 = scmp.eq.s32.totalorder %s19, 0
      %p56 = por %p54, %p55
      %p57 = scmp.ne.s32.totalorder %s45, %s46
      %p58 = scmp.eq.s32.totalorder %s20, 1
      %p59 = por %p57, %p58
      %p61 = scmp.ne.s32.totalorder %s46, %s60
      %p62 = scmp.eq.s32.totalorder %s20, 0
      %p63 = por %p61, %p62
      %s64 = ssub.s32 %s14, %s21
      %p65 = scmp.eq.s32.totalorder %s64, 0
      %s67 = sadd.s32 %s66, 1
      %s68 = scalar_select %p65, %s66, %s67
      %p71 = pneg %p65
      %p72 = scmp.eq.s32.totalorder %s14, 1
      %p73 = por %p71, %p72
      %p74 = scmp.ne.s32.totalorder %s66, %s69
      %p75 = scmp.eq.s32.totalorder %s14, 0
      %p76 = por %p74, %p75
      %p77 = scmp.ne.s32.totalorder %s66, %s69
      %p78 = scmp.eq.s32.totalorder %s19, 1
      %p79 = por %p77, %p78
      %p80 = scmp.ne.s32.totalorder %s69, %s70
      %p81 = scmp.eq.s32.totalorder %s19, 0
      %p82 = por %p80, %p81
      %p83 = scmp.ne.s32.totalorder %s69, %s70
      %p84 = scmp.eq.s32.totalorder %s20, 1
      %p85 = por %p83, %p84
      %p87 = scmp.ne.s32.totalorder %s70, %s86
      %p88 = scmp.eq.s32.totalorder %s20, 0
      %p89 = por %p87, %p88
      %s90 = ssub.s32 %s14, %s21
      %p91 = scmp.eq.s32.totalorder %s90, 0
      %s93 = sadd.s32 %s92, 1
      %s94 = scalar_select %p91, %s92, %s93
      %p97 = pneg %p91
      %p98 = scmp.eq.s32.totalorder %s14, 1
      %p99 = por %p97, %p98
      %p100 = scmp.ne.s32.totalorder %s92, %s95
      %p101 = scmp.eq.s32.totalorder %s14, 0
      %p102 = por %p100, %p101
      %p103 = scmp.ne.s32.totalorder %s92, %s95
      %p104 = scmp.eq.s32.totalorder %s19, 1
      %p105 = por %p103, %p104
      %p106 = scmp.ne.s32.totalorder %s95, %s96
      %p107 = scmp.eq.s32.totalorder %s19, 0
      %p108 = por %p106, %p107
      %p109 = scmp.ne.s32.totalorder %s95, %s96
      %p110 = scmp.eq.s32.totalorder %s20, 1
      %p111 = por %p109, %p110
      %p113 = scmp.ne.s32.totalorder %s96, %s112
      %p114 = scmp.eq.s32.totalorder %s20, 0
      %p115 = por %p113, %p114
      %s116 = ssub.s32 %s14, %s21
      %p117 = scmp.eq.s32.totalorder %s116, 0
      %s119 = sadd.s32 %s118, 1
      %s120 = scalar_select %p117, %s118, %s119
      %p123 = pneg %p117
      %p124 = scmp.eq.s32.totalorder %s14, 1
      %p125 = por %p123, %p124
      %p126 = scmp.ne.s32.totalorder %s118, %s121
      %p127 = scmp.eq.s32.totalorder %s14, 0
      %p128 = por %p126, %p127
      %p129 = scmp.ne.s32.totalorder %s118, %s121
      %p130 = scmp.eq.s32.totalorder %s19, 1
      %p131 = por %p129, %p130
      %p132 = scmp.ne.s32.totalorder %s121, %s122
      %p133 = scmp.eq.s32.totalorder %s19, 0
      %p134 = por %p132, %p133
      %p135 = scmp.ne.s32.totalorder %s121, %s122
      %p136 = scmp.eq.s32.totalorder %s20, 1
      %p137 = por %p135, %p136
      %p139 = scmp.ne.s32.totalorder %s122, %s138
      %p140 = scmp.eq.s32.totalorder %s20, 0
      %p141 = por %p139, %p140
      %s142 = ssub.s32 %s14, %s21
      %p143 = scmp.eq.s32.totalorder %s142, 0
      %s145 = sadd.s32 %s144, 1
      %s146 = scalar_select %p143, %s144, %s145
      %p149 = pneg %p143
      %p150 = scmp.eq.s32.totalorder %s14, 1
      %p151 = por %p149, %p150
      %p152 = scmp.ne.s32.totalorder %s144, %s147
      %p153 = scmp.eq.s32.totalorder %s14, 0
      %p154 = por %p152, %p153
      %p155 = scmp.ne.s32.totalorder %s144, %s147
      %p156 = scmp.eq.s32.totalorder %s19, 1
      %p157 = por %p155, %p156
      %p158 = scmp.ne.s32.totalorder %s147, %s148
      %p159 = scmp.eq.s32.totalorder %s19, 0
      %p160 = por %p158, %p159
      %p161 = scmp.ne.s32.totalorder %s147, %s148
      %p162 = scmp.eq.s32.totalorder %s20, 1
      %p163 = por %p161, %p162
      %p165 = scmp.ne.s32.totalorder %s148, %s164
      %p166 = scmp.eq.s32.totalorder %s20, 0
      %p167 = por %p165, %p166
      %s168 = ssub.s32 %s14, %s21
      %p169 = scmp.eq.s32.totalorder %s168, 0
      %s171 = sadd.s32 %s170, 1
      %s172 = scalar_select %p169, %s170, %s171
      %p175 = pneg %p169
      %p176 = scmp.eq.s32.totalorder %s14, 1
      %p177 = por %p175, %p176
      %p178 = scmp.ne.s32.totalorder %s170, %s173
      %p179 = scmp.eq.s32.totalorder %s14, 0
      %p180 = por %p178, %p179
      %p181 = scmp.ne.s32.totalorder %s170, %s173
      %p182 = scmp.eq.s32.totalorder %s19, 1
      %p183 = por %p181, %p182
      %p184 = scmp.ne.s32.totalorder %s173, %s174
      %p185 = scmp.eq.s32.totalorder %s19, 0
      %p186 = por %p184, %p185
      %p187 = scmp.ne.s32.totalorder %s173, %s174
      %p188 = scmp.eq.s32.totalorder %s20, 1
      %p189 = por %p187, %p188
      %p191 = scmp.ne.s32.totalorder %s174, %s190
      %p192 = scmp.eq.s32.totalorder %s20, 0
      %p193 = por %p191, %p192
      %s195 = sadd.s32 %s194, 1
      %p198 = scmp.eq.s32.totalorder %s14, 1
      %p199 = scmp.ne.s32.totalorder %s194, %s196
      %p200 = scmp.eq.s32.totalorder %s14, 0
      %p201 = por %p199, %p200
      %p202 = scmp.ne.s32.totalorder %s194, %s196
      %p203 = scmp.eq.s32.totalorder %s19, 1
      %p204 = por %p202, %p203
      %p205 = scmp.ne.s32.totalorder %s196, %s197
      %p206 = scmp.eq.s32.totalorder %s19, 0
      %p207 = por %p205, %p206
      %p208 = scmp.ne.s32.totalorder %s196, %s197
      %p209 = scmp.eq.s32.totalorder %s20, 1
      %p210 = por %p208, %p209
      %p212 = scmp.ne.s32.totalorder %s197, %s211
      %p213 = scmp.eq.s32.totalorder %s20, 0
      %p214 = por %p212, %p213
      %p215 = scmp.le.s32.totalorder 1, %s14
      %p216 = scmp.lt.s32.totalorder %s14, 3
      %p217 = pnand %p215, %p216
      %p218 = pneg %p217
      // Predicated region
      $region9: #{hetero_gnn_forward.1} parent=5 // pred_check
        _
      $region10: #{hetero_gnn_forward.1} parent=5 // pred_check_branch
        %220 = sbr.rel (%p217) target = $region12
      $region11: #{hetero_gnn_forward.1} parent=5 // pred_region
        %s221 = ssub.s32 %s14, 1
        // Predicated region
        $region13: #{hetero_gnn_forward.1} parent=11 // pred_check
          %p222 = pneg %p35
        $region14: #{hetero_gnn_forward.1} parent=11 // pred_check_branch
          %224 = sbr.rel (%p222) target = $region16
        $region15: #{hetero_gnn_forward.1} parent=11 // pred_region
          _
        $region16: #{hetero_gnn_forward.1} parent=11 // pred_fallthru
          _
        // Predicated region
        $region17: #{hetero_gnn_forward.1} parent=11 // pred_check
          %p225 = pneg %p56
        $region18: #{hetero_gnn_forward.1} parent=11 // pred_check_branch
          %227 = sbr.rel (%p225) target = $region20
        $region19: #{hetero_gnn_forward.1} parent=11 // pred_region
          _
        $region20: #{hetero_gnn_forward.1} parent=11 // pred_fallthru
          _
      $region12: #{hetero_gnn_forward.1} parent=5 // pred_fallthru
        _
      %p228 = scmp.lt.s32.totalorder %s14, 2
      // Predicated region
      $region21: #{hetero_gnn_forward.1} parent=5 // pred_check
        %p229 = pneg %p228
      $region22: #{hetero_gnn_forward.1} parent=5 // pred_check_branch
        %231 = sbr.rel (%p229) target = $region24
      $region23: #{hetero_gnn_forward.1} parent=5 // pred_region
        // Predicated region
        $region25: #{hetero_gnn_forward.1} parent=23 // pred_check
          %p232 = pneg %p76
        $region26: #{hetero_gnn_forward.1} parent=23 // pred_check_branch
          %234 = sbr.rel (%p232) target = $region28
        $region27: #{hetero_gnn_forward.1} parent=23 // pred_region
          %p235 = scmp.lt.s32.totalorder %s14, 1
          %s236 = scalar_select %p235, %s14, 1
          %s237 = smul.addr %s236, 16
          %s238 = smul.addr %s237, 4
          %s239 = scalar_lea.vmem %s2, %s238
        $region28: #{hetero_gnn_forward.1} parent=23 // pred_fallthru
          _
        // Predicated region
        $region29: #{hetero_gnn_forward.1} parent=23 // pred_check
          %p240 = pneg %p102
        $region30: #{hetero_gnn_forward.1} parent=23 // pred_check_branch
          %242 = sbr.rel (%p240) target = $region32
        $region31: #{hetero_gnn_forward.1} parent=23 // pred_region
          %p243 = scmp.lt.s32.totalorder %s14, 1
          %s244 = scalar_select %p243, %s14, 1
          %s245 = smul.addr %s244, 8
          %s246 = smul.addr %s245, 4
          %s247 = scalar_lea.vmem %s3, %s246
        $region32: #{hetero_gnn_forward.1} parent=23 // pred_fallthru
          _
        // Predicated region
        $region33: #{hetero_gnn_forward.1} parent=23 // pred_check
          %p248 = pneg %p128
        $region34: #{hetero_gnn_forward.1} parent=23 // pred_check_branch
          %250 = sbr.rel (%p248) target = $region36
        $region35: #{hetero_gnn_forward.1} parent=23 // pred_region
          %p251 = scmp.lt.s32.totalorder %s14, 1
          %s252 = scalar_select %p251, %s14, 1
          %s253 = smul.addr %s252, 2
          %s254 = scalar_lea.vmem %s4, %s253
        $region36: #{hetero_gnn_forward.1} parent=23 // pred_fallthru
          _
        // Predicated region
        $region37: #{hetero_gnn_forward.1} parent=23 // pred_check
          %p255 = pneg %p154
        $region38: #{hetero_gnn_forward.1} parent=23 // pred_check_branch
          %257 = sbr.rel (%p255) target = $region40
        $region39: #{hetero_gnn_forward.1} parent=23 // pred_region
          %p258 = scmp.lt.s32.totalorder %s14, 1
          %s259 = scalar_select %p258, %s14, 1
          %s260 = smul.addr %s259, 16
          %s261 = smul.addr %s260, 4
          %s262 = scalar_lea.vmem %s5, %s261
        $region40: #{hetero_gnn_forward.1} parent=23 // pred_fallthru
          _
        // Predicated region
        $region41: #{hetero_gnn_forward.1} parent=23 // pred_check
          %p263 = pneg %p180
        $region42: #{hetero_gnn_forward.1} parent=23 // pred_check_branch
          %265 = sbr.rel (%p263) target = $region44
        $region43: #{hetero_gnn_forward.1} parent=23 // pred_region
          %p266 = scmp.lt.s32.totalorder %s14, 1
          %s267 = scalar_select %p266, %s14, 1
          %s268 = smul.addr %s267, 2
          %s269 = scalar_lea.vmem %s6, %s268
        $region44: #{hetero_gnn_forward.1} parent=23 // pred_fallthru
          _
      $region24: #{hetero_gnn_forward.1} parent=5 // pred_fallthru
        _
      %p270 = scmp.le.s32.totalorder 1, %s14
      %p271 = scmp.lt.s32.totalorder %s14, 3
      %p272 = pnand %p270, %p271
      %p273 = pneg %p272
      // Predicated region
      $region45: #{hetero_gnn_forward.1} parent=5 // pred_check
        _
      $region46: #{hetero_gnn_forward.1} parent=5 // pred_check_branch
        %275 = sbr.rel (%p272) target = $region48
      $region47: #{hetero_gnn_forward.1} parent=5 // pred_region
        %s276 = ssub.s32 %s14, 1
        %p277 = pneg %p35
        %p278 = pneg %p32
        %p279 = pneg %p56
        %p280 = pneg %p53
        %p281 = scmp.lt.s32.totalorder %s19, 1
        %s282 = scalar_select %p281, %s19, 1
        %s283 = smul.addr %s282, 16
        %s284 = smul.addr %s283, 4
        %s285 = scalar_lea.vmem %s2, %s284
        %p286 = pneg %p82
        %p287 = pneg %p79
        %p288 = scmp.lt.s32.totalorder %s19, 1
        %s289 = scalar_select %p288, %s19, 1
        %s290 = smul.addr %s289, 8
        %s291 = smul.addr %s290, 4
        %s292 = scalar_lea.vmem %s3, %s291
        %p293 = pneg %p108
        %p294 = pneg %p105
        %p295 = scmp.lt.s32.totalorder %s19, 1
        %s296 = scalar_select %p295, %s19, 1
        %s297 = smul.addr %s296, 2
        %s298 = scalar_lea.vmem %s4, %s297
        %p299 = pneg %p134
        %p300 = pneg %p131
        %p301 = scmp.lt.s32.totalorder %s19, 1
        %s302 = scalar_select %p301, %s19, 1
        %s303 = smul.addr %s302, 16
        %s304 = smul.addr %s303, 4
        %s305 = scalar_lea.vmem %s5, %s304
        %p306 = pneg %p160
        %p307 = pneg %p157
        %p308 = scmp.lt.s32.totalorder %s19, 1
        %s309 = scalar_select %p308, %s19, 1
        %s310 = smul.addr %s309, 2
        %s311 = scalar_lea.vmem %s6, %s310
        %p312 = pneg %p186
        %p313 = pneg %p183
        %p314 = pneg %p207
        %p315 = pneg %p204
        %p316 = scmp.lt.s32.totalorder %s19, 1
        %s317 = scalar_select %p316, %s19, 1
        %s318 = smul.addr %s317, 16
        %s319 = smul.addr %s318, 4
        %s320 = scalar_lea.vmem %s2, %s319
        %p321 = scmp.lt.s32.totalorder %s19, 1
        %s322 = scalar_select %p321, %s19, 1
        %s323 = smul.addr %s322, 8
        %s324 = smul.addr %s323, 4
        %s325 = scalar_lea.vmem %s3, %s324
        %p326 = scmp.lt.s32.totalorder %s19, 1
        %s327 = scalar_select %p326, %s19, 1
        %s328 = smul.addr %s327, 2
        %s329 = scalar_lea.vmem %s4, %s328
        %p330 = scmp.lt.s32.totalorder %s19, 1
        %s331 = scalar_select %p330, %s19, 1
        %s332 = smul.addr %s331, 16
        %s333 = smul.addr %s332, 4
        %s334 = scalar_lea.vmem %s5, %s333
        %p335 = scmp.lt.s32.totalorder %s19, 1
        %s336 = scalar_select %p335, %s19, 1
        %s337 = smul.addr %s336, 2
        %s338 = scalar_lea.vmem %s6, %s337
        %p340 = scmp.eq.s32.totalorder %s19, 0
        // Predicated region
        $region49: #{hetero_gnn_forward.1} parent=47 // pred_check
          %p341 = pneg %p340
        $region50: #{hetero_gnn_forward.1} parent=47 // pred_check_branch
          %343 = sbr.rel (%p341) target = $region52
        $region51: #{hetero_gnn_forward.1} parent=47 // pred_region
          %v344 = vld [vmem:[%s0] sm:$0xff]
          %v345 = vld [vmem:[%s0 + $0x8] sm:$0xff]
          %v346 = vld [vmem:[%s0 + $0x10] sm:$0xff]
          %v347 = vld [vmem:[%s0 + $0x18] sm:$0xff]
          %vm348 = vcmask 261120
          %349 = vst.msk [vmem:[#allocation2] sm:$0xff] %vm348, %v344
          %350 = vst.msk [vmem:[#allocation2 + $0x8] sm:$0xff] %vm348, %v345
          %351 = vst.msk [vmem:[#allocation2 + $0x10] sm:$0xff] %vm348, %v346
          %352 = vst.msk [vmem:[#allocation2 + $0x18] sm:$0xff] %vm348, %v347
          %v353 = vld [vmem:[%s1] sm:$0x3]
          %v354 = vld [vmem:[%s1 + $0x2] sm:$0x3]
          %v355 = vunpack.c.0.s8 %v353
          %v356 = vunpack.c.0.s8 %v354
          %v357 = vcvt.s32.f32 %v355
          %v358 = vcvt.s32.f32 %v356
          %vm359 = vcmp.gt.f32.partialorder %v357, 0.0
          %vm360 = vcmp.gt.f32.partialorder %v358, 0.0
          %v361 = vsel %vm359, 0.0, -1e+30
          %v362 = vsel %vm360, 0.0, -1e+30
          %vm363 = vcmask 130048
          %364 = vst.msk [vmem:[#allocation3] sm:$0xff] %vm363, %v361
          %365 = vst.msk [vmem:[#allocation3 + $0x8] sm:$0xff] %vm363, %v362
          %v366 = vsel %vm363, %v357, 0.0
          %367 = vadd.xlane.f32.xlu0 %v366
          %v368 = vpop.xlane.xlu0 %367
          %v369 = vsel %vm363, %v358, 0.0
          %370 = vadd.xlane.f32.xlu0 %v369
          %v371 = vpop.xlane.xlu0 %370
          %vm372 = vcmp.gt.f32.partialorder %v368, 0.0
          %vm373 = vcmp.gt.f32.partialorder %v371, 0.0
          %v374 = vsel %vm372, 1, 0
          %v375 = vsel %vm373, 1, 0
          %v376 = vcvt.s32.f32 %v374
          %v377 = vcvt.s32.f32 %v375
          %vm378 = vcmask 7168
          %379 = vst.msk [vmem:[#allocation4] sm:$0xff] %vm378, %v376
          %380 = vst.msk [vmem:[#allocation4 + $0x8] sm:$0xff] %vm378, %v377
          %s381 = scalar_lea.vmem %s1, 4
          %v382 = vld [vmem:[%s381] sm:$0x3]
          %v383 = vld [vmem:[%s381 + $0x2] sm:$0x3]
          %v384 = vunpack.c.0.s8 %v382
          %v385 = vunpack.c.0.s8 %v383
          %v386 = vcvt.s32.f32 %v384
          %v387 = vcvt.s32.f32 %v385
          %vm388 = vcmp.gt.f32.partialorder %v386, 0.0
          %vm389 = vcmp.gt.f32.partialorder %v387, 0.0
          %v390 = vsel %vm388, 0.0, -1e+30
          %v391 = vsel %vm389, 0.0, -1e+30
          %s392 = scalar_lea.vmem [#allocation3], 16
          %393 = vst.msk [vmem:[%s392] sm:$0xff] %vm363, %v390
          %394 = vst.msk [vmem:[%s392 + $0x8] sm:$0xff] %vm363, %v391
          %v395 = vsel %vm363, %v386, 0.0
          %396 = vadd.xlane.f32.xlu0 %v395
          %v397 = vpop.xlane.xlu0 %396
          %v398 = vsel %vm363, %v387, 0.0
          %399 = vadd.xlane.f32.xlu0 %v398
          %v400 = vpop.xlane.xlu0 %399
          %vm401 = vcmp.gt.f32.partialorder %v397, 0.0
          %vm402 = vcmp.gt.f32.partialorder %v400, 0.0
          %v403 = vsel %vm401, 1, 0
          %v404 = vsel %vm402, 1, 0
          %v405 = vcvt.s32.f32 %v403
          %v406 = vcvt.s32.f32 %v404
          %s407 = scalar_lea.vmem [#allocation4], 16
          %408 = vst.msk [vmem:[%s407] sm:$0xff] %vm378, %v405
          %409 = vst.msk [vmem:[%s407 + $0x8] sm:$0xff] %vm378, %v406
          %s410 = scalar_lea.vmem %s1, 8
          %v411 = vld [vmem:[%s410] sm:$0x3]
          %v412 = vld [vmem:[%s410 + $0x2] sm:$0x3]
          %v413 = vunpack.c.0.s8 %v411
          %v414 = vunpack.c.0.s8 %v412
          %v415 = vcvt.s32.f32 %v413
          %v416 = vcvt.s32.f32 %v414
          %vm417 = vcmp.gt.f32.partialorder %v415, 0.0
          %vm418 = vcmp.gt.f32.partialorder %v416, 0.0
          %v419 = vsel %vm417, 0.0, -1e+30
          %v420 = vsel %vm418, 0.0, -1e+30
          %s421 = scalar_lea.vmem [#allocation3], 32
          %422 = vst.msk [vmem:[%s421] sm:$0xff] %vm363, %v419
          %423 = vst.msk [vmem:[%s421 + $0x8] sm:$0xff] %vm363, %v420
          %v424 = vsel %vm363, %v415, 0.0
          %425 = vadd.xlane.f32.xlu0 %v424
          %v426 = vpop.xlane.xlu0 %425
          %v427 = vsel %vm363, %v416, 0.0
          %428 = vadd.xlane.f32.xlu0 %v427
          %v429 = vpop.xlane.xlu0 %428
          %vm430 = vcmp.gt.f32.partialorder %v426, 0.0
          %vm431 = vcmp.gt.f32.partialorder %v429, 0.0
          %v432 = vsel %vm430, 1, 0
          %v433 = vsel %vm431, 1, 0
          %v434 = vcvt.s32.f32 %v432
          %v435 = vcvt.s32.f32 %v433
          %s436 = scalar_lea.vmem [#allocation4], 32
          %437 = vst.msk [vmem:[%s436] sm:$0xff] %vm378, %v434
          %438 = vst.msk [vmem:[%s436 + $0x8] sm:$0xff] %vm378, %v435
          %s439 = scalar_lea.vmem %s1, 12
          %v440 = vld [vmem:[%s439] sm:$0x3]
          %v441 = vld [vmem:[%s439 + $0x2] sm:$0x3]
          %v442 = vunpack.c.0.s8 %v440
          %v443 = vunpack.c.0.s8 %v441
          %v444 = vcvt.s32.f32 %v442
          %v445 = vcvt.s32.f32 %v443
          %vm446 = vcmp.gt.f32.partialorder %v444, 0.0
          %vm447 = vcmp.gt.f32.partialorder %v445, 0.0
          %v448 = vsel %vm446, 0.0, -1e+30
          %v449 = vsel %vm447, 0.0, -1e+30
          %s450 = scalar_lea.vmem [#allocation3], 48
          %451 = vst.msk [vmem:[%s450] sm:$0xff] %vm363, %v448
          %452 = vst.msk [vmem:[%s450 + $0x8] sm:$0xff] %vm363, %v449
          %v453 = vsel %vm363, %v444, 0.0
          %454 = vadd.xlane.f32.xlu0 %v453
          %v455 = vpop.xlane.xlu0 %454
          %v456 = vsel %vm363, %v445, 0.0
          %457 = vadd.xlane.f32.xlu0 %v456
          %v458 = vpop.xlane.xlu0 %457
          %vm459 = vcmp.gt.f32.partialorder %v455, 0.0
          %vm460 = vcmp.gt.f32.partialorder %v458, 0.0
          %v461 = vsel %vm459, 1, 0
          %v462 = vsel %vm460, 1, 0
          %v463 = vcvt.s32.f32 %v461
          %v464 = vcvt.s32.f32 %v462
          %s465 = scalar_lea.vmem [#allocation4], 48
          %466 = vst.msk [vmem:[%s465] sm:$0xff] %vm378, %v463
          %467 = vst.msk [vmem:[%s465 + $0x8] sm:$0xff] %vm378, %v464
        $region52: #{hetero_gnn_forward.1} parent=47 // pred_fallthru
          _
        %v468 = vld [vmem:[#allocation2] sm:$0xff]
        %v469 = vld [vmem:[#allocation2 + $0x8] sm:$0xff]
        %v470 = vpack.c.bf16 %v469, %v468
        %v471 = vld [vmem:[%s325] sm:$0xf]
        %v472 = vld [vmem:[%s325 + $0x4] sm:$0xf]
        %v473 = vld [vmem:[%s325 + $0x8] sm:$0xf]
        %v474 = vld [vmem:[%s325 + $0xc] sm:$0xf]
        %v479 = vunpack.c.l.b16 %v471
        %v480 = vunpack.c.l.b16 %v472
        %v481 = vunpack.c.l.b16 %v473
        %v482 = vunpack.c.l.b16 %v474
        %v483 = vpack.c.b16 %v480, %v479
        %v484 = vpack.c.b16 %v482, %v481
        %vm487 = vcmask 261120
        %v489 = vsel %vm487, %v470, 0
        %491 = vmatprep.subr.bf16.mxu0 0
        %492 = vmatpush1.bf16.msra.mxu0 0
        %493 = vmatprep.subr.bf16.mxu0 0
        %494 = vmatpush1.bf16.msra.mxu0 0
        %495 = vmatprep.subr.bf16.mxu0 0
        %496 = vmatpush1.bf16.msra.mxu0 0
        %497 = vmatprep.subr.bf16.mxu0 0
        %498 = vmatpush1.bf16.msra.mxu0 0
        %499 = vmatprep.subr.bf16.mxu0 0
        %500 = vmatpush1.bf16.msra.mxu0 0
        %501 = vmatprep.subr.bf16.mxu0 0
        %502 = vmatpush1.bf16.msra.mxu0 0
        %503 = vmatprep.subr.bf16.mxu0 0
        %504 = vmatpush1.bf16.msra.mxu0 %v484
        %505 = vmatprep.subr.bf16.mxu0 0
        %506 = vmatpush1.bf16.msra.mxu0 %v483
        %507 = vmatprep.subr.bf16.mxu0 0
        %508 = vmatpush2.bf16.msra.mxu0 0
        %509 = vmatprep.subr.bf16.mxu0 0
        %510 = vmatpush2.bf16.msra.mxu0 0
        %511 = vmatprep.subr.bf16.mxu0 0
        %512 = vmatpush2.bf16.msra.mxu0 0
        %513 = vmatprep.subr.bf16.mxu0 0
        %514 = vmatpush2.bf16.msra.mxu0 0
        %515 = vmatprep.subr.bf16.mxu0 0
        %516 = vmatpush2.bf16.msra.mxu0 0
        %517 = vmatprep.subr.bf16.mxu0 0
        %518 = vmatpush2.bf16.msra.mxu0 0
        %519 = vmatprep.subr.bf16.mxu0 0
        %520 = vmatpush2.bf16.msra.mxu0 0
        %521 = vmatprep.subr.bf16.mxu0 0
        %522 = vmatpush2.bf16.msra.mxu0 0
        %523 = vmatprep.mubr.bf16.mxu0 0
        %524 = vmatmul.mubr.bf16.gmra.mxu0 %v489
        %v525 = vpop.f32.mrf.mxu0
        %v526 = vadd.f32 0.0, %v525
        %v527 = vpop.f32.mrf.mxu0
        %v528 = vpop.f32.mrf.mxu0
        %v529 = vadd.f32 0.0, %v528
        %v530 = vpop.f32.mrf.mxu0
        %531 = vdwg.mxu0
        %v532 = vld [vmem:[#allocation3] sm:$0xff]
        %v533 = vld [vmem:[#allocation3 + $0x8] sm:$0xff]
        %v534 = vld [vmem:[#allocation4] sm:$0xff]
        %v535 = vld [vmem:[#allocation4 + $0x8] sm:$0xff]
        %v536 = vld [vmem:[%s320] sm:$0xf]
        %v537 = vld [vmem:[%s320 + $0x4] sm:$0xf]
        %v538 = vld [vmem:[%s320 + $0x8] sm:$0xf]
        %v539 = vld [vmem:[%s320 + $0xc] sm:$0xf]
        %v544 = vunpack.c.l.b16 %v536
        %v545 = vunpack.c.l.b16 %v537
        %v546 = vunpack.c.l.b16 %v538
        %v547 = vunpack.c.l.b16 %v539
        %v548 = vpack.c.b16 %v545, %v544
        %v549 = vpack.c.b16 %v547, %v546
        %552 = vmatprep.subr.bf16.mxu0 0
        %553 = vmatpush1.bf16.msra.mxu0 0
        %554 = vmatprep.subr.bf16.mxu0 0
        %555 = vmatpush1.bf16.msra.mxu0 0
        %556 = vmatprep.subr.bf16.mxu0 0
        %557 = vmatpush1.bf16.msra.mxu0 0
        %558 = vmatprep.subr.bf16.mxu0 0
        %559 = vmatpush1.bf16.msra.mxu0 0
        %560 = vmatprep.subr.bf16.mxu0 0
        %561 = vmatpush1.bf16.msra.mxu0 0
        %562 = vmatprep.subr.bf16.mxu0 0
        %563 = vmatpush1.bf16.msra.mxu0 0
        %564 = vmatprep.subr.bf16.mxu0 0
        %565 = vmatpush1.bf16.msra.mxu0 %v549
        %566 = vmatprep.subr.bf16.mxu0 0
        %567 = vmatpush1.bf16.msra.mxu0 %v548
        %568 = vmatprep.subr.bf16.mxu0 0
        %569 = vmatpush2.bf16.msra.mxu0 0
        %570 = vmatprep.subr.bf16.mxu0 0
        %571 = vmatpush2.bf16.msra.mxu0 0
        %572 = vmatprep.subr.bf16.mxu0 0
        %573 = vmatpush2.bf16.msra.mxu0 0
        %574 = vmatprep.subr.bf16.mxu0 0
        %575 = vmatpush2.bf16.msra.mxu0 0
        %576 = vmatprep.subr.bf16.mxu0 0
        %577 = vmatpush2.bf16.msra.mxu0 0
        %578 = vmatprep.subr.bf16.mxu0 0
        %579 = vmatpush2.bf16.msra.mxu0 0
        %580 = vmatprep.subr.bf16.mxu0 0
        %581 = vmatpush2.bf16.msra.mxu0 0
        %582 = vmatprep.subr.bf16.mxu0 0
        %583 = vmatpush2.bf16.msra.mxu0 0
        %584 = vmatprep.mubr.bf16.mxu0 0
        %585 = vmatmul.mubr.bf16.gmra.mxu0 %v489
        %v586 = vpop.f32.mrf.mxu0
        %v587 = vadd.f32 0.0, %v586
        %v588 = vpop.f32.mrf.mxu0
        %v589 = vpop.f32.mrf.mxu0
        %v590 = vadd.f32 0.0, %v589
        %v591 = vpop.f32.mrf.mxu0
        %592 = vdwg.mxu0
        %595 = vrot.lane.b32.xlu0 %v587, 64
        %v596 = vpop.permute.xlu0 %595
        %597 = vrot.lane.b32.xlu0 %v590, 64
        %v598 = vpop.permute.xlu0 %597
        %601 = vxpose.xlu0.b32.start [1/16] %v596, 128
        %602 = vxpose.xlu0.b32.cont [2/16] %v598, 128
        %603 = vxpose.xlu0.b32.cont [3/16] 0.0, 128
        %604 = vxpose.xlu0.b32.cont [4/16] 0.0, 128
        %605 = vxpose.xlu0.b32.cont [5/16] 0.0, 128
        %606 = vxpose.xlu0.b32.cont [6/16] 0.0, 128
        %607 = vxpose.xlu0.b32.cont [7/16] 0.0, 128
        %608 = vxpose.xlu0.b32.cont [8/16] 0.0, 128
        %609 = vxpose.xlu0.b32.cont [9/16] 0.0, 128
        %610 = vxpose.xlu0.b32.cont [10/16] 0.0, 128
        %611 = vxpose.xlu0.b32.cont [11/16] 0.0, 128
        %612 = vxpose.xlu0.b32.cont [12/16] 0.0, 128
        %613 = vxpose.xlu0.b32.cont [13/16] 0.0, 128
        %614 = vxpose.xlu0.b32.cont [14/16] 0.0, 128
        %615 = vxpose.xlu0.b32.cont [15/16] 0.0, 128
        %616 = vxpose.xlu0.b32.end [16/16] 0.0, 128
        %v617 = vpop.trf.xlu0
        %v618 = vpop.trf.xlu0
        %v619 = vpop.trf.xlu0
        %v620 = vpop.trf.xlu0
        %v621 = vpop.trf.xlu0
        %v622 = vpop.trf.xlu0
        %v623 = vpop.trf.xlu0
        %v624 = vpop.trf.xlu0
        %v625 = vpop.trf.xlu0
        %v626 = vpop.trf.xlu0
        %v627 = vpop.trf.xlu0
        %v628 = vpop.trf.xlu0
        %v629 = vpop.trf.xlu0
        %v630 = vpop.trf.xlu0
        %v631 = vpop.trf.xlu0
        %v632 = vpop.trf.xlu0
        %634 = vset.pattern.permute.xlu0 0
        %635 = vperm.xlu0 %634, %v526
        %v636 = vpop.permute.xlu0 %635
        %639 = vset.pattern.permute.xlu0 0
        %640 = vperm.xlu0 %639, %v529
        %v641 = vpop.permute.xlu0 %640
        %v643 = vlaneseq
        %v644 = vshrl.u32 %v643, 7
        %v645 = vsub.s32 0, %v644
        %v646 = vrot.slane %v617, %v645
        %v647 = vadd.f32 %v636, %v646
        %v648 = vadd.f32 %v641, %v646
        %vm649 = vcmp.gt.f32.partialorder %v647, 0.0
        %vm650 = vcmp.gt.f32.partialorder %v648, 0.0
        %v651 = vmul.f32 %v647, 0.2
        %v652 = vmul.f32 %v648, 0.2
        %v653 = vsel %vm649, %v647, %v651
        %v654 = vsel %vm650, %v648, %v652
        %v655 = vadd.f32 %v653, %v532
        %v656 = vadd.f32 %v654, %v533
        %vm657 = vcmask 130048
        %v658 = vsel %vm657, %v655, -inf
        %659 = vmax.xlane.f32.xlu0 %v658
        %v660 = vpop.xlane.xlu0 %659
        %v661 = vsel %vm657, %v656, -inf
        %662 = vmax.xlane.f32.xlu0 %v661
        %v663 = vpop.xlane.xlu0 %662
        %v664 = vsub.f32 %v655, %v660
        %v665 = vsub.f32 %v656, %v663
        %v666 = vmul.f32 %v664, 1.442695
        %v667 = vpow.pop %v666
        %v668 = vmul.f32 %v665, 1.442695
        %v669 = vpow.pop %v668
        %v670 = vsel %vm657, %v667, 0.0
        %671 = vadd.xlane.f32.xlu0 %v670
        %v672 = vpop.xlane.xlu0 %671
        %v673 = vsel %vm657, %v669, 0.0
        %674 = vadd.xlane.f32.xlu0 %v673
        %v675 = vpop.xlane.xlu0 %674
        %v676 = vrcp.pop %v672
        %v677 = vrcp.pop %v675
        %v678 = vmul.f32 %v676, %v534
        %v679 = vmul.f32 %v677, %v535
        %681 = vset.pattern.permute.xlu0 0
        %682 = vperm.xlu0 %681, %v678
        %v683 = vpop.permute.xlu0 %682
        %686 = vset.pattern.permute.xlu0 0
        %687 = vperm.xlu0 %686, %v679
        %v688 = vpop.permute.xlu0 %687
        %v690 = vmul.f32 %v667, %v683
        %v691 = vmul.f32 %v669, %v688
        %v692 = vpack.c.bf16 %v691, %v690
        %v693 = vpack.c.bf16 %v590, %v587
        %694 = vset.pattern.permute.xlu0 1
        %695 = vperm.xlu0 %694, %v526
        %v696 = vpop.permute.xlu0 %695
        %698 = vset.pattern.permute.xlu0 1
        %699 = vperm.xlu0 %698, %v529
        %v700 = vpop.permute.xlu0 %699
        %v702 = vlaneseq
        %v703 = vshrl.u32 %v702, 7
        %v704 = vsub.s32 1, %v703
        %v705 = vrot.slane %v617, %v704
        %v706 = vadd.f32 %v696, %v705
        %v707 = vadd.f32 %v700, %v705
        %vm708 = vcmp.gt.f32.partialorder %v706, 0.0
        %vm709 = vcmp.gt.f32.partialorder %v707, 0.0
        %v710 = vmul.f32 %v706, 0.2
        %v711 = vmul.f32 %v707, 0.2
        %v712 = vsel %vm708, %v706, %v710
        %v713 = vsel %vm709, %v707, %v711
        %v714 = vadd.f32 %v712, %v532
        %v715 = vadd.f32 %v713, %v533
        %v716 = vsel %vm657, %v714, -inf
        %717 = vmax.xlane.f32.xlu0 %v716
        %v718 = vpop.xlane.xlu0 %717
        %v719 = vsel %vm657, %v715, -inf
        %720 = vmax.xlane.f32.xlu0 %v719
        %v721 = vpop.xlane.xlu0 %720
        %v722 = vsub.f32 %v714, %v718
        %v723 = vsub.f32 %v715, %v721
        %v724 = vmul.f32 %v722, 1.442695
        %v725 = vpow.pop %v724
        %v726 = vmul.f32 %v723, 1.442695
        %v727 = vpow.pop %v726
        %v728 = vsel %vm657, %v725, 0.0
        %729 = vadd.xlane.f32.xlu0 %v728
        %v730 = vpop.xlane.xlu0 %729
        %v731 = vsel %vm657, %v727, 0.0
        %732 = vadd.xlane.f32.xlu0 %v731
        %v733 = vpop.xlane.xlu0 %732
        %v734 = vrcp.pop %v730
        %v735 = vrcp.pop %v733
        %v736 = vmul.f32 %v734, %v534
        %v737 = vmul.f32 %v735, %v535
        %739 = vset.pattern.permute.xlu0 0
        %740 = vperm.xlu0 %739, %v736
        %v741 = vpop.permute.xlu0 %740
        %744 = vset.pattern.permute.xlu0 0
        %745 = vperm.xlu0 %744, %v737
        %v746 = vpop.permute.xlu0 %745
        %v748 = vmul.f32 %v725, %v741
        %v749 = vmul.f32 %v727, %v746
        %v750 = vpack.c.bf16 %v749, %v748
        %752 = vrot.lane.b32.xlu0 %v693, 96
        %v753 = vpop.permute.xlu0 %752
        %v756 = vsel %vm657, %v750, 0
        %758 = vmatprep.subr.bf16.mxu0 0
        %759 = vmatpush1.bf16.msra.mxu0 0
        %760 = vmatprep.subr.bf16.mxu0 0
        %761 = vmatpush1.bf16.msra.mxu0 0
        %762 = vmatprep.subr.bf16.mxu0 0
        %763 = vmatpush1.bf16.msra.mxu0 0
        %764 = vmatprep.subr.bf16.mxu0 0
        %765 = vmatpush1.bf16.msra.mxu0 0
        %766 = vmatprep.subr.bf16.mxu0 0
        %767 = vmatpush1.bf16.msra.mxu0 0
        %768 = vmatprep.subr.bf16.mxu0 0
        %769 = vmatpush1.bf16.msra.mxu0 0
        %770 = vmatprep.subr.bf16.mxu0 0
        %771 = vmatpush1.bf16.msra.mxu0 0
        %772 = vmatprep.subr.bf16.mxu0 0
        %773 = vmatpush1.bf16.msra.mxu0 %v753
        %774 = vmatprep.subr.bf16.mxu0 0
        %775 = vmatpush2.bf16.msra.mxu0 0
        %776 = vmatprep.subr.bf16.mxu0 0
        %777 = vmatpush2.bf16.msra.mxu0 0
        %778 = vmatprep.subr.bf16.mxu0 0
        %779 = vmatpush2.bf16.msra.mxu0 0
        %780 = vmatprep.subr.bf16.mxu0 0
        %781 = vmatpush2.bf16.msra.mxu0 0
        %782 = vmatprep.subr.bf16.mxu0 0
        %783 = vmatpush2.bf16.msra.mxu0 0
        %784 = vmatprep.subr.bf16.mxu0 0
        %785 = vmatpush2.bf16.msra.mxu0 0
        %786 = vmatprep.subr.bf16.mxu0 0
        %787 = vmatpush2.bf16.msra.mxu0 0
        %788 = vmatprep.subr.bf16.mxu0 0
        %789 = vmatpush2.bf16.msra.mxu0 0
        %790 = vmatprep.mubr.bf16.mxu0 0
        %791 = vmatmul.mubr.bf16.gmra.mxu0 %v756
        %v792 = vpop.f32.mrf.mxu0
        %v793 = vadd.f32 0.0, %v792
        %v794 = vpop.f32.mrf.mxu0
        %v795 = vpop.f32.mrf.mxu0
        %v796 = vadd.f32 0.0, %v795
        %v797 = vpop.f32.mrf.mxu0
        %798 = vdwg.mxu0
        %v800 = vsel %vm657, %v692, 0
        %802 = vmatprep.subr.bf16.mxu0 0
        %803 = vmatpush1.bf16.msra.mxu0 0
        %804 = vmatprep.subr.bf16.mxu0 0
        %805 = vmatpush1.bf16.msra.mxu0 0
        %806 = vmatprep.subr.bf16.mxu0 0
        %807 = vmatpush1.bf16.msra.mxu0 0
        %808 = vmatprep.subr.bf16.mxu0 0
        %809 = vmatpush1.bf16.msra.mxu0 0
        %810 = vmatprep.subr.bf16.mxu0 0
        %811 = vmatpush1.bf16.msra.mxu0 0
        %812 = vmatprep.subr.bf16.mxu0 0
        %813 = vmatpush1.bf16.msra.mxu0 0
        %814 = vmatprep.subr.bf16.mxu0 0
        %815 = vmatpush1.bf16.msra.mxu0 0
        %816 = vmatprep.subr.bf16.mxu0 0
        %817 = vmatpush1.bf16.msra.mxu0 %v693
        %818 = vmatprep.subr.bf16.mxu0 0
        %819 = vmatpush2.bf16.msra.mxu0 0
        %820 = vmatprep.subr.bf16.mxu0 0
        %821 = vmatpush2.bf16.msra.mxu0 0
        %822 = vmatprep.subr.bf16.mxu0 0
        %823 = vmatpush2.bf16.msra.mxu0 0
        %824 = vmatprep.subr.bf16.mxu0 0
        %825 = vmatpush2.bf16.msra.mxu0 0
        %826 = vmatprep.subr.bf16.mxu0 0
        %827 = vmatpush2.bf16.msra.mxu0 0
        %828 = vmatprep.subr.bf16.mxu0 0
        %829 = vmatpush2.bf16.msra.mxu0 0
        %830 = vmatprep.subr.bf16.mxu0 0
        %831 = vmatpush2.bf16.msra.mxu0 0
        %832 = vmatprep.subr.bf16.mxu0 0
        %833 = vmatpush2.bf16.msra.mxu0 0
        %834 = vmatprep.mubr.bf16.mxu0 0
        %835 = vmatmul.mubr.bf16.gmra.mxu0 %v800
        %v836 = vpop.f32.mrf.mxu0
        %v837 = vadd.f32 %v793, %v836
        %v838 = vpop.f32.mrf.mxu0
        %v839 = vpop.f32.mrf.mxu0
        %v840 = vadd.f32 %v796, %v839
        %v841 = vpop.f32.mrf.mxu0
        %842 = vdwg.mxu0
        %s843 = scalar_lea.vmem [#allocation2], 16
        %v844 = vld [vmem:[%s843] sm:$0xff]
        %v845 = vld [vmem:[%s843 + $0x8] sm:$0xff]
        %v846 = vpack.c.bf16 %v845, %v844
        %s847 = scalar_lea.vmem [#allocation3], 16
        %v848 = vld [vmem:[%s847] sm:$0xff]
        %v849 = vld [vmem:[%s847 + $0x8] sm:$0xff]
        %s850 = scalar_lea.vmem [#allocation4], 16
        %v851 = vld [vmem:[%s850] sm:$0xff]
        %v852 = vld [vmem:[%s850 + $0x8] sm:$0xff]
        %s853 = scalar_lea.vmem %s320, 16
        %v854 = vld [vmem:[%s853] sm:$0xf]
        %v855 = vld [vmem:[%s853 + $0x4] sm:$0xf]
        %v856 = vld [vmem:[%s853 + $0x8] sm:$0xf]
        %v857 = vld [vmem:[%s853 + $0xc] sm:$0xf]
        %v862 = vunpack.c.l.b16 %v854
        %v863 = vunpack.c.l.b16 %v855
        %v864 = vunpack.c.l.b16 %v856
        %v865 = vunpack.c.l.b16 %v857
        %v866 = vpack.c.b16 %v863, %v862
        %v867 = vpack.c.b16 %v865, %v864
        %v871 = vsel %vm487, %v846, 0
        %873 = vmatprep.subr.bf16.mxu0 0
        %874 = vmatpush1.bf16.msra.mxu0 0
        %875 = vmatprep.subr.bf16.mxu0 0
        %876 = vmatpush1.bf16.msra.mxu0 0
        %877 = vmatprep.subr.bf16.mxu0 0
        %878 = vmatpush1.bf16.msra.mxu0 0
        %879 = vmatprep.subr.bf16.mxu0 0
        %880 = vmatpush1.bf16.msra.mxu0 0
        %881 = vmatprep.subr.bf16.mxu0 0
        %882 = vmatpush1.bf16.msra.mxu0 0
        %883 = vmatprep.subr.bf16.mxu0 0
        %884 = vmatpush1.bf16.msra.mxu0 0
        %885 = vmatprep.subr.bf16.mxu0 0
        %886 = vmatpush1.bf16.msra.mxu0 %v867
        %887 = vmatprep.subr.bf16.mxu0 0
        %888 = vmatpush1.bf16.msra.mxu0 %v866
        %889 = vmatprep.subr.bf16.mxu0 0
        %890 = vmatpush2.bf16.msra.mxu0 0
        %891 = vmatprep.subr.bf16.mxu0 0
        %892 = vmatpush2.bf16.msra.mxu0 0
        %893 = vmatprep.subr.bf16.mxu0 0
        %894 = vmatpush2.bf16.msra.mxu0 0
        %895 = vmatprep.subr.bf16.mxu0 0
        %896 = vmatpush2.bf16.msra.mxu0 0
        %897 = vmatprep.subr.bf16.mxu0 0
        %898 = vmatpush2.bf16.msra.mxu0 0
        %899 = vmatprep.subr.bf16.mxu0 0
        %900 = vmatpush2.bf16.msra.mxu0 0
        %901 = vmatprep.subr.bf16.mxu0 0
        %902 = vmatpush2.bf16.msra.mxu0 0
        %903 = vmatprep.subr.bf16.mxu0 0
        %904 = vmatpush2.bf16.msra.mxu0 0
        %905 = vmatprep.mubr.bf16.mxu0 0
        %906 = vmatmul.mubr.bf16.gmra.mxu0 %v871
        %v907 = vpop.f32.mrf.mxu0
        %v908 = vadd.f32 0.0, %v907
        %v909 = vpop.f32.mrf.mxu0
        %v910 = vpop.f32.mrf.mxu0
        %v911 = vadd.f32 0.0, %v910
        %v912 = vpop.f32.mrf.mxu0
        %913 = vdwg.mxu0
        %916 = vrot.lane.b32.xlu0 %v908, 64
        %v917 = vpop.permute.xlu0 %916
        %918 = vrot.lane.b32.xlu0 %v911, 64
        %v919 = vpop.permute.xlu0 %918
        %922 = vxpose.xlu0.b32.start [1/16] %v917, 128
        %923 = vxpose.xlu0.b32.cont [2/16] %v919, 128
        %924 = vxpose.xlu0.b32.cont [3/16] 0.0, 128
        %925 = vxpose.xlu0.b32.cont [4/16] 0.0, 128
        %926 = vxpose.xlu0.b32.cont [5/16] 0.0, 128
        %927 = vxpose.xlu0.b32.cont [6/16] 0.0, 128
        %928 = vxpose.xlu0.b32.cont [7/16] 0.0, 128
        %929 = vxpose.xlu0.b32.cont [8/16] 0.0, 128
        %930 = vxpose.xlu0.b32.cont [9/16] 0.0, 128
        %931 = vxpose.xlu0.b32.cont [10/16] 0.0, 128
        %932 = vxpose.xlu0.b32.cont [11/16] 0.0, 128
        %933 = vxpose.xlu0.b32.cont [12/16] 0.0, 128
        %934 = vxpose.xlu0.b32.cont [13/16] 0.0, 128
        %935 = vxpose.xlu0.b32.cont [14/16] 0.0, 128
        %936 = vxpose.xlu0.b32.cont [15/16] 0.0, 128
        %937 = vxpose.xlu0.b32.end [16/16] 0.0, 128
        %v938 = vpop.trf.xlu0
        %v939 = vpop.trf.xlu0
        %v940 = vpop.trf.xlu0
        %v941 = vpop.trf.xlu0
        %v942 = vpop.trf.xlu0
        %v943 = vpop.trf.xlu0
        %v944 = vpop.trf.xlu0
        %v945 = vpop.trf.xlu0
        %v946 = vpop.trf.xlu0
        %v947 = vpop.trf.xlu0
        %v948 = vpop.trf.xlu0
        %v949 = vpop.trf.xlu0
        %v950 = vpop.trf.xlu0
        %v951 = vpop.trf.xlu0
        %v952 = vpop.trf.xlu0
        %v953 = vpop.trf.xlu0
        %954 = vset.pattern.permute.xlu0 2
        %955 = vperm.xlu0 %954, %v526
        %v956 = vpop.permute.xlu0 %955
        %958 = vset.pattern.permute.xlu0 2
        %959 = vperm.xlu0 %958, %v529
        %v960 = vpop.permute.xlu0 %959
        %v962 = vlaneseq
        %v963 = vshrl.u32 %v962, 7
        %v964 = vsub.s32 0, %v963
        %v965 = vrot.slane %v938, %v964
        %v966 = vadd.f32 %v956, %v965
        %v967 = vadd.f32 %v960, %v965
        %vm968 = vcmp.gt.f32.partialorder %v966, 0.0
        %vm969 = vcmp.gt.f32.partialorder %v967, 0.0
        %v970 = vmul.f32 %v966, 0.2
        %v971 = vmul.f32 %v967, 0.2
        %v972 = vsel %vm968, %v966, %v970
        %v973 = vsel %vm969, %v967, %v971
        %v974 = vadd.f32 %v972, %v848
        %v975 = vadd.f32 %v973, %v849
        %v976 = vsel %vm657, %v974, -inf
        %977 = vmax.xlane.f32.xlu0 %v976
        %v978 = vpop.xlane.xlu0 %977
        %v979 = vsel %vm657, %v975, -inf
        %980 = vmax.xlane.f32.xlu0 %v979
        %v981 = vpop.xlane.xlu0 %980
        %v982 = vsub.f32 %v974, %v978
        %v983 = vsub.f32 %v975, %v981
        %v984 = vmul.f32 %v982, 1.442695
        %v985 = vpow.pop %v984
        %v986 = vmul.f32 %v983, 1.442695
        %v987 = vpow.pop %v986
        %v988 = vsel %vm657, %v985, 0.0
        %989 = vadd.xlane.f32.xlu0 %v988
        %v990 = vpop.xlane.xlu0 %989
        %v991 = vsel %vm657, %v987, 0.0
        %992 = vadd.xlane.f32.xlu0 %v991
        %v993 = vpop.xlane.xlu0 %992
        %v994 = vrcp.pop %v990
        %v995 = vrcp.pop %v993
        %v996 = vmul.f32 %v994, %v851
        %v997 = vmul.f32 %v995, %v852
        %999 = vset.pattern.permute.xlu0 0
        %1000 = vperm.xlu0 %999, %v996
        %v1001 = vpop.permute.xlu0 %1000
        %1004 = vset.pattern.permute.xlu0 0
        %1005 = vperm.xlu0 %1004, %v997
        %v1006 = vpop.permute.xlu0 %1005
        %v1008 = vmul.f32 %v985, %v1001
        %v1009 = vmul.f32 %v987, %v1006
        %v1010 = vpack.c.bf16 %v1009, %v1008
        %v1011 = vpack.c.bf16 %v911, %v908
        %v1013 = vsel %vm657, %v1010, 0
        %1015 = vmatprep.subr.bf16.mxu0 0
        %1016 = vmatpush1.bf16.msra.mxu0 0
        %1017 = vmatprep.subr.bf16.mxu0 0
        %1018 = vmatpush1.bf16.msra.mxu0 0
        %1019 = vmatprep.subr.bf16.mxu0 0
        %1020 = vmatpush1.bf16.msra.mxu0 0
        %1021 = vmatprep.subr.bf16.mxu0 0
        %1022 = vmatpush1.bf16.msra.mxu0 0
        %1023 = vmatprep.subr.bf16.mxu0 0
        %1024 = vmatpush1.bf16.msra.mxu0 0
        %1025 = vmatprep.subr.bf16.mxu0 0
        %1026 = vmatpush1.bf16.msra.mxu0 0
        %1027 = vmatprep.subr.bf16.mxu0 0
        %1028 = vmatpush1.bf16.msra.mxu0 0
        %1029 = vmatprep.subr.bf16.mxu0 0
        %1030 = vmatpush1.bf16.msra.mxu0 %v1011
        %1031 = vmatprep.subr.bf16.mxu0 0
        %1032 = vmatpush2.bf16.msra.mxu0 0
        %1033 = vmatprep.subr.bf16.mxu0 0
        %1034 = vmatpush2.bf16.msra.mxu0 0
        %1035 = vmatprep.subr.bf16.mxu0 0
        %1036 = vmatpush2.bf16.msra.mxu0 0
        %1037 = vmatprep.subr.bf16.mxu0 0
        %1038 = vmatpush2.bf16.msra.mxu0 0
        %1039 = vmatprep.subr.bf16.mxu0 0
        %1040 = vmatpush2.bf16.msra.mxu0 0
        %1041 = vmatprep.subr.bf16.mxu0 0
        %1042 = vmatpush2.bf16.msra.mxu0 0
        %1043 = vmatprep.subr.bf16.mxu0 0
        %1044 = vmatpush2.bf16.msra.mxu0 0
        %1045 = vmatprep.subr.bf16.mxu0 0
        %1046 = vmatpush2.bf16.msra.mxu0 0
        %1047 = vmatprep.mubr.bf16.mxu0 0
        %1048 = vmatmul.mubr.bf16.gmra.mxu0 %v1013
        %v1049 = vpop.f32.mrf.mxu0
        %v1050 = vadd.f32 0.0, %v1049
        %v1051 = vpop.f32.mrf.mxu0
        %v1052 = vpop.f32.mrf.mxu0
        %v1053 = vadd.f32 0.0, %v1052
        %v1054 = vpop.f32.mrf.mxu0
        %1055 = vdwg.mxu0
        %v1056 = vadd.f32 %v837, %v1050
        %v1057 = vadd.f32 %v840, %v1053
        %1058 = vset.pattern.permute.xlu0 3
        %1059 = vperm.xlu0 %1058, %v526
        %v1060 = vpop.permute.xlu0 %1059
        %1062 = vset.pattern.permute.xlu0 3
        %1063 = vperm.xlu0 %1062, %v529
        %v1064 = vpop.permute.xlu0 %1063
        %v1066 = vlaneseq
        %v1067 = vshrl.u32 %v1066, 7
        %v1068 = vsub.s32 1, %v1067
        %v1069 = vrot.slane %v938, %v1068
        %v1070 = vadd.f32 %v1060, %v1069
        %v1071 = vadd.f32 %v1064, %v1069
        %vm1072 = vcmp.gt.f32.partialorder %v1070, 0.0
        %vm1073 = vcmp.gt.f32.partialorder %v1071, 0.0
        %v1074 = vmul.f32 %v1070, 0.2
        %v1075 = vmul.f32 %v1071, 0.2
        %v1076 = vsel %vm1072, %v1070, %v1074
        %v1077 = vsel %vm1073, %v1071, %v1075
        %v1078 = vadd.f32 %v1076, %v848
        %v1079 = vadd.f32 %v1077, %v849
        %v1080 = vsel %vm657, %v1078, -inf
        %1081 = vmax.xlane.f32.xlu0 %v1080
        %v1082 = vpop.xlane.xlu0 %1081
        %v1083 = vsel %vm657, %v1079, -inf
        %1084 = vmax.xlane.f32.xlu0 %v1083
        %v1085 = vpop.xlane.xlu0 %1084
        %v1086 = vsub.f32 %v1078, %v1082
        %v1087 = vsub.f32 %v1079, %v1085
        %v1088 = vmul.f32 %v1086, 1.442695
        %v1089 = vpow.pop %v1088
        %v1090 = vmul.f32 %v1087, 1.442695
        %v1091 = vpow.pop %v1090
        %v1092 = vsel %vm657, %v1089, 0.0
        %1093 = vadd.xlane.f32.xlu0 %v1092
        %v1094 = vpop.xlane.xlu0 %1093
        %v1095 = vsel %vm657, %v1091, 0.0
        %1096 = vadd.xlane.f32.xlu0 %v1095
        %v1097 = vpop.xlane.xlu0 %1096
        %v1098 = vrcp.pop %v1094
        %v1099 = vrcp.pop %v1097
        %v1100 = vmul.f32 %v1098, %v851
        %v1101 = vmul.f32 %v1099, %v852
        %1103 = vset.pattern.permute.xlu0 0
        %1104 = vperm.xlu0 %1103, %v1100
        %v1105 = vpop.permute.xlu0 %1104
        %1108 = vset.pattern.permute.xlu0 0
        %1109 = vperm.xlu0 %1108, %v1101
        %v1110 = vpop.permute.xlu0 %1109
        %v1112 = vmul.f32 %v1089, %v1105
        %v1113 = vmul.f32 %v1091, %v1110
        %v1114 = vpack.c.bf16 %v1113, %v1112
        %1116 = vrot.lane.b32.xlu0 %v1011, 96
        %v1117 = vpop.permute.xlu0 %1116
        %v1120 = vsel %vm657, %v1114, 0
        %1122 = vmatprep.subr.bf16.mxu0 0
        %1123 = vmatpush1.bf16.msra.mxu0 0
        %1124 = vmatprep.subr.bf16.mxu0 0
        %1125 = vmatpush1.bf16.msra.mxu0 0
        %1126 = vmatprep.subr.bf16.mxu0 0
        %1127 = vmatpush1.bf16.msra.mxu0 0
        %1128 = vmatprep.subr.bf16.mxu0 0
        %1129 = vmatpush1.bf16.msra.mxu0 0
        %1130 = vmatprep.subr.bf16.mxu0 0
        %1131 = vmatpush1.bf16.msra.mxu0 0
        %1132 = vmatprep.subr.bf16.mxu0 0
        %1133 = vmatpush1.bf16.msra.mxu0 0
        %1134 = vmatprep.subr.bf16.mxu0 0
        %1135 = vmatpush1.bf16.msra.mxu0 0
        %1136 = vmatprep.subr.bf16.mxu0 0
        %1137 = vmatpush1.bf16.msra.mxu0 %v1117
        %1138 = vmatprep.subr.bf16.mxu0 0
        %1139 = vmatpush2.bf16.msra.mxu0 0
        %1140 = vmatprep.subr.bf16.mxu0 0
        %1141 = vmatpush2.bf16.msra.mxu0 0
        %1142 = vmatprep.subr.bf16.mxu0 0
        %1143 = vmatpush2.bf16.msra.mxu0 0
        %1144 = vmatprep.subr.bf16.mxu0 0
        %1145 = vmatpush2.bf16.msra.mxu0 0
        %1146 = vmatprep.subr.bf16.mxu0 0
        %1147 = vmatpush2.bf16.msra.mxu0 0
        %1148 = vmatprep.subr.bf16.mxu0 0
        %1149 = vmatpush2.bf16.msra.mxu0 0
        %1150 = vmatprep.subr.bf16.mxu0 0
        %1151 = vmatpush2.bf16.msra.mxu0 0
        %1152 = vmatprep.subr.bf16.mxu0 0
        %1153 = vmatpush2.bf16.msra.mxu0 0
        %1154 = vmatprep.mubr.bf16.mxu0 0
        %1155 = vmatmul.mubr.bf16.gmra.mxu0 %v1120
        %v1156 = vpop.f32.mrf.mxu0
        %v1157 = vadd.f32 0.0, %v1156
        %v1158 = vpop.f32.mrf.mxu0
        %v1159 = vpop.f32.mrf.mxu0
        %v1160 = vadd.f32 0.0, %v1159
        %v1161 = vpop.f32.mrf.mxu0
        %1162 = vdwg.mxu0
        %v1163 = vadd.f32 %v1056, %v1157
        %v1164 = vadd.f32 %v1057, %v1160
        %v1165 = vmul.f32 %v1163, 0.5
        %v1166 = vmul.f32 %v1164, 0.5
        %v1167 = vld [vmem:[%s329] sm:$0x1]
        %v1169 = vlaneseq
        %v1170 = vshrl.u32 %v1169, 7
        %v1171 = vsub.s32 0, %v1170
        %v1172 = vrot.slane %v1167, %v1171
        %v1174 = vadd.f32 %v1165, %v1172
        %v1175 = vadd.f32 %v1166, %v1172
        %v1176 = vmax.f32 %v1174, 0.0
        %v1177 = vmax.f32 %v1175, 0.0
        %1180 = vrot.lane.b32.xlu0 %v468, 32
        %v1181 = vpop.permute.xlu0 %1180
        %1182 = vrot.lane.b32.xlu0 %v469, 32
        %v1183 = vpop.permute.xlu0 %1182
        %v1186 = vsel %vm487, %v1176, %v1181
        %v1187 = vsel %vm487, %v1177, %v1183
        %v1188 = vpack.c.bf16 %v1187, %v1186
        %v1189 = vld [vmem:[%s334] sm:$0xf]
        %v1190 = vld [vmem:[%s334 + $0x4] sm:$0xf]
        %v1191 = vld [vmem:[%s334 + $0x8] sm:$0xf]
        %v1192 = vld [vmem:[%s334 + $0xc] sm:$0xf]
        %v1193 = vld [vmem:[%s334 + $0x10] sm:$0xf]
        %v1194 = vld [vmem:[%s334 + $0x14] sm:$0xf]
        %v1195 = vld [vmem:[%s334 + $0x18] sm:$0xf]
        %v1196 = vld [vmem:[%s334 + $0x1c] sm:$0xf]
        %v1197 = vld [vmem:[%s338] sm:$0x1]
        %v1199 = vlaneseq
        %v1200 = vshrl.u32 %v1199, 7
        %v1201 = vsub.s32 0, %v1200
        %v1202 = vrot.slane %v1197, %v1201
        %v1212 = vunpack.c.l.b16 %v1189
        %v1213 = vunpack.c.l.b16 %v1190
        %v1214 = vunpack.c.l.b16 %v1191
        %v1215 = vunpack.c.l.b16 %v1192
        %v1216 = vunpack.c.l.b16 %v1193
        %v1217 = vunpack.c.l.b16 %v1194
        %v1218 = vunpack.c.l.b16 %v1195
        %v1219 = vunpack.c.l.b16 %v1196
        %v1220 = vpack.c.b16 %v1213, %v1212
        %v1221 = vpack.c.b16 %v1215, %v1214
        %v1222 = vpack.c.b16 %v1217, %v1216
        %v1223 = vpack.c.b16 %v1219, %v1218
        %vm1228 = vcmask 523264
        %v1230 = vsel %vm1228, %v1188, 0
        %1232 = vmatprep.subr.bf16.mxu0 0
        %1233 = vmatpush1.bf16.msra.mxu0 0
        %1234 = vmatprep.subr.bf16.mxu0 0
        %1235 = vmatpush1.bf16.msra.mxu0 0
        %1236 = vmatprep.subr.bf16.mxu0 0
        %1237 = vmatpush1.bf16.msra.mxu0 0
        %1238 = vmatprep.subr.bf16.mxu0 0
        %1239 = vmatpush1.bf16.msra.mxu0 0
        %1240 = vmatprep.subr.bf16.mxu0 0
        %1241 = vmatpush1.bf16.msra.mxu0 %v1223
        %1242 = vmatprep.subr.bf16.mxu0 0
        %1243 = vmatpush1.bf16.msra.mxu0 %v1222
        %1244 = vmatprep.subr.bf16.mxu0 0
        %1245 = vmatpush1.bf16.msra.mxu0 %v1221
        %1246 = vmatprep.subr.bf16.mxu0 0
        %1247 = vmatpush1.bf16.msra.mxu0 %v1220
        %1248 = vmatprep.subr.bf16.mxu0 0
        %1249 = vmatpush2.bf16.msra.mxu0 0
        %1250 = vmatprep.subr.bf16.mxu0 0
        %1251 = vmatpush2.bf16.msra.mxu0 0
        %1252 = vmatprep.subr.bf16.mxu0 0
        %1253 = vmatpush2.bf16.msra.mxu0 0
        %1254 = vmatprep.subr.bf16.mxu0 0
        %1255 = vmatpush2.bf16.msra.mxu0 0
        %1256 = vmatprep.subr.bf16.mxu0 0
        %1257 = vmatpush2.bf16.msra.mxu0 0
        %1258 = vmatprep.subr.bf16.mxu0 0
        %1259 = vmatpush2.bf16.msra.mxu0 0
        %1260 = vmatprep.subr.bf16.mxu0 0
        %1261 = vmatpush2.bf16.msra.mxu0 0
        %1262 = vmatprep.subr.bf16.mxu0 0
        %1263 = vmatpush2.bf16.msra.mxu0 0
        %1264 = vmatprep.mubr.bf16.mxu0 0
        %1265 = vmatmul.mubr.bf16.gmra.mxu0 %v1230
        %v1266 = vpop.f32.mrf.mxu0
        %v1267 = vadd.f32 %v1202, %v1266
        %v1268 = vpop.f32.mrf.mxu0
        %v1269 = vpop.f32.mrf.mxu0
        %v1270 = vadd.f32 %v1202, %v1269
        %v1271 = vpop.f32.mrf.mxu0
        %1272 = vdwg.mxu0
        %s1273 = scalar_lea.vmem %s325, 16
        %v1274 = vld [vmem:[%s1273] sm:$0xf]
        %v1275 = vld [vmem:[%s1273 + $0x4] sm:$0xf]
        %v1276 = vld [vmem:[%s1273 + $0x8] sm:$0xf]
        %v1277 = vld [vmem:[%s1273 + $0xc] sm:$0xf]
        %v1282 = vunpack.c.l.b16 %v1274
        %v1283 = vunpack.c.l.b16 %v1275
        %v1284 = vunpack.c.l.b16 %v1276
        %v1285 = vunpack.c.l.b16 %v1277
        %v1286 = vpack.c.b16 %v1283, %v1282
        %v1287 = vpack.c.b16 %v1285, %v1284
        %1290 = vmatprep.subr.bf16.mxu0 0
        %1291 = vmatpush1.bf16.msra.mxu0 0
        %1292 = vmatprep.subr.bf16.mxu0 0
        %1293 = vmatpush1.bf16.msra.mxu0 0
        %1294 = vmatprep.subr.bf16.mxu0 0
        %1295 = vmatpush1.bf16.msra.mxu0 0
        %1296 = vmatprep.subr.bf16.mxu0 0
        %1297 = vmatpush1.bf16.msra.mxu0 0
        %1298 = vmatprep.subr.bf16.mxu0 0
        %1299 = vmatpush1.bf16.msra.mxu0 0
        %1300 = vmatprep.subr.bf16.mxu0 0
        %1301 = vmatpush1.bf16.msra.mxu0 0
        %1302 = vmatprep.subr.bf16.mxu0 0
        %1303 = vmatpush1.bf16.msra.mxu0 %v1287
        %1304 = vmatprep.subr.bf16.mxu0 0
        %1305 = vmatpush1.bf16.msra.mxu0 %v1286
        %1306 = vmatprep.subr.bf16.mxu0 0
        %1307 = vmatpush2.bf16.msra.mxu0 0
        %1308 = vmatprep.subr.bf16.mxu0 0
        %1309 = vmatpush2.bf16.msra.mxu0 0
        %1310 = vmatprep.subr.bf16.mxu0 0
        %1311 = vmatpush2.bf16.msra.mxu0 0
        %1312 = vmatprep.subr.bf16.mxu0 0
        %1313 = vmatpush2.bf16.msra.mxu0 0
        %1314 = vmatprep.subr.bf16.mxu0 0
        %1315 = vmatpush2.bf16.msra.mxu0 0
        %1316 = vmatprep.subr.bf16.mxu0 0
        %1317 = vmatpush2.bf16.msra.mxu0 0
        %1318 = vmatprep.subr.bf16.mxu0 0
        %1319 = vmatpush2.bf16.msra.mxu0 0
        %1320 = vmatprep.subr.bf16.mxu0 0
        %1321 = vmatpush2.bf16.msra.mxu0 0
        %1322 = vmatprep.mubr.bf16.mxu0 0
        %1323 = vmatmul.mubr.bf16.gmra.mxu0 %v871
        %v1324 = vpop.f32.mrf.mxu0
        %v1325 = vadd.f32 0.0, %v1324
        %v1326 = vpop.f32.mrf.mxu0
        %v1327 = vpop.f32.mrf.mxu0
        %v1328 = vadd.f32 0.0, %v1327
        %v1329 = vpop.f32.mrf.mxu0
        %1330 = vdwg.mxu0
        %s1331 = scalar_lea.vmem [#allocation3], 32
        %v1332 = vld [vmem:[%s1331] sm:$0xff]
        %v1333 = vld [vmem:[%s1331 + $0x8] sm:$0xff]
        %s1334 = scalar_lea.vmem [#allocation4], 32
        %v1335 = vld [vmem:[%s1334] sm:$0xff]
        %v1336 = vld [vmem:[%s1334 + $0x8] sm:$0xff]
        %s1337 = scalar_lea.vmem %s320, 32
        %v1338 = vld [vmem:[%s1337] sm:$0xf]
        %v1339 = vld [vmem:[%s1337 + $0x4] sm:$0xf]
        %v1340 = vld [vmem:[%s1337 + $0x8] sm:$0xf]
        %v1341 = vld [vmem:[%s1337 + $0xc] sm:$0xf]
        %v1346 = vunpack.c.l.b16 %v1338
        %v1347 = vunpack.c.l.b16 %v1339
        %v1348 = vunpack.c.l.b16 %v1340
        %v1349 = vunpack.c.l.b16 %v1341
        %v1350 = vpack.c.b16 %v1347, %v1346
        %v1351 = vpack.c.b16 %v1349, %v1348
        %1354 = vmatprep.subr.bf16.mxu0 0
        %1355 = vmatpush1.bf16.msra.mxu0 0
        %1356 = vmatprep.subr.bf16.mxu0 0
        %1357 = vmatpush1.bf16.msra.mxu0 0
        %1358 = vmatprep.subr.bf16.mxu0 0
        %1359 = vmatpush1.bf16.msra.mxu0 0
        %1360 = vmatprep.subr.bf16.mxu0 0
        %1361 = vmatpush1.bf16.msra.mxu0 0
        %1362 = vmatprep.subr.bf16.mxu0 0
        %1363 = vmatpush1.bf16.msra.mxu0 0
        %1364 = vmatprep.subr.bf16.mxu0 0
        %1365 = vmatpush1.bf16.msra.mxu0 0
        %1366 = vmatprep.subr.bf16.mxu0 0
        %1367 = vmatpush1.bf16.msra.mxu0 %v1351
        %1368 = vmatprep.subr.bf16.mxu0 0
        %1369 = vmatpush1.bf16.msra.mxu0 %v1350
        %1370 = vmatprep.subr.bf16.mxu0 0
        %1371 = vmatpush2.bf16.msra.mxu0 0
        %1372 = vmatprep.subr.bf16.mxu0 0
        %1373 = vmatpush2.bf16.msra.mxu0 0
        %1374 = vmatprep.subr.bf16.mxu0 0
        %1375 = vmatpush2.bf16.msra.mxu0 0
        %1376 = vmatprep.subr.bf16.mxu0 0
        %1377 = vmatpush2.bf16.msra.mxu0 0
        %1378 = vmatprep.subr.bf16.mxu0 0
        %1379 = vmatpush2.bf16.msra.mxu0 0
        %1380 = vmatprep.subr.bf16.mxu0 0
        %1381 = vmatpush2.bf16.msra.mxu0 0
        %1382 = vmatprep.subr.bf16.mxu0 0
        %1383 = vmatpush2.bf16.msra.mxu0 0
        %1384 = vmatprep.subr.bf16.mxu0 0
        %1385 = vmatpush2.bf16.msra.mxu0 0
        %1386 = vmatprep.mubr.bf16.mxu0 0
        %1387 = vmatmul.mubr.bf16.gmra.mxu0 %v489
        %v1388 = vpop.f32.mrf.mxu0
        %v1389 = vadd.f32 0.0, %v1388
        %v1390 = vpop.f32.mrf.mxu0
        %v1391 = vpop.f32.mrf.mxu0
        %v1392 = vadd.f32 0.0, %v1391
        %v1393 = vpop.f32.mrf.mxu0
        %1394 = vdwg.mxu0
        %1397 = vrot.lane.b32.xlu0 %v1389, 64
        %v1398 = vpop.permute.xlu0 %1397
        %1399 = vrot.lane.b32.xlu0 %v1392, 64
        %v1400 = vpop.permute.xlu0 %1399
        %1403 = vxpose.xlu0.b32.start [1/16] %v1398, 128
        %1404 = vxpose.xlu0.b32.cont [2/16] %v1400, 128
        %1405 = vxpose.xlu0.b32.cont [3/16] 0.0, 128
        %1406 = vxpose.xlu0.b32.cont [4/16] 0.0, 128
        %1407 = vxpose.xlu0.b32.cont [5/16] 0.0, 128
        %1408 = vxpose.xlu0.b32.cont [6/16] 0.0, 128
        %1409 = vxpose.xlu0.b32.cont [7/16] 0.0, 128
        %1410 = vxpose.xlu0.b32.cont [8/16] 0.0, 128
        %1411 = vxpose.xlu0.b32.cont [9/16] 0.0, 128
        %1412 = vxpose.xlu0.b32.cont [10/16] 0.0, 128
        %1413 = vxpose.xlu0.b32.cont [11/16] 0.0, 128
        %1414 = vxpose.xlu0.b32.cont [12/16] 0.0, 128
        %1415 = vxpose.xlu0.b32.cont [13/16] 0.0, 128
        %1416 = vxpose.xlu0.b32.cont [14/16] 0.0, 128
        %1417 = vxpose.xlu0.b32.cont [15/16] 0.0, 128
        %1418 = vxpose.xlu0.b32.end [16/16] 0.0, 128
        %v1419 = vpop.trf.xlu0
        %v1420 = vpop.trf.xlu0
        %v1421 = vpop.trf.xlu0
        %v1422 = vpop.trf.xlu0
        %v1423 = vpop.trf.xlu0
        %v1424 = vpop.trf.xlu0
        %v1425 = vpop.trf.xlu0
        %v1426 = vpop.trf.xlu0
        %v1427 = vpop.trf.xlu0
        %v1428 = vpop.trf.xlu0
        %v1429 = vpop.trf.xlu0
        %v1430 = vpop.trf.xlu0
        %v1431 = vpop.trf.xlu0
        %v1432 = vpop.trf.xlu0
        %v1433 = vpop.trf.xlu0
        %v1434 = vpop.trf.xlu0
        %1436 = vset.pattern.permute.xlu0 0
        %1437 = vperm.xlu0 %1436, %v1325
        %v1438 = vpop.permute.xlu0 %1437
        %1441 = vset.pattern.permute.xlu0 0
        %1442 = vperm.xlu0 %1441, %v1328
        %v1443 = vpop.permute.xlu0 %1442
        %v1445 = vlaneseq
        %v1446 = vshrl.u32 %v1445, 7
        %v1447 = vsub.s32 0, %v1446
        %v1448 = vrot.slane %v1419, %v1447
        %v1449 = vadd.f32 %v1438, %v1448
        %v1450 = vadd.f32 %v1443, %v1448
        %vm1451 = vcmp.gt.f32.partialorder %v1449, 0.0
        %vm1452 = vcmp.gt.f32.partialorder %v1450, 0.0
        %v1453 = vmul.f32 %v1449, 0.2
        %v1454 = vmul.f32 %v1450, 0.2
        %v1455 = vsel %vm1451, %v1449, %v1453
        %v1456 = vsel %vm1452, %v1450, %v1454
        %v1457 = vadd.f32 %v1455, %v1332
        %v1458 = vadd.f32 %v1456, %v1333
        %v1459 = vsel %vm657, %v1457, -inf
        %1460 = vmax.xlane.f32.xlu0 %v1459
        %v1461 = vpop.xlane.xlu0 %1460
        %v1462 = vsel %vm657, %v1458, -inf
        %1463 = vmax.xlane.f32.xlu0 %v1462
        %v1464 = vpop.xlane.xlu0 %1463
        %v1465 = vsub.f32 %v1457, %v1461
        %v1466 = vsub.f32 %v1458, %v1464
        %v1467 = vmul.f32 %v1465, 1.442695
        %v1468 = vpow.pop %v1467
        %v1469 = vmul.f32 %v1466, 1.442695
        %v1470 = vpow.pop %v1469
        %v1471 = vsel %vm657, %v1468, 0.0
        %1472 = vadd.xlane.f32.xlu0 %v1471
        %v1473 = vpop.xlane.xlu0 %1472
        %v1474 = vsel %vm657, %v1470, 0.0
        %1475 = vadd.xlane.f32.xlu0 %v1474
        %v1476 = vpop.xlane.xlu0 %1475
        %v1477 = vrcp.pop %v1473
        %v1478 = vrcp.pop %v1476
        %v1479 = vmul.f32 %v1477, %v1335
        %v1480 = vmul.f32 %v1478, %v1336
        %1482 = vset.pattern.permute.xlu0 0
        %1483 = vperm.xlu0 %1482, %v1479
        %v1484 = vpop.permute.xlu0 %1483
        %1487 = vset.pattern.permute.xlu0 0
        %1488 = vperm.xlu0 %1487, %v1480
        %v1489 = vpop.permute.xlu0 %1488
        %v1491 = vmul.f32 %v1468, %v1484
        %v1492 = vmul.f32 %v1470, %v1489
        %v1493 = vpack.c.bf16 %v1492, %v1491
        %v1494 = vpack.c.bf16 %v1392, %v1389
        %1495 = vset.pattern.permute.xlu0 1
        %1496 = vperm.xlu0 %1495, %v1325
        %v1497 = vpop.permute.xlu0 %1496
        %1499 = vset.pattern.permute.xlu0 1
        %1500 = vperm.xlu0 %1499, %v1328
        %v1501 = vpop.permute.xlu0 %1500
        %v1503 = vlaneseq
        %v1504 = vshrl.u32 %v1503, 7
        %v1505 = vsub.s32 1, %v1504
        %v1506 = vrot.slane %v1419, %v1505
        %v1507 = vadd.f32 %v1497, %v1506
        %v1508 = vadd.f32 %v1501, %v1506
        %vm1509 = vcmp.gt.f32.partialorder %v1507, 0.0
        %vm1510 = vcmp.gt.f32.partialorder %v1508, 0.0
        %v1511 = vmul.f32 %v1507, 0.2
        %v1512 = vmul.f32 %v1508, 0.2
        %v1513 = vsel %vm1509, %v1507, %v1511
        %v1514 = vsel %vm1510, %v1508, %v1512
        %v1515 = vadd.f32 %v1513, %v1332
        %v1516 = vadd.f32 %v1514, %v1333
        %v1517 = vsel %vm657, %v1515, -inf
        %1518 = vmax.xlane.f32.xlu0 %v1517
        %v1519 = vpop.xlane.xlu0 %1518
        %v1520 = vsel %vm657, %v1516, -inf
        %1521 = vmax.xlane.f32.xlu0 %v1520
        %v1522 = vpop.xlane.xlu0 %1521
        %v1523 = vsub.f32 %v1515, %v1519
        %v1524 = vsub.f32 %v1516, %v1522
        %v1525 = vmul.f32 %v1523, 1.442695
        %v1526 = vpow.pop %v1525
        %v1527 = vmul.f32 %v1524, 1.442695
        %v1528 = vpow.pop %v1527
        %v1529 = vsel %vm657, %v1526, 0.0
        %1530 = vadd.xlane.f32.xlu0 %v1529
        %v1531 = vpop.xlane.xlu0 %1530
        %v1532 = vsel %vm657, %v1528, 0.0
        %1533 = vadd.xlane.f32.xlu0 %v1532
        %v1534 = vpop.xlane.xlu0 %1533
        %v1535 = vrcp.pop %v1531
        %v1536 = vrcp.pop %v1534
        %v1537 = vmul.f32 %v1535, %v1335
        %v1538 = vmul.f32 %v1536, %v1336
        %1540 = vset.pattern.permute.xlu0 0
        %1541 = vperm.xlu0 %1540, %v1537
        %v1542 = vpop.permute.xlu0 %1541
        %1545 = vset.pattern.permute.xlu0 0
        %1546 = vperm.xlu0 %1545, %v1538
        %v1547 = vpop.permute.xlu0 %1546
        %v1549 = vmul.f32 %v1526, %v1542
        %v1550 = vmul.f32 %v1528, %v1547
        %v1551 = vpack.c.bf16 %v1550, %v1549
        %1553 = vrot.lane.b32.xlu0 %v1494, 96
        %v1554 = vpop.permute.xlu0 %1553
        %v1557 = vsel %vm657, %v1551, 0
        %1559 = vmatprep.subr.bf16.mxu0 0
        %1560 = vmatpush1.bf16.msra.mxu0 0
        %1561 = vmatprep.subr.bf16.mxu0 0
        %1562 = vmatpush1.bf16.msra.mxu0 0
        %1563 = vmatprep.subr.bf16.mxu0 0
        %1564 = vmatpush1.bf16.msra.mxu0 0
        %1565 = vmatprep.subr.bf16.mxu0 0
        %1566 = vmatpush1.bf16.msra.mxu0 0
        %1567 = vmatprep.subr.bf16.mxu0 0
        %1568 = vmatpush1.bf16.msra.mxu0 0
        %1569 = vmatprep.subr.bf16.mxu0 0
        %1570 = vmatpush1.bf16.msra.mxu0 0
        %1571 = vmatprep.subr.bf16.mxu0 0
        %1572 = vmatpush1.bf16.msra.mxu0 0
        %1573 = vmatprep.subr.bf16.mxu0 0
        %1574 = vmatpush1.bf16.msra.mxu0 %v1554
        %1575 = vmatprep.subr.bf16.mxu0 0
        %1576 = vmatpush2.bf16.msra.mxu0 0
        %1577 = vmatprep.subr.bf16.mxu0 0
        %1578 = vmatpush2.bf16.msra.mxu0 0
        %1579 = vmatprep.subr.bf16.mxu0 0
        %1580 = vmatpush2.bf16.msra.mxu0 0
        %1581 = vmatprep.subr.bf16.mxu0 0
        %1582 = vmatpush2.bf16.msra.mxu0 0
        %1583 = vmatprep.subr.bf16.mxu0 0
        %1584 = vmatpush2.bf16.msra.mxu0 0
        %1585 = vmatprep.subr.bf16.mxu0 0
        %1586 = vmatpush2.bf16.msra.mxu0 0
        %1587 = vmatprep.subr.bf16.mxu0 0
        %1588 = vmatpush2.bf16.msra.mxu0 0
        %1589 = vmatprep.subr.bf16.mxu0 0
        %1590 = vmatpush2.bf16.msra.mxu0 0
        %1591 = vmatprep.mubr.bf16.mxu0 0
        %1592 = vmatmul.mubr.bf16.gmra.mxu0 %v1557
        %v1593 = vpop.f32.mrf.mxu0
        %v1594 = vadd.f32 0.0, %v1593
        %v1595 = vpop.f32.mrf.mxu0
        %v1596 = vpop.f32.mrf.mxu0
        %v1597 = vadd.f32 0.0, %v1596
        %v1598 = vpop.f32.mrf.mxu0
        %1599 = vdwg.mxu0
        %v1601 = vsel %vm657, %v1493, 0
        %1603 = vmatprep.subr.bf16.mxu0 0
        %1604 = vmatpush1.bf16.msra.mxu0 0
        %1605 = vmatprep.subr.bf16.mxu0 0
        %1606 = vmatpush1.bf16.msra.mxu0 0
        %1607 = vmatprep.subr.bf16.mxu0 0
        %1608 = vmatpush1.bf16.msra.mxu0 0
        %1609 = vmatprep.subr.bf16.mxu0 0
        %1610 = vmatpush1.bf16.msra.mxu0 0
        %1611 = vmatprep.subr.bf16.mxu0 0
        %1612 = vmatpush1.bf16.msra.mxu0 0
        %1613 = vmatprep.subr.bf16.mxu0 0
        %1614 = vmatpush1.bf16.msra.mxu0 0
        %1615 = vmatprep.subr.bf16.mxu0 0
        %1616 = vmatpush1.bf16.msra.mxu0 0
        %1617 = vmatprep.subr.bf16.mxu0 0
        %1618 = vmatpush1.bf16.msra.mxu0 %v1494
        %1619 = vmatprep.subr.bf16.mxu0 0
        %1620 = vmatpush2.bf16.msra.mxu0 0
        %1621 = vmatprep.subr.bf16.mxu0 0
        %1622 = vmatpush2.bf16.msra.mxu0 0
        %1623 = vmatprep.subr.bf16.mxu0 0
        %1624 = vmatpush2.bf16.msra.mxu0 0
        %1625 = vmatprep.subr.bf16.mxu0 0
        %1626 = vmatpush2.bf16.msra.mxu0 0
        %1627 = vmatprep.subr.bf16.mxu0 0
        %1628 = vmatpush2.bf16.msra.mxu0 0
        %1629 = vmatprep.subr.bf16.mxu0 0
        %1630 = vmatpush2.bf16.msra.mxu0 0
        %1631 = vmatprep.subr.bf16.mxu0 0
        %1632 = vmatpush2.bf16.msra.mxu0 0
        %1633 = vmatprep.subr.bf16.mxu0 0
        %1634 = vmatpush2.bf16.msra.mxu0 0
        %1635 = vmatprep.mubr.bf16.mxu0 0
        %1636 = vmatmul.mubr.bf16.gmra.mxu0 %v1601
        %v1637 = vpop.f32.mrf.mxu0
        %v1638 = vadd.f32 %v1594, %v1637
        %v1639 = vpop.f32.mrf.mxu0
        %v1640 = vpop.f32.mrf.mxu0
        %v1641 = vadd.f32 %v1597, %v1640
        %v1642 = vpop.f32.mrf.mxu0
        %1643 = vdwg.mxu0
        %s1644 = scalar_lea.vmem [#allocation3], 48
        %v1645 = vld [vmem:[%s1644] sm:$0xff]
        %v1646 = vld [vmem:[%s1644 + $0x8] sm:$0xff]
        %s1647 = scalar_lea.vmem [#allocation4], 48
        %v1648 = vld [vmem:[%s1647] sm:$0xff]
        %v1649 = vld [vmem:[%s1647 + $0x8] sm:$0xff]
        %s1650 = scalar_lea.vmem %s320, 48
        %v1651 = vld [vmem:[%s1650] sm:$0xf]
        %v1652 = vld [vmem:[%s1650 + $0x4] sm:$0xf]
        %v1653 = vld [vmem:[%s1650 + $0x8] sm:$0xf]
        %v1654 = vld [vmem:[%s1650 + $0xc] sm:$0xf]
        %v1659 = vunpack.c.l.b16 %v1651
        %v1660 = vunpack.c.l.b16 %v1652
        %v1661 = vunpack.c.l.b16 %v1653
        %v1662 = vunpack.c.l.b16 %v1654
        %v1663 = vpack.c.b16 %v1660, %v1659
        %v1664 = vpack.c.b16 %v1662, %v1661
        %1667 = vmatprep.subr.bf16.mxu0 0
        %1668 = vmatpush1.bf16.msra.mxu0 0
        %1669 = vmatprep.subr.bf16.mxu0 0
        %1670 = vmatpush1.bf16.msra.mxu0 0
        %1671 = vmatprep.subr.bf16.mxu0 0
        %1672 = vmatpush1.bf16.msra.mxu0 0
        %1673 = vmatprep.subr.bf16.mxu0 0
        %1674 = vmatpush1.bf16.msra.mxu0 0
        %1675 = vmatprep.subr.bf16.mxu0 0
        %1676 = vmatpush1.bf16.msra.mxu0 0
        %1677 = vmatprep.subr.bf16.mxu0 0
        %1678 = vmatpush1.bf16.msra.mxu0 0
        %1679 = vmatprep.subr.bf16.mxu0 0
        %1680 = vmatpush1.bf16.msra.mxu0 %v1664
        %1681 = vmatprep.subr.bf16.mxu0 0
        %1682 = vmatpush1.bf16.msra.mxu0 %v1663
        %1683 = vmatprep.subr.bf16.mxu0 0
        %1684 = vmatpush2.bf16.msra.mxu0 0
        %1685 = vmatprep.subr.bf16.mxu0 0
        %1686 = vmatpush2.bf16.msra.mxu0 0
        %1687 = vmatprep.subr.bf16.mxu0 0
        %1688 = vmatpush2.bf16.msra.mxu0 0
        %1689 = vmatprep.subr.bf16.mxu0 0
        %1690 = vmatpush2.bf16.msra.mxu0 0
        %1691 = vmatprep.subr.bf16.mxu0 0
        %1692 = vmatpush2.bf16.msra.mxu0 0
        %1693 = vmatprep.subr.bf16.mxu0 0
        %1694 = vmatpush2.bf16.msra.mxu0 0
        %1695 = vmatprep.subr.bf16.mxu0 0
        %1696 = vmatpush2.bf16.msra.mxu0 0
        %1697 = vmatprep.subr.bf16.mxu0 0
        %1698 = vmatpush2.bf16.msra.mxu0 0
        %1699 = vmatprep.mubr.bf16.mxu0 0
        %1700 = vmatmul.mubr.bf16.gmra.mxu0 %v871
        %v1701 = vpop.f32.mrf.mxu0
        %v1702 = vadd.f32 0.0, %v1701
        %v1703 = vpop.f32.mrf.mxu0
        %v1704 = vpop.f32.mrf.mxu0
        %v1705 = vadd.f32 0.0, %v1704
        %v1706 = vpop.f32.mrf.mxu0
        %1707 = vdwg.mxu0
        %1710 = vrot.lane.b32.xlu0 %v1702, 64
        %v1711 = vpop.permute.xlu0 %1710
        %1712 = vrot.lane.b32.xlu0 %v1705, 64
        %v1713 = vpop.permute.xlu0 %1712
        %1716 = vxpose.xlu0.b32.start [1/16] %v1711, 128
        %1717 = vxpose.xlu0.b32.cont [2/16] %v1713, 128
        %1718 = vxpose.xlu0.b32.cont [3/16] 0.0, 128
        %1719 = vxpose.xlu0.b32.cont [4/16] 0.0, 128
        %1720 = vxpose.xlu0.b32.cont [5/16] 0.0, 128
        %1721 = vxpose.xlu0.b32.cont [6/16] 0.0, 128
        %1722 = vxpose.xlu0.b32.cont [7/16] 0.0, 128
        %1723 = vxpose.xlu0.b32.cont [8/16] 0.0, 128
        %1724 = vxpose.xlu0.b32.cont [9/16] 0.0, 128
        %1725 = vxpose.xlu0.b32.cont [10/16] 0.0, 128
        %1726 = vxpose.xlu0.b32.cont [11/16] 0.0, 128
        %1727 = vxpose.xlu0.b32.cont [12/16] 0.0, 128
        %1728 = vxpose.xlu0.b32.cont [13/16] 0.0, 128
        %1729 = vxpose.xlu0.b32.cont [14/16] 0.0, 128
        %1730 = vxpose.xlu0.b32.cont [15/16] 0.0, 128
        %1731 = vxpose.xlu0.b32.end [16/16] 0.0, 128
        %v1732 = vpop.trf.xlu0
        %v1733 = vpop.trf.xlu0
        %v1734 = vpop.trf.xlu0
        %v1735 = vpop.trf.xlu0
        %v1736 = vpop.trf.xlu0
        %v1737 = vpop.trf.xlu0
        %v1738 = vpop.trf.xlu0
        %v1739 = vpop.trf.xlu0
        %v1740 = vpop.trf.xlu0
        %v1741 = vpop.trf.xlu0
        %v1742 = vpop.trf.xlu0
        %v1743 = vpop.trf.xlu0
        %v1744 = vpop.trf.xlu0
        %v1745 = vpop.trf.xlu0
        %v1746 = vpop.trf.xlu0
        %v1747 = vpop.trf.xlu0
        %1748 = vset.pattern.permute.xlu0 2
        %1749 = vperm.xlu0 %1748, %v1325
        %v1750 = vpop.permute.xlu0 %1749
        %1752 = vset.pattern.permute.xlu0 2
        %1753 = vperm.xlu0 %1752, %v1328
        %v1754 = vpop.permute.xlu0 %1753
        %v1756 = vlaneseq
        %v1757 = vshrl.u32 %v1756, 7
        %v1758 = vsub.s32 0, %v1757
        %v1759 = vrot.slane %v1732, %v1758
        %v1760 = vadd.f32 %v1750, %v1759
        %v1761 = vadd.f32 %v1754, %v1759
        %vm1762 = vcmp.gt.f32.partialorder %v1760, 0.0
        %vm1763 = vcmp.gt.f32.partialorder %v1761, 0.0
        %v1764 = vmul.f32 %v1760, 0.2
        %v1765 = vmul.f32 %v1761, 0.2
        %v1766 = vsel %vm1762, %v1760, %v1764
        %v1767 = vsel %vm1763, %v1761, %v1765
        %v1768 = vadd.f32 %v1766, %v1645
        %v1769 = vadd.f32 %v1767, %v1646
        %v1770 = vsel %vm657, %v1768, -inf
        %1771 = vmax.xlane.f32.xlu0 %v1770
        %v1772 = vpop.xlane.xlu0 %1771
        %v1773 = vsel %vm657, %v1769, -inf
        %1774 = vmax.xlane.f32.xlu0 %v1773
        %v1775 = vpop.xlane.xlu0 %1774
        %v1776 = vsub.f32 %v1768, %v1772
        %v1777 = vsub.f32 %v1769, %v1775
        %v1778 = vmul.f32 %v1776, 1.442695
        %v1779 = vpow.pop %v1778
        %v1780 = vmul.f32 %v1777, 1.442695
        %v1781 = vpow.pop %v1780
        %v1782 = vsel %vm657, %v1779, 0.0
        %1783 = vadd.xlane.f32.xlu0 %v1782
        %v1784 = vpop.xlane.xlu0 %1783
        %v1785 = vsel %vm657, %v1781, 0.0
        %1786 = vadd.xlane.f32.xlu0 %v1785
        %v1787 = vpop.xlane.xlu0 %1786
        %v1788 = vrcp.pop %v1784
        %v1789 = vrcp.pop %v1787
        %v1790 = vmul.f32 %v1788, %v1648
        %v1791 = vmul.f32 %v1789, %v1649
        %1793 = vset.pattern.permute.xlu0 0
        %1794 = vperm.xlu0 %1793, %v1790
        %v1795 = vpop.permute.xlu0 %1794
        %1798 = vset.pattern.permute.xlu0 0
        %1799 = vperm.xlu0 %1798, %v1791
        %v1800 = vpop.permute.xlu0 %1799
        %v1802 = vmul.f32 %v1779, %v1795
        %v1803 = vmul.f32 %v1781, %v1800
        %v1804 = vpack.c.bf16 %v1803, %v1802
        %v1805 = vpack.c.bf16 %v1705, %v1702
        %v1807 = vsel %vm657, %v1804, 0
        %1809 = vmatprep.subr.bf16.mxu0 0
        %1810 = vmatpush1.bf16.msra.mxu0 0
        %1811 = vmatprep.subr.bf16.mxu0 0
        %1812 = vmatpush1.bf16.msra.mxu0 0
        %1813 = vmatprep.subr.bf16.mxu0 0
        %1814 = vmatpush1.bf16.msra.mxu0 0
        %1815 = vmatprep.subr.bf16.mxu0 0
        %1816 = vmatpush1.bf16.msra.mxu0 0
        %1817 = vmatprep.subr.bf16.mxu0 0
        %1818 = vmatpush1.bf16.msra.mxu0 0
        %1819 = vmatprep.subr.bf16.mxu0 0
        %1820 = vmatpush1.bf16.msra.mxu0 0
        %1821 = vmatprep.subr.bf16.mxu0 0
        %1822 = vmatpush1.bf16.msra.mxu0 0
        %1823 = vmatprep.subr.bf16.mxu0 0
        %1824 = vmatpush1.bf16.msra.mxu0 %v1805
        %1825 = vmatprep.subr.bf16.mxu0 0
        %1826 = vmatpush2.bf16.msra.mxu0 0
        %1827 = vmatprep.subr.bf16.mxu0 0
        %1828 = vmatpush2.bf16.msra.mxu0 0
        %1829 = vmatprep.subr.bf16.mxu0 0
        %1830 = vmatpush2.bf16.msra.mxu0 0
        %1831 = vmatprep.subr.bf16.mxu0 0
        %1832 = vmatpush2.bf16.msra.mxu0 0
        %1833 = vmatprep.subr.bf16.mxu0 0
        %1834 = vmatpush2.bf16.msra.mxu0 0
        %1835 = vmatprep.subr.bf16.mxu0 0
        %1836 = vmatpush2.bf16.msra.mxu0 0
        %1837 = vmatprep.subr.bf16.mxu0 0
        %1838 = vmatpush2.bf16.msra.mxu0 0
        %1839 = vmatprep.subr.bf16.mxu0 0
        %1840 = vmatpush2.bf16.msra.mxu0 0
        %1841 = vmatprep.mubr.bf16.mxu0 0
        %1842 = vmatmul.mubr.bf16.gmra.mxu0 %v1807
        %v1843 = vpop.f32.mrf.mxu0
        %v1844 = vadd.f32 0.0, %v1843
        %v1845 = vpop.f32.mrf.mxu0
        %v1846 = vpop.f32.mrf.mxu0
        %v1847 = vadd.f32 0.0, %v1846
        %v1848 = vpop.f32.mrf.mxu0
        %1849 = vdwg.mxu0
        %v1850 = vadd.f32 %v1638, %v1844
        %v1851 = vadd.f32 %v1641, %v1847
        %1852 = vset.pattern.permute.xlu0 3
        %1853 = vperm.xlu0 %1852, %v1325
        %v1854 = vpop.permute.xlu0 %1853
        %1856 = vset.pattern.permute.xlu0 3
        %1857 = vperm.xlu0 %1856, %v1328
        %v1858 = vpop.permute.xlu0 %1857
        %v1860 = vlaneseq
        %v1861 = vshrl.u32 %v1860, 7
        %v1862 = vsub.s32 1, %v1861
        %v1863 = vrot.slane %v1732, %v1862
        %v1864 = vadd.f32 %v1854, %v1863
        %v1865 = vadd.f32 %v1858, %v1863
        %vm1866 = vcmp.gt.f32.partialorder %v1864, 0.0
        %vm1867 = vcmp.gt.f32.partialorder %v1865, 0.0
        %v1868 = vmul.f32 %v1864, 0.2
        %v1869 = vmul.f32 %v1865, 0.2
        %v1870 = vsel %vm1866, %v1864, %v1868
        %v1871 = vsel %vm1867, %v1865, %v1869
        %v1872 = vadd.f32 %v1870, %v1645
        %v1873 = vadd.f32 %v1871, %v1646
        %v1874 = vsel %vm657, %v1872, -inf
        %1875 = vmax.xlane.f32.xlu0 %v1874
        %v1876 = vpop.xlane.xlu0 %1875
        %v1877 = vsel %vm657, %v1873, -inf
        %1878 = vmax.xlane.f32.xlu0 %v1877
        %v1879 = vpop.xlane.xlu0 %1878
        %v1880 = vsub.f32 %v1872, %v1876
        %v1881 = vsub.f32 %v1873, %v1879
        %v1882 = vmul.f32 %v1880, 1.442695
        %v1883 = vpow.pop %v1882
        %v1884 = vmul.f32 %v1881, 1.442695
        %v1885 = vpow.pop %v1884
        %v1886 = vsel %vm657, %v1883, 0.0
        %1887 = vadd.xlane.f32.xlu0 %v1886
        %v1888 = vpop.xlane.xlu0 %1887
        %v1889 = vsel %vm657, %v1885, 0.0
        %1890 = vadd.xlane.f32.xlu0 %v1889
        %v1891 = vpop.xlane.xlu0 %1890
        %v1892 = vrcp.pop %v1888
        %v1893 = vrcp.pop %v1891
        %v1894 = vmul.f32 %v1892, %v1648
        %v1895 = vmul.f32 %v1893, %v1649
        %1897 = vset.pattern.permute.xlu0 0
        %1898 = vperm.xlu0 %1897, %v1894
        %v1899 = vpop.permute.xlu0 %1898
        %1902 = vset.pattern.permute.xlu0 0
        %1903 = vperm.xlu0 %1902, %v1895
        %v1904 = vpop.permute.xlu0 %1903
        %v1906 = vmul.f32 %v1883, %v1899
        %v1907 = vmul.f32 %v1885, %v1904
        %v1908 = vpack.c.bf16 %v1907, %v1906
        %1910 = vrot.lane.b32.xlu0 %v1805, 96
        %v1911 = vpop.permute.xlu0 %1910
        %v1914 = vsel %vm657, %v1908, 0
        %1916 = vmatprep.subr.bf16.mxu0 0
        %1917 = vmatpush1.bf16.msra.mxu0 0
        %1918 = vmatprep.subr.bf16.mxu0 0
        %1919 = vmatpush1.bf16.msra.mxu0 0
        %1920 = vmatprep.subr.bf16.mxu0 0
        %1921 = vmatpush1.bf16.msra.mxu0 0
        %1922 = vmatprep.subr.bf16.mxu0 0
        %1923 = vmatpush1.bf16.msra.mxu0 0
        %1924 = vmatprep.subr.bf16.mxu0 0
        %1925 = vmatpush1.bf16.msra.mxu0 0
        %1926 = vmatprep.subr.bf16.mxu0 0
        %1927 = vmatpush1.bf16.msra.mxu0 0
        %1928 = vmatprep.subr.bf16.mxu0 0
        %1929 = vmatpush1.bf16.msra.mxu0 0
        %1930 = vmatprep.subr.bf16.mxu0 0
        %1931 = vmatpush1.bf16.msra.mxu0 %v1911
        %1932 = vmatprep.subr.bf16.mxu0 0
        %1933 = vmatpush2.bf16.msra.mxu0 0
        %1934 = vmatprep.subr.bf16.mxu0 0
        %1935 = vmatpush2.bf16.msra.mxu0 0
        %1936 = vmatprep.subr.bf16.mxu0 0
        %1937 = vmatpush2.bf16.msra.mxu0 0
        %1938 = vmatprep.subr.bf16.mxu0 0
        %1939 = vmatpush2.bf16.msra.mxu0 0
        %1940 = vmatprep.subr.bf16.mxu0 0
        %1941 = vmatpush2.bf16.msra.mxu0 0
        %1942 = vmatprep.subr.bf16.mxu0 0
        %1943 = vmatpush2.bf16.msra.mxu0 0
        %1944 = vmatprep.subr.bf16.mxu0 0
        %1945 = vmatpush2.bf16.msra.mxu0 0
        %1946 = vmatprep.subr.bf16.mxu0 0
        %1947 = vmatpush2.bf16.msra.mxu0 0
        %1948 = vmatprep.mubr.bf16.mxu0 0
        %1949 = vmatmul.mubr.bf16.gmra.mxu0 %v1914
        %v1950 = vpop.f32.mrf.mxu0
        %v1951 = vadd.f32 0.0, %v1950
        %v1952 = vpop.f32.mrf.mxu0
        %v1953 = vpop.f32.mrf.mxu0
        %v1954 = vadd.f32 0.0, %v1953
        %v1955 = vpop.f32.mrf.mxu0
        %1956 = vdwg.mxu0
        %v1957 = vadd.f32 %v1850, %v1951
        %v1958 = vadd.f32 %v1851, %v1954
        %v1959 = vmul.f32 %v1957, 0.5
        %v1960 = vmul.f32 %v1958, 0.5
        %s1961 = scalar_lea.vmem %s329, 1
        %v1962 = vld [vmem:[%s1961] sm:$0x1]
        %v1964 = vlaneseq
        %v1965 = vshrl.u32 %v1964, 7
        %v1966 = vsub.s32 0, %v1965
        %v1967 = vrot.slane %v1962, %v1966
        %v1969 = vadd.f32 %v1959, %v1967
        %v1970 = vadd.f32 %v1960, %v1967
        %v1971 = vmax.f32 %v1969, 0.0
        %v1972 = vmax.f32 %v1970, 0.0
        %1975 = vrot.lane.b32.xlu0 %v844, 32
        %v1976 = vpop.permute.xlu0 %1975
        %1977 = vrot.lane.b32.xlu0 %v845, 32
        %v1978 = vpop.permute.xlu0 %1977
        %v1981 = vsel %vm487, %v1971, %v1976
        %v1982 = vsel %vm487, %v1972, %v1978
        %v1983 = vpack.c.bf16 %v1982, %v1981
        %s1984 = scalar_lea.vmem %s334, 32
        %v1985 = vld [vmem:[%s1984] sm:$0xf]
        %v1986 = vld [vmem:[%s1984 + $0x4] sm:$0xf]
        %v1987 = vld [vmem:[%s1984 + $0x8] sm:$0xf]
        %v1988 = vld [vmem:[%s1984 + $0xc] sm:$0xf]
        %v1989 = vld [vmem:[%s1984 + $0x10] sm:$0xf]
        %v1990 = vld [vmem:[%s1984 + $0x14] sm:$0xf]
        %v1991 = vld [vmem:[%s1984 + $0x18] sm:$0xf]
        %v1992 = vld [vmem:[%s1984 + $0x1c] sm:$0xf]
        %s1993 = scalar_lea.vmem %s338, 1
        %v1994 = vld [vmem:[%s1993] sm:$0x1]
        %v1996 = vlaneseq
        %v1997 = vshrl.u32 %v1996, 7
        %v1998 = vsub.s32 0, %v1997
        %v1999 = vrot.slane %v1994, %v1998
        %v2009 = vunpack.c.l.b16 %v1985
        %v2010 = vunpack.c.l.b16 %v1986
        %v2011 = vunpack.c.l.b16 %v1987
        %v2012 = vunpack.c.l.b16 %v1988
        %v2013 = vunpack.c.l.b16 %v1989
        %v2014 = vunpack.c.l.b16 %v1990
        %v2015 = vunpack.c.l.b16 %v1991
        %v2016 = vunpack.c.l.b16 %v1992
        %v2017 = vpack.c.b16 %v2010, %v2009
        %v2018 = vpack.c.b16 %v2012, %v2011
        %v2019 = vpack.c.b16 %v2014, %v2013
        %v2020 = vpack.c.b16 %v2016, %v2015
        %v2026 = vsel %vm1228, %v1983, 0
        %2028 = vmatprep.subr.bf16.mxu0 0
        %2029 = vmatpush1.bf16.msra.mxu0 0
        %2030 = vmatprep.subr.bf16.mxu0 0
        %2031 = vmatpush1.bf16.msra.mxu0 0
        %2032 = vmatprep.subr.bf16.mxu0 0
        %2033 = vmatpush1.bf16.msra.mxu0 0
        %2034 = vmatprep.subr.bf16.mxu0 0
        %2035 = vmatpush1.bf16.msra.mxu0 0
        %2036 = vmatprep.subr.bf16.mxu0 0
        %2037 = vmatpush1.bf16.msra.mxu0 %v2020
        %2038 = vmatprep.subr.bf16.mxu0 0
        %2039 = vmatpush1.bf16.msra.mxu0 %v2019
        %2040 = vmatprep.subr.bf16.mxu0 0
        %2041 = vmatpush1.bf16.msra.mxu0 %v2018
        %2042 = vmatprep.subr.bf16.mxu0 0
        %2043 = vmatpush1.bf16.msra.mxu0 %v2017
        %2044 = vmatprep.subr.bf16.mxu0 0
        %2045 = vmatpush2.bf16.msra.mxu0 0
        %2046 = vmatprep.subr.bf16.mxu0 0
        %2047 = vmatpush2.bf16.msra.mxu0 0
        %2048 = vmatprep.subr.bf16.mxu0 0
        %2049 = vmatpush2.bf16.msra.mxu0 0
        %2050 = vmatprep.subr.bf16.mxu0 0
        %2051 = vmatpush2.bf16.msra.mxu0 0
        %2052 = vmatprep.subr.bf16.mxu0 0
        %2053 = vmatpush2.bf16.msra.mxu0 0
        %2054 = vmatprep.subr.bf16.mxu0 0
        %2055 = vmatpush2.bf16.msra.mxu0 0
        %2056 = vmatprep.subr.bf16.mxu0 0
        %2057 = vmatpush2.bf16.msra.mxu0 0
        %2058 = vmatprep.subr.bf16.mxu0 0
        %2059 = vmatpush2.bf16.msra.mxu0 0
        %2060 = vmatprep.mubr.bf16.mxu0 0
        %2061 = vmatmul.mubr.bf16.gmra.mxu0 %v2026
        %v2062 = vpop.f32.mrf.mxu0
        %v2063 = vadd.f32 %v1999, %v2062
        %v2064 = vpop.f32.mrf.mxu0
        %v2065 = vpop.f32.mrf.mxu0
        %v2066 = vadd.f32 %v1999, %v2065
        %v2067 = vpop.f32.mrf.mxu0
        %2068 = vdwg.mxu0
        %2069 = vst.msk [vmem:[#allocation2] sm:$0xff] %vm487, %v1267
        %2070 = vst.msk [vmem:[#allocation2 + $0x8] sm:$0xff] %vm487, %v1270
        %2071 = vst.msk [vmem:[%s843] sm:$0xff] %vm487, %v2063
        %2072 = vst.msk [vmem:[%s843 + $0x8] sm:$0xff] %vm487, %v2066
        %p2073 = scmp.eq.s32.totalorder %s19, 1
        // Predicated region
        $region53: #{hetero_gnn_forward.1} parent=47 // pred_check
          %p2074 = pneg %p2073
        $region54: #{hetero_gnn_forward.1} parent=47 // pred_check_branch
          %2076 = sbr.rel (%p2074) target = $region56
        $region55: #{hetero_gnn_forward.1} parent=47 // pred_region
          %2077 = vst.msk [vmem:[#allocation5] sm:$0xff] %vm487, %v1267
          %2078 = vst.msk [vmem:[#allocation5 + $0x8] sm:$0xff] %vm487, %v1270
          %s2079 = scalar_lea.vmem [#allocation5], 16
          %2080 = vst.msk [vmem:[%s2079] sm:$0xff] %vm487, %v2063
          %2081 = vst.msk [vmem:[%s2079 + $0x8] sm:$0xff] %vm487, %v2066
        $region56: #{hetero_gnn_forward.1} parent=47 // pred_fallthru
          _
        // Predicated region
        $region57: #{hetero_gnn_forward.1} parent=47 // pred_check
          %p2082 = pneg %p204
        $region58: #{hetero_gnn_forward.1} parent=47 // pred_check_branch
          %2084 = sbr.rel (%p2082) target = $region60
        $region59: #{hetero_gnn_forward.1} parent=47 // pred_region
          %s2086 = ssub.s32 512, 512
          %2087 = vsyncadd [#allocation6], %s2086
          %s2088 = sshll.u32 [#allocation5], 4
          %s2089 = int_to_ptr.vmem [resolvable:$true] %s2088
          %2094 = dma.vmem_to_hbm [thread:$0]  %s2089, 512, %s7, [#allocation6], 128, 128, 8
        $region60: #{hetero_gnn_forward.1} parent=47 // pred_fallthru
          _
        // Predicated region
        $region61: #{hetero_gnn_forward.1} parent=47 // pred_check
          %p2095 = pneg %p204
        $region62: #{hetero_gnn_forward.1} parent=47 // pred_check_branch
          %2097 = sbr.rel (%p2095) target = $region64
        $region63: #{hetero_gnn_forward.1} parent=47 // pred_region
          %2098 = dma.done [#allocation6], 512
        $region64: #{hetero_gnn_forward.1} parent=47 // pred_fallthru
          _
      $region48: #{hetero_gnn_forward.1} parent=5 // pred_fallthru
        _
      %p2099 = scmp.le.s32.totalorder 2, %s14
      // Predicated region
      $region65: #{hetero_gnn_forward.1} parent=5 // pred_check
        %p2100 = pneg %p2099
      $region66: #{hetero_gnn_forward.1} parent=5 // pred_check_branch
        %2102 = sbr.rel (%p2100) target = $region68
      $region67: #{hetero_gnn_forward.1} parent=5 // pred_region
        %s2103 = ssub.s32 %s14, 2
      $region68: #{hetero_gnn_forward.1} parent=5 // pred_fallthru
        _
    $region6: #{hetero_gnn_forward.1} parent=1 // loop_footer
      %s18 = sadd.s32 1, %s14
    $region7: #{hetero_gnn_forward.1} parent=1 // loop_footer_branch
      %13 = sbr.rel target = $region3
    $region8: #{hetero_gnn_forward.1} parent=1 // loop_exit
      _
    %2104 = vsyncpa [#allocation6], 1
    %s2105 = scalar_lea.sflag [#allocation6], 1
    %2106 = vsyncpa %s2105, 1

</llo_original>
